<compile_context>
chip_gen: v6e
topology: v6e:2x2x1
jax: 0.10.0
libtpu: 0.0.40
codegen_flags: <defaults>
</compile_context>

<pallas_src>
import functools

import jax
import jax.numpy as jnp
from jax import lax
from jax.experimental import pallas as pl
from jax.experimental.pallas import tpu as pltpu


# ---------------------------------------------------------------------------
# Kernel
# ---------------------------------------------------------------------------

def _upsample_conv_kernel(x_ref, k_ref, b_ref, m_ref, o_ref, taps_ref,
                          *, W, pad, C, fuse):
    """Fused nearest-2x upsample + 3x3 conv for one batch group.

    x_ref:    (1, C, Nb + 2*pad)  pre-padded, batch-folded flat input (compute dtype)
    k_ref:    (4C, 9C)            phase(x4) x tap(x9) combined conv weights
    b_ref:    (4C, 1)             bias replicated per phase (f32)
    m_ref:    (9, 1, Nb)          0/1 tap-validity masks on the folded lane axis
    o_ref:    (1, 4C, Nb)         phase-major output slab
    taps_ref: (9C, Nb)            VMEM scratch: stacked masked taps (single MXU operand)
    """
    Nb = o_ref.shape[2]

    # Stage the 9 masked low-res taps once into one contiguous (9C, Nb) MXU operand.
    for t in range(9):
        dy, dx = t // 3 - 1, t % 3 - 1
        off = dy * W + dx
        s = x_ref[0, :, pad + off:pad + off + Nb]                  # (C, Nb)
        if (dy, dx) != (0, 0):
            s = s * m_ref[t]                                       # (1, Nb) mask
        taps_ref[t * C:(t + 1) * C, :] = s

    if fuse:
        # One dense (4C, 9C) @ (9C, Nb) dot: all 4 phases as M, all 9 taps as K.
        acc = jnp.dot(k_ref[...], taps_ref[...],
                      preferred_element_type=jnp.float32)
        o_ref[0] = (acc + b_ref[...]).astype(o_ref.dtype)
    else:
        # Large-C path: per phase, two K=2C dots on contiguous tap sub-blocks.
        for a in (0, 1):
            for pb in (0, 1):
                p = 2 * a + pb
                acc = b_ref[p * C:(p + 1) * C, :]                  # (C, 1) f32
                for r in (0, 1):
                    dy = a + r - 1
                    row0 = ((dy + 1) * 3 + pb) * C
                    acc = acc + jnp.dot(
                        k_ref[p * C:(p + 1) * C, row0:row0 + 2 * C],
                        taps_ref[row0:row0 + 2 * C, :],
                        preferred_element_type=jnp.float32)
                o_ref[0, p * C:(p + 1) * C, :] = acc.astype(o_ref.dtype)


# ---------------------------------------------------------------------------
# Wrapper-side preprocessing (done once, outside the grid loop)
# ---------------------------------------------------------------------------

# Which 3x3 kernel rows/cols collapse onto low-res tap offset d for output phase a:
#   up[2i+a+k-1] = x[i + floor((a+k-1)/2)]
_KSETS = {(0, -1): (0,), (0, 0): (1, 2), (1, 0): (0, 1), (1, 1): (2,)}


def _fused_phase_weights(w, dtype):
    """Combine (C, C, 3, 3) conv weights into a (4C, 9C) phase x tap matrix."""
    C = w.shape[0]
    w = w.astype(jnp.float32)
    rows = []
    for a in (0, 1):
        for b in (0, 1):
            blocks = []
            for dy in (-1, 0, 1):
                for dx in (-1, 0, 1):
                    m = jnp.zeros((C, C), jnp.float32)
                    if (a, dy) in _KSETS and (b, dx) in _KSETS:
                        for ky in _KSETS[(a, dy)]:
                            for kx in _KSETS[(b, dx)]:
                                m = m + w[:, :, ky, kx]
                    blocks.append(m)
            rows.append(jnp.concatenate(blocks, axis=1))           # (C, 9C)
    return jnp.concatenate(rows, axis=0).astype(dtype)             # (4C, 9C)


def _tap_masks(H, W, Bb, dtype):
    """0/1 validity masks for each (dy, dx) tap on the batch-folded flat lane axis."""
    T = H * W
    t = jnp.arange(Bb * T, dtype=jnp.int32)
    jj = t % W
    ii = (t % T) // W
    rows = []
    for dy in (-1, 0, 1):
        for dx in (-1, 0, 1):
            ok = ((jj + dx >= 0) & (jj + dx < W) &
                  (ii + dy >= 0) & (ii + dy < H))
            rows.append(ok)
    return jnp.stack(rows, axis=0).astype(dtype)[:, None, :]       # (9, 1, Bb*T)


# ---------------------------------------------------------------------------
# Public wrapper
# ---------------------------------------------------------------------------

def upsample(x, params=None, *, use_conv=True, dims=2,
             compute_dtype=jnp.bfloat16, batch_block=None, fuse_phases=None):
    """Upsample.forward: nearest 2x upsample (+ optional 3x3 conv), fused on TPU."""
    if dims != 2:
        # TODO(synk): dims=1 / dims=3 F.interpolate variants are not implemented here.
        raise NotImplementedError("only dims=2 is implemented")
    B, C, H, W = x.shape
    T = H * W

    if not use_conv:
        # Pure nearest-neighbour upsample is data movement only: no compute to fuse,
        # so emit it as a plain XLA broadcast instead of a kernel (avoids extra passes).
        return jnp.repeat(jnp.repeat(x, 2, axis=2), 2, axis=3)

    if C % 8 != 0:
        # TODO(synk): tiny-channel path (C % 8 != 0) falls back to plain XLA conv.
        return upsample_ref(x, params, use_conv=True).astype(x.dtype)

    if fuse_phases is None:
        fuse_phases = C <= 128

    # Fold a few batch images onto the lane axis so matmul N and output stores are
    # lane-dense (target ~2048 lanes), while keeping >= 2 grid steps when possible.
    if batch_block is None:
        batch_block = min(B, max(1, 2048 // T))
        while batch_block > 1 and B // batch_block < 2:
            batch_block -= 1
    while B % batch_block:
        batch_block -= 1
    Bb = batch_block
    Bg = B // Bb
    Nb = Bb * T
    pad = W + 1

    store_dtype = compute_dtype
    itm = jnp.dtype(compute_dtype).itemsize
    sto = jnp.dtype(store_dtype).itemsize

    # Pre-padded, batch-folded, lane-flattened input: (Bg, C, Nb + 2*pad).
    x_f = (x.reshape(Bg, Bb, C, T).transpose(0, 2, 1, 3).reshape(Bg, C, Nb))
    x_f = jnp.pad(x_f, ((0, 0), (0, 0), (pad, pad))).astype(compute_dtype)

    k = _fused_phase_weights(params["conv_weight"], compute_dtype)          # (4C, 9C)
    bias = jnp.tile(params["conv_bias"].astype(jnp.float32), 4).reshape(4 * C, 1)
    masks = _tap_masks(H, W, Bb, compute_dtype)                             # (9, 1, Nb)

    kernel = functools.partial(_upsample_conv_kernel,
                               W=W, pad=pad, C=C, fuse=fuse_phases)

    # Explicit VMEM budget (raises v5e's 16 MiB default; capped at v7x's 64 MiB).
    vmem_est = (2 * C * (Nb + 2 * pad) * itm        # double-buffered input block
                + 2 * 4 * C * Nb * sto              # double-buffered output block
                + 9 * C * Nb * itm                  # stacked-tap scratch
                + 36 * C * C * itm + 9 * Nb * itm + 4 * C * 4)
    vmem_limit = int(min(max(int(vmem_est * 1.5), 32 * 1024 * 1024),
                         64 * 1024 * 1024))
    # TODO(synk): for very large C*H*W add an Nb-tiling grid axis (v7x 64 MiB VMEM cap).

    macs_per_lane = (36 if fuse_phases else 16) * C * C
    cost = pl.CostEstimate(
        flops=2 * macs_per_lane * Nb * Bg,
        transcendentals=0,
        bytes_accessed=int(x_f.size * itm + k.size * itm + masks.size * itm
                           + bias.size * 4 + Bg * 4 * C * Nb * sto))

    out_k = pl.pallas_call(
        kernel,
        out_shape=jax.ShapeDtypeStruct((Bg, 4 * C, Nb), store_dtype),
        grid_spec=pltpu.PrefetchScalarGridSpec(
            num_scalar_prefetch=0,
            grid=(Bg,),
            in_specs=[
                pl.BlockSpec((1, C, Nb + 2 * pad), lambda g: (g, 0, 0)),
                pl.BlockSpec((4 * C, 9 * C), lambda g: (0, 0)),
                pl.BlockSpec((4 * C, 1), lambda g: (0, 0)),
                pl.BlockSpec((9, 1, Nb), lambda g: (0, 0, 0)),
            ],
            out_specs=pl.BlockSpec((1, 4 * C, Nb), lambda g: (g, 0, 0)),
            scratch_shapes=[pltpu.VMEM((9 * C, Nb), compute_dtype)],
        ),
        compiler_params=pltpu.CompilerParams(
            dimension_semantics=("parallel",),
            vmem_limit_bytes=vmem_limit),
        cost_estimate=cost,
    )(x_f, k, bias, masks)

    # Layout plumbing back to NCHW: (Bg, a, b, C, Bb, H, W) -> (B, C, 2H, 2W).
    # Single pass over the compute-dtype slab; final cast fuses with the transpose.
    out = (out_k.reshape(Bg, 2, 2, C, Bb, H, W)
                .transpose(0, 4, 3, 5, 1, 6, 2)
                .reshape(B, C, 2 * H, 2 * W))
    return out.astype(x.dtype)


# ---------------------------------------------------------------------------
# Pure-JAX reference (mirrors the PyTorch forward)
# ---------------------------------------------------------------------------

def upsample_ref(x, params=None, *, use_conv=True):
    B, C, H, W = x.shape
    up = jnp.repeat(jnp.repeat(x, 2, axis=2), 2, axis=3)
    if not use_conv:
        return up
    out = lax.conv_general_dilated(
        up.astype(jnp.float32), params["conv_weight"].astype(jnp.float32),
        window_strides=(1, 1), padding=((1, 1), (1, 1)),
        dimension_numbers=("NCHW", "OIHW", "NCHW"),
        precision=lax.Precision.HIGHEST)
    return out + params["conv_bias"].reshape(1, C, 1, 1)


if __name__ == "__main__":
    B, C, H, W = 2, 64, 16, 16
    key = jax.random.PRNGKey(0)
    kx, kw, kb = jax.random.split(key, 3)
    x = jax.random.normal(kx, (B, C, H, W), dtype=jnp.float32)
    # Conv2d(C, C, 3, padding=1) parameters (PyTorch OIHW layout).
    params = {
        "conv_weight": 0.05 * jax.random.normal(kw, (C, C, 3, 3), jnp.float32),
        "conv_bias": 0.05 * jax.random.normal(kb, (C,), jnp.float32),
    }

    ref = upsample_ref(x, params, use_conv=True)

    # Exact-math check: f32 operands / f32 output, single fused dot path.
    out_f32 = jax.block_until_ready(
        upsample(x, params, use_conv=True, compute_dtype=jnp.float32))
    assert out_f32.shape == (B, C, 2 * H, 2 * W)
    err32 = float(jnp.max(jnp.abs(out_f32 - ref)))
    assert err32 < 1e-4, err32

    # Exact-math check of the large-C (K=2C stacked) code path.
    out_2x2 = jax.block_until_ready(
        upsample(x, params, use_conv=True, compute_dtype=jnp.float32,
                 fuse_phases=False))
    err2x2 = float(jnp.max(jnp.abs(out_2x2 - ref)))
    assert err2x2 < 1e-4, err2x2

    # Fast path (default): bf16 MXU operands + bf16 kernel output, f32 accumulation.
    # Tolerance covers bf16 operand + output rounding.
    out_bf = jax.block_until_ready(upsample(x, params, use_conv=True))
    errbf = float(jnp.max(jnp.abs(out_bf.astype(jnp.float32) - ref)))
    assert errbf < 1e-1, errbf

    # use_conv=False path: pure nearest-neighbour upsample, bit-exact.
    out_nn = jax.block_until_ready(upsample(x, params, use_conv=False))
    assert bool(jnp.array_equal(out_nn, upsample_ref(x, params, use_conv=False)))

    print("KERNEL_OK")
</pallas_src>

<mosaic_0001>
module attributes {stable_mosaic.version = 11 : i64} {
  func.func @_upsample_conv_kernel(%arg0: i32, %arg1: memref<1x64x290xf32, #tpu.memory_space<vmem>>, %arg2: memref<256x576xf32, #tpu.memory_space<vmem>>, %arg3: memref<256x1xf32, #tpu.memory_space<vmem>>, %arg4: memref<9x1x256xf32, #tpu.memory_space<vmem>>, %arg5: memref<1x256x256xf32, #tpu.memory_space<vmem>>, %arg6: memref<576x256xf32, #tpu.memory_space<vmem>>) attributes {dimension_semantics = [#tpu.dimension_semantics<parallel>], iteration_bounds = array<i64: 2>, scalar_prefetch = 0 : i64, scratch_operands = 1 : i64, tpu.core_type = #tpu.core_type<tc>, window_params = [{transform_indices = @transform_0, window_bounds = array<i64: 1, 64, 290>}, {pipeline_mode = #tpu.pipeline_mode<synchronous>, transform_indices = @transform_1, window_bounds = array<i64: 256, 576>}, {pipeline_mode = #tpu.pipeline_mode<synchronous>, transform_indices = @transform_2, window_bounds = array<i64: 256, 1>}, {pipeline_mode = #tpu.pipeline_mode<synchronous>, transform_indices = @transform_3, window_bounds = array<i64: 9, 1, 256>}, {transform_indices = @transform_4, window_bounds = array<i64: 1, 256, 256>}]} {
    %c0 = arith.constant 0 : index
    %c0_0 = arith.constant 0 : index
    %c0_1 = arith.constant 0 : index
    %0 = vector.load %arg1[%c0, %c0_0, %c0_1] : memref<1x64x290xf32, #tpu.memory_space<vmem>>, vector<1x64x256xf32>
    %1 = vector.shape_cast %0 : vector<1x64x256xf32> to vector<64x256xf32>
    %c0_2 = arith.constant 0 : index
    %c0_3 = arith.constant 0 : index
    %c0_4 = arith.constant 0 : index
    %2 = vector.load %arg4[%c0_2, %c0_3, %c0_4] : memref<9x1x256xf32, #tpu.memory_space<vmem>>, vector<1x1x256xf32>
    %3 = vector.shape_cast %2 : vector<1x1x256xf32> to vector<1x256xf32>
    %4 = vector.broadcast %3 : vector<1x256xf32> to vector<64x256xf32>
    %5 = arith.mulf %1, %4 : vector<64x256xf32>
    %c0_5 = arith.constant 0 : index
    %c0_6 = arith.constant 0 : index
    %6 = vector.load %arg6[%c0_5, %c0_6] : memref<576x256xf32, #tpu.memory_space<vmem>>, vector<64x256xf32>
    tpu.vector_store %arg6[%c0_5, %c0_6], %5 {strides = array<i32>} : memref<576x256xf32, #tpu.memory_space<vmem>>, vector<64x256xf32>,
    %c0_7 = arith.constant 0 : index
    %c0_8 = arith.constant 0 : index
    %c1 = arith.constant 1 : index
    %7 = vector.load %arg1[%c0_7, %c0_8, %c1] : memref<1x64x290xf32, #tpu.memory_space<vmem>>, vector<1x64x256xf32>
    %8 = vector.shape_cast %7 : vector<1x64x256xf32> to vector<64x256xf32>
    %c1_9 = arith.constant 1 : index
    %c0_10 = arith.constant 0 : index
    %c0_11 = arith.constant 0 : index
    %9 = vector.load %arg4[%c1_9, %c0_10, %c0_11] : memref<9x1x256xf32, #tpu.memory_space<vmem>>, vector<1x1x256xf32>
    %10 = vector.shape_cast %9 : vector<1x1x256xf32> to vector<1x256xf32>
    %11 = vector.broadcast %10 : vector<1x256xf32> to vector<64x256xf32>
    %12 = arith.mulf %8, %11 : vector<64x256xf32>
    %c64 = arith.constant 64 : index
    %c0_12 = arith.constant 0 : index
    %13 = vector.load %arg6[%c64, %c0_12] : memref<576x256xf32, #tpu.memory_space<vmem>>, vector<64x256xf32>
    tpu.vector_store %arg6[%c64, %c0_12], %12 {strides = array<i32>} : memref<576x256xf32, #tpu.memory_space<vmem>>, vector<64x256xf32>,
    %c0_13 = arith.constant 0 : index
    %c0_14 = arith.constant 0 : index
    %c2 = arith.constant 2 : index
    %14 = vector.load %arg1[%c0_13, %c0_14, %c2] : memref<1x64x290xf32, #tpu.memory_space<vmem>>, vector<1x64x256xf32>
    %15 = vector.shape_cast %14 : vector<1x64x256xf32> to vector<64x256xf32>
    %c2_15 = arith.constant 2 : index
    %c0_16 = arith.constant 0 : index
    %c0_17 = arith.constant 0 : index
    %16 = vector.load %arg4[%c2_15, %c0_16, %c0_17] : memref<9x1x256xf32, #tpu.memory_space<vmem>>, vector<1x1x256xf32>
    %17 = vector.shape_cast %16 : vector<1x1x256xf32> to vector<1x256xf32>
    %18 = vector.broadcast %17 : vector<1x256xf32> to vector<64x256xf32>
    %19 = arith.mulf %15, %18 : vector<64x256xf32>
    %c128 = arith.constant 128 : index
    %c0_18 = arith.constant 0 : index
    %20 = vector.load %arg6[%c128, %c0_18] : memref<576x256xf32, #tpu.memory_space<vmem>>, vector<64x256xf32>
    tpu.vector_store %arg6[%c128, %c0_18], %19 {strides = array<i32>} : memref<576x256xf32, #tpu.memory_space<vmem>>, vector<64x256xf32>,
    %c0_19 = arith.constant 0 : index
    %c0_20 = arith.constant 0 : index
    %c16 = arith.constant 16 : index
    %21 = vector.load %arg1[%c0_19, %c0_20, %c16] : memref<1x64x290xf32, #tpu.memory_space<vmem>>, vector<1x64x256xf32>
    %22 = vector.shape_cast %21 : vector<1x64x256xf32> to vector<64x256xf32>
    %c3 = arith.constant 3 : index
    %c0_21 = arith.constant 0 : index
    %c0_22 = arith.constant 0 : index
    %23 = vector.load %arg4[%c3, %c0_21, %c0_22] : memref<9x1x256xf32, #tpu.memory_space<vmem>>, vector<1x1x256xf32>
    %24 = vector.shape_cast %23 : vector<1x1x256xf32> to vector<1x256xf32>
    %25 = vector.broadcast %24 : vector<1x256xf32> to vector<64x256xf32>
    %26 = arith.mulf %22, %25 : vector<64x256xf32>
    %c192 = arith.constant 192 : index
    %c0_23 = arith.constant 0 : index
    %27 = vector.load %arg6[%c192, %c0_23] : memref<576x256xf32, #tpu.memory_space<vmem>>, vector<64x256xf32>
    tpu.vector_store %arg6[%c192, %c0_23], %26 {strides = array<i32>} : memref<576x256xf32, #tpu.memory_space<vmem>>, vector<64x256xf32>,
    %c0_24 = arith.constant 0 : index
    %c0_25 = arith.constant 0 : index
    %c17 = arith.constant 17 : index
    %28 = vector.load %arg1[%c0_24, %c0_25, %c17] : memref<1x64x290xf32, #tpu.memory_space<vmem>>, vector<1x64x256xf32>
    %29 = vector.shape_cast %28 : vector<1x64x256xf32> to vector<64x256xf32>
    %c256 = arith.constant 256 : index
    %c0_26 = arith.constant 0 : index
    %30 = vector.load %arg6[%c256, %c0_26] : memref<576x256xf32, #tpu.memory_space<vmem>>, vector<64x256xf32>
    tpu.vector_store %arg6[%c256, %c0_26], %29 {strides = array<i32>} : memref<576x256xf32, #tpu.memory_space<vmem>>, vector<64x256xf32>,
    %c0_27 = arith.constant 0 : index
    %c0_28 = arith.constant 0 : index
    %c18 = arith.constant 18 : index
    %31 = vector.load %arg1[%c0_27, %c0_28, %c18] : memref<1x64x290xf32, #tpu.memory_space<vmem>>, vector<1x64x256xf32>
    %32 = vector.shape_cast %31 : vector<1x64x256xf32> to vector<64x256xf32>
    %c5 = arith.constant 5 : index
    %c0_29 = arith.constant 0 : index
    %c0_30 = arith.constant 0 : index
    %33 = vector.load %arg4[%c5, %c0_29, %c0_30] : memref<9x1x256xf32, #tpu.memory_space<vmem>>, vector<1x1x256xf32>
    %34 = vector.shape_cast %33 : vector<1x1x256xf32> to vector<1x256xf32>
    %35 = vector.broadcast %34 : vector<1x256xf32> to vector<64x256xf32>
    %36 = arith.mulf %32, %35 : vector<64x256xf32>
    %c320 = arith.constant 320 : index
    %c0_31 = arith.constant 0 : index
    %37 = vector.load %arg6[%c320, %c0_31] : memref<576x256xf32, #tpu.memory_space<vmem>>, vector<64x256xf32>
    tpu.vector_store %arg6[%c320, %c0_31], %36 {strides = array<i32>} : memref<576x256xf32, #tpu.memory_space<vmem>>, vector<64x256xf32>,
    %c0_32 = arith.constant 0 : index
    %c0_33 = arith.constant 0 : index
    %c32 = arith.constant 32 : index
    %38 = vector.load %arg1[%c0_32, %c0_33, %c32] : memref<1x64x290xf32, #tpu.memory_space<vmem>>, vector<1x64x256xf32>
    %39 = vector.shape_cast %38 : vector<1x64x256xf32> to vector<64x256xf32>
    %c6 = arith.constant 6 : index
    %c0_34 = arith.constant 0 : index
    %c0_35 = arith.constant 0 : index
    %40 = vector.load %arg4[%c6, %c0_34, %c0_35] : memref<9x1x256xf32, #tpu.memory_space<vmem>>, vector<1x1x256xf32>
    %41 = vector.shape_cast %40 : vector<1x1x256xf32> to vector<1x256xf32>
    %42 = vector.broadcast %41 : vector<1x256xf32> to vector<64x256xf32>
    %43 = arith.mulf %39, %42 : vector<64x256xf32>
    %c384 = arith.constant 384 : index
    %c0_36 = arith.constant 0 : index
    %44 = vector.load %arg6[%c384, %c0_36] : memref<576x256xf32, #tpu.memory_space<vmem>>, vector<64x256xf32>
    tpu.vector_store %arg6[%c384, %c0_36], %43 {strides = array<i32>} : memref<576x256xf32, #tpu.memory_space<vmem>>, vector<64x256xf32>,
    %c0_37 = arith.constant 0 : index
    %c0_38 = arith.constant 0 : index
    %c33 = arith.constant 33 : index
    %45 = vector.load %arg1[%c0_37, %c0_38, %c33] : memref<1x64x290xf32, #tpu.memory_space<vmem>>, vector<1x64x256xf32>
    %46 = vector.shape_cast %45 : vector<1x64x256xf32> to vector<64x256xf32>
    %c7 = arith.constant 7 : index
    %c0_39 = arith.constant 0 : index
    %c0_40 = arith.constant 0 : index
    %47 = vector.load %arg4[%c7, %c0_39, %c0_40] : memref<9x1x256xf32, #tpu.memory_space<vmem>>, vector<1x1x256xf32>
    %48 = vector.shape_cast %47 : vector<1x1x256xf32> to vector<1x256xf32>
    %49 = vector.broadcast %48 : vector<1x256xf32> to vector<64x256xf32>
    %50 = arith.mulf %46, %49 : vector<64x256xf32>
    %c448 = arith.constant 448 : index
    %c0_41 = arith.constant 0 : index
    %51 = vector.load %arg6[%c448, %c0_41] : memref<576x256xf32, #tpu.memory_space<vmem>>, vector<64x256xf32>
    tpu.vector_store %arg6[%c448, %c0_41], %50 {strides = array<i32>} : memref<576x256xf32, #tpu.memory_space<vmem>>, vector<64x256xf32>,
    %c0_42 = arith.constant 0 : index
    %c0_43 = arith.constant 0 : index
    %c34 = arith.constant 34 : index
    %52 = vector.load %arg1[%c0_42, %c0_43, %c34] : memref<1x64x290xf32, #tpu.memory_space<vmem>>, vector<1x64x256xf32>
    %53 = vector.shape_cast %52 : vector<1x64x256xf32> to vector<64x256xf32>
    %c8 = arith.constant 8 : index
    %c0_44 = arith.constant 0 : index
    %c0_45 = arith.constant 0 : index
    %54 = vector.load %arg4[%c8, %c0_44, %c0_45] : memref<9x1x256xf32, #tpu.memory_space<vmem>>, vector<1x1x256xf32>
    %55 = vector.shape_cast %54 : vector<1x1x256xf32> to vector<1x256xf32>
    %56 = vector.broadcast %55 : vector<1x256xf32> to vector<64x256xf32>
    %57 = arith.mulf %53, %56 : vector<64x256xf32>
    %c512 = arith.constant 512 : index
    %c0_46 = arith.constant 0 : index
    %58 = vector.load %arg6[%c512, %c0_46] : memref<576x256xf32, #tpu.memory_space<vmem>>, vector<64x256xf32>
    tpu.vector_store %arg6[%c512, %c0_46], %57 {strides = array<i32>} : memref<576x256xf32, #tpu.memory_space<vmem>>, vector<64x256xf32>,
    %c0_47 = arith.constant 0 : index
    %c0_48 = arith.constant 0 : index
    %59 = vector.load %arg2[%c0_47, %c0_48] : memref<256x576xf32, #tpu.memory_space<vmem>>, vector<256x576xf32>
    %c0_49 = arith.constant 0 : index
    %c0_50 = arith.constant 0 : index
    %60 = vector.load %arg6[%c0_49, %c0_50] : memref<576x256xf32, #tpu.memory_space<vmem>>, vector<576x256xf32>
    %cst = arith.constant dense<0.000000e+00> : vector<256x256xf32>
    %61 = tpu.matmul %59, %60, %cst {dimension_numbers = #tpu.dot_dimension_numbers<[1], [0], [0], [1], [0, 0, 1, 1], [], []>} : vector<256x576xf32>, vector<576x256xf32>, vector<256x256xf32> -> vector<256x256xf32>
    %c0_51 = arith.constant 0 : index
    %c0_52 = arith.constant 0 : index
    %62 = vector.load %arg3[%c0_51, %c0_52] : memref<256x1xf32, #tpu.memory_space<vmem>>, vector<256x1xf32>
    %63 = vector.broadcast %62 : vector<256x1xf32> to vector<256x256xf32>
    %64 = arith.addf %61, %63 : vector<256x256xf32>
    %c0_53 = arith.constant 0 : index
    %c0_54 = arith.constant 0 : index
    %c0_55 = arith.constant 0 : index
    %65 = vector.load %arg5[%c0_53, %c0_54, %c0_55] : memref<1x256x256xf32, #tpu.memory_space<vmem>>, vector<1x256x256xf32>
    %66 = vector.shape_cast %65 : vector<1x256x256xf32> to vector<256x256xf32>
    %67 = vector.shape_cast %64 : vector<256x256xf32> to vector<1x256x256xf32>
    tpu.vector_store %arg5[%c0_53, %c0_54, %c0_55], %67 {strides = array<i32>} : memref<1x256x256xf32, #tpu.memory_space<vmem>>, vector<1x256x256xf32>,
    return
  }
  func.func @transform_0(%arg0: i32) -> (i32, i32, i32) {
    %c0_i32 = arith.constant 0 : i32
    %c0_i32_0 = arith.constant 0 : i32
    %c0_i32_1 = arith.constant 0 : i32
    return %arg0, %c0_i32, %c0_i32_0 : i32, i32, i32
  }
  func.func @transform_1(%arg0: i32) -> (i32, i32) {
    %c0_i32 = arith.constant 0 : i32
    %c0_i32_0 = arith.constant 0 : i32
    %c0_i32_1 = arith.constant 0 : i32
    return %c0_i32, %c0_i32_0 : i32, i32
  }
  func.func @transform_2(%arg0: i32) -> (i32, i32) {
    %c0_i32 = arith.constant 0 : i32
    %c0_i32_0 = arith.constant 0 : i32
    %c0_i32_1 = arith.constant 0 : i32
    return %c0_i32, %c0_i32_0 : i32, i32
  }
  func.func @transform_3(%arg0: i32) -> (i32, i32, i32) {
    %c0_i32 = arith.constant 0 : i32
    %c0_i32_0 = arith.constant 0 : i32
    %c0_i32_1 = arith.constant 0 : i32
    %c0_i32_2 = arith.constant 0 : i32
    return %c0_i32, %c0_i32_0, %c0_i32_1 : i32, i32, i32
  }
  func.func @transform_4(%arg0: i32) -> (i32, i32, i32) {
    %c0_i32 = arith.constant 0 : i32
    %c0_i32_0 = arith.constant 0 : i32
    %c0_i32_1 = arith.constant 0 : i32
    return %arg0, %c0_i32, %c0_i32_0 : i32, i32, i32
  }
}

</mosaic_0001>

<llo_original>
// kernel: tpu_custom_call.1
$region0: #{tpu_custom_call.1}
  #allocation0 [shape = 'u32[]', space=smem, size = 0x4, offset = 0x4, fixed_abs, tag = 'smem constant byte address 0x4 - core index']
  #allocation1 [shape = 'u32[144,128]{1,0:T(1,128)}', space=vmem, size = 0x12000, scoped, tag = 'internal scratch']
  #allocation2 [shape = 'f32[576,256]{1,0:T(8,128)}', space=vmem, size = 0x90000, scoped, tag = 'scratch operand']
  %s0 = inlined_call_operand.vmem [shape: f32[2,64,290], index: 0, kind: input, shape index: {}]
  %s1 = inlined_call_operand.vmem [shape: f32[256,576], index: 1, kind: input, shape index: {}]
  %s2 = inlined_call_operand.vmem [shape: f32[256,1], index: 2, kind: input, shape index: {}]
  %s3 = inlined_call_operand.vmem [shape: f32[9,1,256], index: 3, kind: input, shape index: {}]
  %s4 = inlined_call_operand.hbm [shape: f32[2,256,256], index: 4, kind: output, shape index: {}]
  %s5 = sld [smem:[#allocation0]]
  $region49: #{tpu_custom_call.1} parent=0
    _
  %s7 = ssub.s32 1, %s5
  %s8 = scalar_select 0, %s7, %s5
  $region1: #{tpu_custom_call.1} parent=0
    #allocation3 [shape = 'u8[524288]{0}', space=vmem, size = 0x80000, scoped, tag = 'output window, operand 0']
    #allocation4 [shape = 's32[2]{0}', space=sflag, size = 0x8, scoped, tag = 'scoped memory for tpu_custom_call.1']
    %9 = vsyncpa [#allocation4], 0
    %s10 = scalar_lea.sflag [#allocation4], 1
    %11 = vsyncpa %s10, 0
    loop: start=0, step=1, limit=4
    $region2: #{tpu_custom_call.1} parent=1 // loop_pre_header
      _
    $region3: #{tpu_custom_call.1} parent=1 // loop_header
      %s13 = sphi 0, %s17
      %p14 = scmp.ge.s32.totalorder %s13, 4
      %s23 = sphi 0, %s25
      %s26 = sphi 0, %s23
      %s27 = sphi 0, %s26
      %s43 = sphi 0, %s27
      %s47 = sphi 0, %s47
      %s49 = sphi 0, %s47
      %s50 = sphi 0, %s49
      %s64 = sphi 0, %s50
      %s68 = sphi 0, %s68
      %s70 = sphi 0, %s68
      %s71 = sphi 0, %s70
      %s85 = sphi 0, %s71
      %s89 = sphi 0, %s89
      %s91 = sphi 0, %s89
      %s92 = sphi 0, %s91
      %s106 = sphi 0, %s92
      %s112 = sphi 0, %s114
      %s115 = sphi 0, %s112
      %s116 = sphi 0, %s115
      %s132 = sphi 0, %s116
    $region4: #{tpu_custom_call.1} parent=1 // loop_header_branch
      %16 = sbr.rel (%p14) target = $region8
    $region5: #{tpu_custom_call.1} parent=1 // loop_body
      %s18 = ssub.s32 %s13, 1
      %s19 = ssub.s32 %s13, 2
      %s20 = sadd.s32 %s13, 1
      %s21 = ssub.s32 %s13, %s20
      %p22 = scmp.eq.s32.totalorder %s21, 0
      %s24 = sadd.s32 %s23, 1
      %s25 = scalar_select %p22, %s23, %s24
      %p28 = pneg %p22
      %p29 = scmp.eq.s32.totalorder %s13, 1
      %p30 = por %p28, %p29
      %p31 = scmp.ne.s32.totalorder %s23, %s26
      %p32 = scmp.eq.s32.totalorder %s13, 0
      %p33 = por %p31, %p32
      %p34 = scmp.ne.s32.totalorder %s23, %s26
      %p35 = scmp.eq.s32.totalorder %s18, 1
      %p36 = por %p34, %p35
      %p37 = scmp.ne.s32.totalorder %s26, %s27
      %p38 = scmp.eq.s32.totalorder %s18, 0
      %p39 = por %p37, %p38
      %p40 = scmp.ne.s32.totalorder %s26, %s27
      %p41 = scmp.eq.s32.totalorder %s19, 1
      %p42 = por %p40, %p41
      %p44 = scmp.ne.s32.totalorder %s27, %s43
      %p45 = scmp.eq.s32.totalorder %s19, 0
      %p46 = por %p44, %p45
      %s48 = sadd.s32 %s47, 1
      %p51 = scmp.eq.s32.totalorder %s13, 1
      %p52 = scmp.ne.s32.totalorder %s47, %s49
      %p53 = scmp.eq.s32.totalorder %s13, 0
      %p54 = por %p52, %p53
      %p55 = scmp.ne.s32.totalorder %s47, %s49
      %p56 = scmp.eq.s32.totalorder %s18, 1
      %p57 = por %p55, %p56
      %p58 = scmp.ne.s32.totalorder %s49, %s50
      %p59 = scmp.eq.s32.totalorder %s18, 0
      %p60 = por %p58, %p59
      %p61 = scmp.ne.s32.totalorder %s49, %s50
      %p62 = scmp.eq.s32.totalorder %s19, 1
      %p63 = por %p61, %p62
      %p65 = scmp.ne.s32.totalorder %s50, %s64
      %p66 = scmp.eq.s32.totalorder %s19, 0
      %p67 = por %p65, %p66
      %s69 = sadd.s32 %s68, 1
      %p72 = scmp.eq.s32.totalorder %s13, 1
      %p73 = scmp.ne.s32.totalorder %s68, %s70
      %p74 = scmp.eq.s32.totalorder %s13, 0
      %p75 = por %p73, %p74
      %p76 = scmp.ne.s32.totalorder %s68, %s70
      %p77 = scmp.eq.s32.totalorder %s18, 1
      %p78 = por %p76, %p77
      %p79 = scmp.ne.s32.totalorder %s70, %s71
      %p80 = scmp.eq.s32.totalorder %s18, 0
      %p81 = por %p79, %p80
      %p82 = scmp.ne.s32.totalorder %s70, %s71
      %p83 = scmp.eq.s32.totalorder %s19, 1
      %p84 = por %p82, %p83
      %p86 = scmp.ne.s32.totalorder %s71, %s85
      %p87 = scmp.eq.s32.totalorder %s19, 0
      %p88 = por %p86, %p87
      %s90 = sadd.s32 %s89, 1
      %p93 = scmp.eq.s32.totalorder %s13, 1
      %p94 = scmp.ne.s32.totalorder %s89, %s91
      %p95 = scmp.eq.s32.totalorder %s13, 0
      %p96 = por %p94, %p95
      %p97 = scmp.ne.s32.totalorder %s89, %s91
      %p98 = scmp.eq.s32.totalorder %s18, 1
      %p99 = por %p97, %p98
      %p100 = scmp.ne.s32.totalorder %s91, %s92
      %p101 = scmp.eq.s32.totalorder %s18, 0
      %p102 = por %p100, %p101
      %p103 = scmp.ne.s32.totalorder %s91, %s92
      %p104 = scmp.eq.s32.totalorder %s19, 1
      %p105 = por %p103, %p104
      %p107 = scmp.ne.s32.totalorder %s92, %s106
      %p108 = scmp.eq.s32.totalorder %s19, 0
      %p109 = por %p107, %p108
      %s110 = ssub.s32 %s13, %s20
      %p111 = scmp.eq.s32.totalorder %s110, 0
      %s113 = sadd.s32 %s112, 1
      %s114 = scalar_select %p111, %s112, %s113
      %p117 = pneg %p111
      %p118 = scmp.eq.s32.totalorder %s13, 1
      %p119 = por %p117, %p118
      %p120 = scmp.ne.s32.totalorder %s112, %s115
      %p121 = scmp.eq.s32.totalorder %s13, 0
      %p122 = por %p120, %p121
      %p123 = scmp.ne.s32.totalorder %s112, %s115
      %p124 = scmp.eq.s32.totalorder %s18, 1
      %p125 = por %p123, %p124
      %p126 = scmp.ne.s32.totalorder %s115, %s116
      %p127 = scmp.eq.s32.totalorder %s18, 0
      %p128 = por %p126, %p127
      %p129 = scmp.ne.s32.totalorder %s115, %s116
      %p130 = scmp.eq.s32.totalorder %s19, 1
      %p131 = por %p129, %p130
      %p133 = scmp.ne.s32.totalorder %s116, %s132
      %p134 = scmp.eq.s32.totalorder %s19, 0
      %p135 = por %p133, %p134
      %p136 = scmp.le.s32.totalorder 1, %s13
      %p137 = scmp.lt.s32.totalorder %s13, 3
      %p138 = pnand %p136, %p137
      %p139 = pneg %p138
      // Predicated region
      $region9: #{tpu_custom_call.1} parent=5 // pred_check
        _
      $region10: #{tpu_custom_call.1} parent=5 // pred_check_branch
        %141 = sbr.rel (%p138) target = $region12
      $region11: #{tpu_custom_call.1} parent=5 // pred_region
        %s142 = ssub.s32 %s13, 1
        // Predicated region
        $region13: #{tpu_custom_call.1} parent=11 // pred_check
          %p143 = pneg %p60
        $region14: #{tpu_custom_call.1} parent=11 // pred_check_branch
          %145 = sbr.rel (%p143) target = $region16
        $region15: #{tpu_custom_call.1} parent=11 // pred_region
          _
        $region16: #{tpu_custom_call.1} parent=11 // pred_fallthru
          _
        // Predicated region
        $region17: #{tpu_custom_call.1} parent=11 // pred_check
          %p146 = pneg %p81
        $region18: #{tpu_custom_call.1} parent=11 // pred_check_branch
          %148 = sbr.rel (%p146) target = $region20
        $region19: #{tpu_custom_call.1} parent=11 // pred_region
          _
        $region20: #{tpu_custom_call.1} parent=11 // pred_fallthru
          _
        // Predicated region
        $region21: #{tpu_custom_call.1} parent=11 // pred_check
          %p149 = pneg %p102
        $region22: #{tpu_custom_call.1} parent=11 // pred_check_branch
          %151 = sbr.rel (%p149) target = $region24
        $region23: #{tpu_custom_call.1} parent=11 // pred_region
          _
        $region24: #{tpu_custom_call.1} parent=11 // pred_fallthru
          _
      $region12: #{tpu_custom_call.1} parent=5 // pred_fallthru
        _
      %p152 = scmp.lt.s32.totalorder %s13, 2
      // Predicated region
      $region25: #{tpu_custom_call.1} parent=5 // pred_check
        %p153 = pneg %p152
      $region26: #{tpu_custom_call.1} parent=5 // pred_check_branch
        %155 = sbr.rel (%p153) target = $region28
      $region27: #{tpu_custom_call.1} parent=5 // pred_region
        // Predicated region
        $region29: #{tpu_custom_call.1} parent=27 // pred_check
          %p156 = pneg %p33
        $region30: #{tpu_custom_call.1} parent=27 // pred_check_branch
          %158 = sbr.rel (%p156) target = $region32
        $region31: #{tpu_custom_call.1} parent=27 // pred_region
          %p159 = scmp.lt.s32.totalorder %s13, 1
          %s160 = scalar_select %p159, %s13, 1
          %s161 = smul.addr %s160, 24
          %s162 = smul.addr %s161, 8
          %s163 = scalar_lea.vmem %s0, %s162
        $region32: #{tpu_custom_call.1} parent=27 // pred_fallthru
          _
      $region28: #{tpu_custom_call.1} parent=5 // pred_fallthru
        _
      %p164 = scmp.le.s32.totalorder 1, %s13
      %p165 = scmp.lt.s32.totalorder %s13, 3
      %p166 = pnand %p164, %p165
      %p167 = pneg %p166
      // Predicated region
      $region33: #{tpu_custom_call.1} parent=5 // pred_check
        _
      $region34: #{tpu_custom_call.1} parent=5 // pred_check_branch
        %169 = sbr.rel (%p166) target = $region36
      $region35: #{tpu_custom_call.1} parent=5 // pred_region
        %s170 = ssub.s32 %s13, 1
        %p171 = scmp.lt.s32.totalorder %s18, 1
        %s172 = scalar_select %p171, %s18, 1
        %s173 = smul.addr %s172, 24
        %s174 = smul.addr %s173, 8
        %s175 = scalar_lea.vmem %s0, %s174
        %p176 = pneg %p39
        %p177 = pneg %p36
        %p178 = pneg %p60
        %p179 = pneg %p57
        %p180 = pneg %p81
        %p181 = pneg %p78
        %p182 = pneg %p102
        %p183 = pneg %p99
        %p184 = pneg %p128
        %p185 = pneg %p125
        %s186 = sand.u32 %s115, 1
        %s187 = scalar_lea.sflag [#allocation4], %s186
        %s188 = sand.u32 %s115, 1
        %s189 = smul.addr %s188, 512
        %s190 = scalar_lea.vmem [#allocation3], %s189
        %p191 = scmp.lt.s32.totalorder %s18, 1
        %s192 = scalar_select %p191, %s18, 1
        %s193 = smul.addr %s192, 24
        %s194 = smul.addr %s193, 8
        %s195 = scalar_lea.vmem %s0, %s194
        %v196 = vld [vmem:[%s195] sm:$0xff]
        %v197 = vld [vmem:[%s195 + $0x8] sm:$0xff]
        %v198 = vld [vmem:[%s195 + $0x18] sm:$0xff]
        %v199 = vld [vmem:[%s195 + $0x20] sm:$0xff]
        %v200 = vld [vmem:[%s195 + $0x30] sm:$0xff]
        %v201 = vld [vmem:[%s195 + $0x38] sm:$0xff]
        %v202 = vld [vmem:[%s195 + $0x48] sm:$0xff]
        %v203 = vld [vmem:[%s195 + $0x50] sm:$0xff]
        %v204 = vld [vmem:[%s195 + $0x60] sm:$0xff]
        %v205 = vld [vmem:[%s195 + $0x68] sm:$0xff]
        %v206 = vld [vmem:[%s195 + $0x78] sm:$0xff]
        %v207 = vld [vmem:[%s195 + $0x80] sm:$0xff]
        %v208 = vld [vmem:[%s195 + $0x90] sm:$0xff]
        %v209 = vld [vmem:[%s195 + $0x98] sm:$0xff]
        %v210 = vld [vmem:[%s195 + $0xa8] sm:$0xff]
        %v211 = vld [vmem:[%s195 + $0xb0] sm:$0xff]
        %v212 = vld [vmem:[%s3] sm:$0x3]
        %v214 = vlaneseq
        %v215 = vshrl.u32 %v214, 7
        %v216 = vsub.s32 0, %v215
        %v217 = vrot.slane %v212, %v216
        %v218 = vlaneseq
        %v219 = vshrl.u32 %v218, 7
        %v220 = vsub.s32 1, %v219
        %v221 = vrot.slane %v212, %v220
        %v224 = vmul.f32 %v196, %v217
        %v225 = vmul.f32 %v197, %v221
        %v226 = vmul.f32 %v198, %v217
        %v227 = vmul.f32 %v199, %v221
        %v228 = vmul.f32 %v200, %v217
        %v229 = vmul.f32 %v201, %v221
        %v230 = vmul.f32 %v202, %v217
        %v231 = vmul.f32 %v203, %v221
        %v232 = vmul.f32 %v204, %v217
        %v233 = vmul.f32 %v205, %v221
        %v234 = vmul.f32 %v206, %v217
        %v235 = vmul.f32 %v207, %v221
        %v236 = vmul.f32 %v208, %v217
        %v237 = vmul.f32 %v209, %v221
        %v238 = vmul.f32 %v210, %v217
        %v239 = vmul.f32 %v211, %v221
        %240 = vst [vmem:[#allocation2] sm:$0xff] %v224
        %241 = vst [vmem:[#allocation2 + $0x8] sm:$0xff] %v225
        %242 = vst [vmem:[#allocation2 + $0x10] sm:$0xff] %v226
        %243 = vst [vmem:[#allocation2 + $0x18] sm:$0xff] %v227
        %244 = vst [vmem:[#allocation2 + $0x20] sm:$0xff] %v228
        %245 = vst [vmem:[#allocation2 + $0x28] sm:$0xff] %v229
        %246 = vst [vmem:[#allocation2 + $0x30] sm:$0xff] %v230
        %247 = vst [vmem:[#allocation2 + $0x38] sm:$0xff] %v231
        %248 = vst [vmem:[#allocation2 + $0x40] sm:$0xff] %v232
        %249 = vst [vmem:[#allocation2 + $0x48] sm:$0xff] %v233
        %250 = vst [vmem:[#allocation2 + $0x50] sm:$0xff] %v234
        %251 = vst [vmem:[#allocation2 + $0x58] sm:$0xff] %v235
        %252 = vst [vmem:[#allocation2 + $0x60] sm:$0xff] %v236
        %253 = vst [vmem:[#allocation2 + $0x68] sm:$0xff] %v237
        %254 = vst [vmem:[#allocation2 + $0x70] sm:$0xff] %v238
        %255 = vst [vmem:[#allocation2 + $0x78] sm:$0xff] %v239
        %v256 = vld [vmem:[%s195] sm:$0xff]
        %v257 = vld [vmem:[%s195 + $0x8] sm:$0xff]
        %v258 = vld [vmem:[%s195 + $0x10] sm:$0xff]
        %v259 = vld [vmem:[%s195 + $0x18] sm:$0xff]
        %v260 = vld [vmem:[%s195 + $0x20] sm:$0xff]
        %v261 = vld [vmem:[%s195 + $0x28] sm:$0xff]
        %v262 = vld [vmem:[%s195 + $0x30] sm:$0xff]
        %v263 = vld [vmem:[%s195 + $0x38] sm:$0xff]
        %v264 = vld [vmem:[%s195 + $0x40] sm:$0xff]
        %v265 = vld [vmem:[%s195 + $0x48] sm:$0xff]
        %v266 = vld [vmem:[%s195 + $0x50] sm:$0xff]
        %v267 = vld [vmem:[%s195 + $0x58] sm:$0xff]
        %v268 = vld [vmem:[%s195 + $0x60] sm:$0xff]
        %v269 = vld [vmem:[%s195 + $0x68] sm:$0xff]
        %v270 = vld [vmem:[%s195 + $0x70] sm:$0xff]
        %v271 = vld [vmem:[%s195 + $0x78] sm:$0xff]
        %v272 = vld [vmem:[%s195 + $0x80] sm:$0xff]
        %v273 = vld [vmem:[%s195 + $0x88] sm:$0xff]
        %v274 = vld [vmem:[%s195 + $0x90] sm:$0xff]
        %v275 = vld [vmem:[%s195 + $0x98] sm:$0xff]
        %v276 = vld [vmem:[%s195 + $0xa0] sm:$0xff]
        %v277 = vld [vmem:[%s195 + $0xa8] sm:$0xff]
        %v278 = vld [vmem:[%s195 + $0xb0] sm:$0xff]
        %v279 = vld [vmem:[%s195 + $0xb8] sm:$0xff]
        %s280 = scalar_lea.vmem %s3, 2
        %v281 = vld [vmem:[%s280] sm:$0x3]
        %v283 = vlaneseq
        %v284 = vshrl.u32 %v283, 7
        %v285 = vsub.s32 0, %v284
        %v286 = vrot.slane %v281, %v285
        %v287 = vlaneseq
        %v288 = vshrl.u32 %v287, 7
        %v289 = vsub.s32 1, %v288
        %v290 = vrot.slane %v281, %v289
        %291 = vrot.lane.b32.xlu0 %v286, 1
        %v292 = vpop.permute.xlu0 %291
        %293 = vrot.lane.b32.xlu0 %v290, 1
        %v294 = vpop.permute.xlu0 %293
        %vm295 = vcmask 7168
        %v296 = vsel %vm295, %v292, %v294
        %v300 = vmul.f32 %v256, %v292
        %v301 = vmul.f32 %v257, %v296
        %v302 = vmul.f32 %v258, %v294
        %v303 = vmul.f32 %v259, %v292
        %v304 = vmul.f32 %v260, %v296
        %v305 = vmul.f32 %v261, %v294
        %v306 = vmul.f32 %v262, %v292
        %v307 = vmul.f32 %v263, %v296
        %v308 = vmul.f32 %v264, %v294
        %v309 = vmul.f32 %v265, %v292
        %v310 = vmul.f32 %v266, %v296
        %v311 = vmul.f32 %v267, %v294
        %v312 = vmul.f32 %v268, %v292
        %v313 = vmul.f32 %v269, %v296
        %v314 = vmul.f32 %v270, %v294
        %v315 = vmul.f32 %v271, %v292
        %v316 = vmul.f32 %v272, %v296
        %v317 = vmul.f32 %v273, %v294
        %v318 = vmul.f32 %v274, %v292
        %v319 = vmul.f32 %v275, %v296
        %v320 = vmul.f32 %v276, %v294
        %v321 = vmul.f32 %v277, %v292
        %v322 = vmul.f32 %v278, %v296
        %v323 = vmul.f32 %v279, %v294
        %348 = vrot.lane.b32.xlu0 %v300, 127
        %v349 = vpop.permute.xlu0 %348
        %350 = vrot.lane.b32.xlu0 %v301, 127
        %v351 = vpop.permute.xlu0 %350
        %352 = vrot.lane.b32.xlu0 %v302, 127
        %v353 = vpop.permute.xlu0 %352
        %354 = vrot.lane.b32.xlu0 %v303, 127
        %v355 = vpop.permute.xlu0 %354
        %356 = vrot.lane.b32.xlu0 %v304, 127
        %v357 = vpop.permute.xlu0 %356
        %358 = vrot.lane.b32.xlu0 %v305, 127
        %v359 = vpop.permute.xlu0 %358
        %360 = vrot.lane.b32.xlu0 %v306, 127
        %v361 = vpop.permute.xlu0 %360
        %362 = vrot.lane.b32.xlu0 %v307, 127
        %v363 = vpop.permute.xlu0 %362
        %364 = vrot.lane.b32.xlu0 %v308, 127
        %v365 = vpop.permute.xlu0 %364
        %366 = vrot.lane.b32.xlu0 %v309, 127
        %v367 = vpop.permute.xlu0 %366
        %368 = vrot.lane.b32.xlu0 %v310, 127
        %v369 = vpop.permute.xlu0 %368
        %370 = vrot.lane.b32.xlu0 %v311, 127
        %v371 = vpop.permute.xlu0 %370
        %372 = vrot.lane.b32.xlu0 %v312, 127
        %v373 = vpop.permute.xlu0 %372
        %374 = vrot.lane.b32.xlu0 %v313, 127
        %v375 = vpop.permute.xlu0 %374
        %376 = vrot.lane.b32.xlu0 %v314, 127
        %v377 = vpop.permute.xlu0 %376
        %378 = vrot.lane.b32.xlu0 %v315, 127
        %v379 = vpop.permute.xlu0 %378
        %380 = vrot.lane.b32.xlu0 %v316, 127
        %v381 = vpop.permute.xlu0 %380
        %382 = vrot.lane.b32.xlu0 %v317, 127
        %v383 = vpop.permute.xlu0 %382
        %384 = vrot.lane.b32.xlu0 %v318, 127
        %v385 = vpop.permute.xlu0 %384
        %386 = vrot.lane.b32.xlu0 %v319, 127
        %v387 = vpop.permute.xlu0 %386
        %388 = vrot.lane.b32.xlu0 %v320, 127
        %v389 = vpop.permute.xlu0 %388
        %390 = vrot.lane.b32.xlu0 %v321, 127
        %v391 = vpop.permute.xlu0 %390
        %392 = vrot.lane.b32.xlu0 %v322, 127
        %v393 = vpop.permute.xlu0 %392
        %394 = vrot.lane.b32.xlu0 %v323, 127
        %v395 = vpop.permute.xlu0 %394
        %vm396 = vcmask 1039360
        %v397 = vsel %vm396, %v349, %v351
        %v398 = vsel %vm396, %v351, %v353
        %v399 = vsel %vm396, %v355, %v357
        %v400 = vsel %vm396, %v357, %v359
        %v401 = vsel %vm396, %v361, %v363
        %v402 = vsel %vm396, %v363, %v365
        %v403 = vsel %vm396, %v367, %v369
        %v404 = vsel %vm396, %v369, %v371
        %v405 = vsel %vm396, %v373, %v375
        %v406 = vsel %vm396, %v375, %v377
        %v407 = vsel %vm396, %v379, %v381
        %v408 = vsel %vm396, %v381, %v383
        %v409 = vsel %vm396, %v385, %v387
        %v410 = vsel %vm396, %v387, %v389
        %v411 = vsel %vm396, %v391, %v393
        %v412 = vsel %vm396, %v393, %v395
        %429 = vst [vmem:[#allocation2 + $0x80] sm:$0xff] %v397
        %430 = vst [vmem:[#allocation2 + $0x88] sm:$0xff] %v398
        %431 = vst [vmem:[#allocation2 + $0x90] sm:$0xff] %v399
        %432 = vst [vmem:[#allocation2 + $0x98] sm:$0xff] %v400
        %433 = vst [vmem:[#allocation2 + $0xa0] sm:$0xff] %v401
        %434 = vst [vmem:[#allocation2 + $0xa8] sm:$0xff] %v402
        %435 = vst [vmem:[#allocation2 + $0xb0] sm:$0xff] %v403
        %436 = vst [vmem:[#allocation2 + $0xb8] sm:$0xff] %v404
        %437 = vst [vmem:[#allocation2 + $0xc0] sm:$0xff] %v405
        %438 = vst [vmem:[#allocation2 + $0xc8] sm:$0xff] %v406
        %439 = vst [vmem:[#allocation2 + $0xd0] sm:$0xff] %v407
        %440 = vst [vmem:[#allocation2 + $0xd8] sm:$0xff] %v408
        %441 = vst [vmem:[#allocation2 + $0xe0] sm:$0xff] %v409
        %442 = vst [vmem:[#allocation2 + $0xe8] sm:$0xff] %v410
        %443 = vst [vmem:[#allocation2 + $0xf0] sm:$0xff] %v411
        %444 = vst [vmem:[#allocation2 + $0xf8] sm:$0xff] %v412
        %v445 = vld [vmem:[%s195] sm:$0xff]
        %v446 = vld [vmem:[%s195 + $0x8] sm:$0xff]
        %v447 = vld [vmem:[%s195 + $0x10] sm:$0xff]
        %v448 = vld [vmem:[%s195 + $0x18] sm:$0xff]
        %v449 = vld [vmem:[%s195 + $0x20] sm:$0xff]
        %v450 = vld [vmem:[%s195 + $0x28] sm:$0xff]
        %v451 = vld [vmem:[%s195 + $0x30] sm:$0xff]
        %v452 = vld [vmem:[%s195 + $0x38] sm:$0xff]
        %v453 = vld [vmem:[%s195 + $0x40] sm:$0xff]
        %v454 = vld [vmem:[%s195 + $0x48] sm:$0xff]
        %v455 = vld [vmem:[%s195 + $0x50] sm:$0xff]
        %v456 = vld [vmem:[%s195 + $0x58] sm:$0xff]
        %v457 = vld [vmem:[%s195 + $0x60] sm:$0xff]
        %v458 = vld [vmem:[%s195 + $0x68] sm:$0xff]
        %v459 = vld [vmem:[%s195 + $0x70] sm:$0xff]
        %v460 = vld [vmem:[%s195 + $0x78] sm:$0xff]
        %v461 = vld [vmem:[%s195 + $0x80] sm:$0xff]
        %v462 = vld [vmem:[%s195 + $0x88] sm:$0xff]
        %v463 = vld [vmem:[%s195 + $0x90] sm:$0xff]
        %v464 = vld [vmem:[%s195 + $0x98] sm:$0xff]
        %v465 = vld [vmem:[%s195 + $0xa0] sm:$0xff]
        %v466 = vld [vmem:[%s195 + $0xa8] sm:$0xff]
        %v467 = vld [vmem:[%s195 + $0xb0] sm:$0xff]
        %v468 = vld [vmem:[%s195 + $0xb8] sm:$0xff]
        %s469 = scalar_lea.vmem %s3, 4
        %v470 = vld [vmem:[%s469] sm:$0x3]
        %v472 = vlaneseq
        %v473 = vshrl.u32 %v472, 7
        %v474 = vsub.s32 0, %v473
        %v475 = vrot.slane %v470, %v474
        %v476 = vlaneseq
        %v477 = vshrl.u32 %v476, 7
        %v478 = vsub.s32 1, %v477
        %v479 = vrot.slane %v470, %v478
        %480 = vrot.lane.b32.xlu0 %v475, 2
        %v481 = vpop.permute.xlu0 %480
        %482 = vrot.lane.b32.xlu0 %v479, 2
        %v483 = vpop.permute.xlu0 %482
        %vm484 = vcmask 15360
        %v485 = vsel %vm484, %v481, %v483
        %v489 = vmul.f32 %v445, %v481
        %v490 = vmul.f32 %v446, %v485
        %v491 = vmul.f32 %v447, %v483
        %v492 = vmul.f32 %v448, %v481
        %v493 = vmul.f32 %v449, %v485
        %v494 = vmul.f32 %v450, %v483
        %v495 = vmul.f32 %v451, %v481
        %v496 = vmul.f32 %v452, %v485
        %v497 = vmul.f32 %v453, %v483
        %v498 = vmul.f32 %v454, %v481
        %v499 = vmul.f32 %v455, %v485
        %v500 = vmul.f32 %v456, %v483
        %v501 = vmul.f32 %v457, %v481
        %v502 = vmul.f32 %v458, %v485
        %v503 = vmul.f32 %v459, %v483
        %v504 = vmul.f32 %v460, %v481
        %v505 = vmul.f32 %v461, %v485
        %v506 = vmul.f32 %v462, %v483
        %v507 = vmul.f32 %v463, %v481
        %v508 = vmul.f32 %v464, %v485
        %v509 = vmul.f32 %v465, %v483
        %v510 = vmul.f32 %v466, %v481
        %v511 = vmul.f32 %v467, %v485
        %v512 = vmul.f32 %v468, %v483
        %537 = vrot.lane.b32.xlu0 %v489, 126
        %v538 = vpop.permute.xlu0 %537
        %539 = vrot.lane.b32.xlu0 %v490, 126
        %v540 = vpop.permute.xlu0 %539
        %541 = vrot.lane.b32.xlu0 %v491, 126
        %v542 = vpop.permute.xlu0 %541
        %543 = vrot.lane.b32.xlu0 %v492, 126
        %v544 = vpop.permute.xlu0 %543
        %545 = vrot.lane.b32.xlu0 %v493, 126
        %v546 = vpop.permute.xlu0 %545
        %547 = vrot.lane.b32.xlu0 %v494, 126
        %v548 = vpop.permute.xlu0 %547
        %549 = vrot.lane.b32.xlu0 %v495, 126
        %v550 = vpop.permute.xlu0 %549
        %551 = vrot.lane.b32.xlu0 %v496, 126
        %v552 = vpop.permute.xlu0 %551
        %553 = vrot.lane.b32.xlu0 %v497, 126
        %v554 = vpop.permute.xlu0 %553
        %555 = vrot.lane.b32.xlu0 %v498, 126
        %v556 = vpop.permute.xlu0 %555
        %557 = vrot.lane.b32.xlu0 %v499, 126
        %v558 = vpop.permute.xlu0 %557
        %559 = vrot.lane.b32.xlu0 %v500, 126
        %v560 = vpop.permute.xlu0 %559
        %561 = vrot.lane.b32.xlu0 %v501, 126
        %v562 = vpop.permute.xlu0 %561
        %563 = vrot.lane.b32.xlu0 %v502, 126
        %v564 = vpop.permute.xlu0 %563
        %565 = vrot.lane.b32.xlu0 %v503, 126
        %v566 = vpop.permute.xlu0 %565
        %567 = vrot.lane.b32.xlu0 %v504, 126
        %v568 = vpop.permute.xlu0 %567
        %569 = vrot.lane.b32.xlu0 %v505, 126
        %v570 = vpop.permute.xlu0 %569
        %571 = vrot.lane.b32.xlu0 %v506, 126
        %v572 = vpop.permute.xlu0 %571
        %573 = vrot.lane.b32.xlu0 %v507, 126
        %v574 = vpop.permute.xlu0 %573
        %575 = vrot.lane.b32.xlu0 %v508, 126
        %v576 = vpop.permute.xlu0 %575
        %577 = vrot.lane.b32.xlu0 %v509, 126
        %v578 = vpop.permute.xlu0 %577
        %579 = vrot.lane.b32.xlu0 %v510, 126
        %v580 = vpop.permute.xlu0 %579
        %581 = vrot.lane.b32.xlu0 %v511, 126
        %v582 = vpop.permute.xlu0 %581
        %583 = vrot.lane.b32.xlu0 %v512, 126
        %v584 = vpop.permute.xlu0 %583
        %vm585 = vcmask 1031168
        %v586 = vsel %vm585, %v538, %v540
        %v587 = vsel %vm585, %v540, %v542
        %v588 = vsel %vm585, %v544, %v546
        %v589 = vsel %vm585, %v546, %v548
        %v590 = vsel %vm585, %v550, %v552
        %v591 = vsel %vm585, %v552, %v554
        %v592 = vsel %vm585, %v556, %v558
        %v593 = vsel %vm585, %v558, %v560
        %v594 = vsel %vm585, %v562, %v564
        %v595 = vsel %vm585, %v564, %v566
        %v596 = vsel %vm585, %v568, %v570
        %v597 = vsel %vm585, %v570, %v572
        %v598 = vsel %vm585, %v574, %v576
        %v599 = vsel %vm585, %v576, %v578
        %v600 = vsel %vm585, %v580, %v582
        %v601 = vsel %vm585, %v582, %v584
        %618 = vst [vmem:[#allocation2 + $0x100] sm:$0xff] %v586
        %619 = vst [vmem:[#allocation2 + $0x108] sm:$0xff] %v587
        %620 = vst [vmem:[#allocation2 + $0x110] sm:$0xff] %v588
        %621 = vst [vmem:[#allocation2 + $0x118] sm:$0xff] %v589
        %622 = vst [vmem:[#allocation2 + $0x120] sm:$0xff] %v590
        %623 = vst [vmem:[#allocation2 + $0x128] sm:$0xff] %v591
        %624 = vst [vmem:[#allocation2 + $0x130] sm:$0xff] %v592
        %625 = vst [vmem:[#allocation2 + $0x138] sm:$0xff] %v593
        %626 = vst [vmem:[#allocation2 + $0x140] sm:$0xff] %v594
        %627 = vst [vmem:[#allocation2 + $0x148] sm:$0xff] %v595
        %628 = vst [vmem:[#allocation2 + $0x150] sm:$0xff] %v596
        %629 = vst [vmem:[#allocation2 + $0x158] sm:$0xff] %v597
        %630 = vst [vmem:[#allocation2 + $0x160] sm:$0xff] %v598
        %631 = vst [vmem:[#allocation2 + $0x168] sm:$0xff] %v599
        %632 = vst [vmem:[#allocation2 + $0x170] sm:$0xff] %v600
        %633 = vst [vmem:[#allocation2 + $0x178] sm:$0xff] %v601
        %v634 = vld [vmem:[%s195] sm:$0xff]
        %v635 = vld [vmem:[%s195 + $0x8] sm:$0xff]
        %v636 = vld [vmem:[%s195 + $0x10] sm:$0xff]
        %v637 = vld [vmem:[%s195 + $0x18] sm:$0xff]
        %v638 = vld [vmem:[%s195 + $0x20] sm:$0xff]
        %v639 = vld [vmem:[%s195 + $0x28] sm:$0xff]
        %v640 = vld [vmem:[%s195 + $0x30] sm:$0xff]
        %v641 = vld [vmem:[%s195 + $0x38] sm:$0xff]
        %v642 = vld [vmem:[%s195 + $0x40] sm:$0xff]
        %v643 = vld [vmem:[%s195 + $0x48] sm:$0xff]
        %v644 = vld [vmem:[%s195 + $0x50] sm:$0xff]
        %v645 = vld [vmem:[%s195 + $0x58] sm:$0xff]
        %v646 = vld [vmem:[%s195 + $0x60] sm:$0xff]
        %v647 = vld [vmem:[%s195 + $0x68] sm:$0xff]
        %v648 = vld [vmem:[%s195 + $0x70] sm:$0xff]
        %v649 = vld [vmem:[%s195 + $0x78] sm:$0xff]
        %v650 = vld [vmem:[%s195 + $0x80] sm:$0xff]
        %v651 = vld [vmem:[%s195 + $0x88] sm:$0xff]
        %v652 = vld [vmem:[%s195 + $0x90] sm:$0xff]
        %v653 = vld [vmem:[%s195 + $0x98] sm:$0xff]
        %v654 = vld [vmem:[%s195 + $0xa0] sm:$0xff]
        %v655 = vld [vmem:[%s195 + $0xa8] sm:$0xff]
        %v656 = vld [vmem:[%s195 + $0xb0] sm:$0xff]
        %v657 = vld [vmem:[%s195 + $0xb8] sm:$0xff]
        %s658 = scalar_lea.vmem %s3, 6
        %v659 = vld [vmem:[%s658] sm:$0x3]
        %v661 = vlaneseq
        %v662 = vshrl.u32 %v661, 7
        %v663 = vsub.s32 0, %v662
        %v664 = vrot.slane %v659, %v663
        %v665 = vlaneseq
        %v666 = vshrl.u32 %v665, 7
        %v667 = vsub.s32 1, %v666
        %v668 = vrot.slane %v659, %v667
        %669 = vrot.lane.b32.xlu0 %v664, 16
        %v670 = vpop.permute.xlu0 %669
        %671 = vrot.lane.b32.xlu0 %v668, 16
        %v672 = vpop.permute.xlu0 %671
        %vm673 = vcmask 130048
        %v674 = vsel %vm673, %v670, %v672
        %v678 = vmul.f32 %v634, %v670
        %v679 = vmul.f32 %v635, %v674
        %v680 = vmul.f32 %v636, %v672
        %v681 = vmul.f32 %v637, %v670
        %v682 = vmul.f32 %v638, %v674
        %v683 = vmul.f32 %v639, %v672
        %v684 = vmul.f32 %v640, %v670
        %v685 = vmul.f32 %v641, %v674
        %v686 = vmul.f32 %v642, %v672
        %v687 = vmul.f32 %v643, %v670
        %v688 = vmul.f32 %v644, %v674
        %v689 = vmul.f32 %v645, %v672
        %v690 = vmul.f32 %v646, %v670
        %v691 = vmul.f32 %v647, %v674
        %v692 = vmul.f32 %v648, %v672
        %v693 = vmul.f32 %v649, %v670
        %v694 = vmul.f32 %v650, %v674
        %v695 = vmul.f32 %v651, %v672
        %v696 = vmul.f32 %v652, %v670
        %v697 = vmul.f32 %v653, %v674
        %v698 = vmul.f32 %v654, %v672
        %v699 = vmul.f32 %v655, %v670
        %v700 = vmul.f32 %v656, %v674
        %v701 = vmul.f32 %v657, %v672
        %726 = vrot.lane.b32.xlu0 %v678, 112
        %v727 = vpop.permute.xlu0 %726
        %728 = vrot.lane.b32.xlu0 %v679, 112
        %v729 = vpop.permute.xlu0 %728
        %730 = vrot.lane.b32.xlu0 %v680, 112
        %v731 = vpop.permute.xlu0 %730
        %732 = vrot.lane.b32.xlu0 %v681, 112
        %v733 = vpop.permute.xlu0 %732
        %734 = vrot.lane.b32.xlu0 %v682, 112
        %v735 = vpop.permute.xlu0 %734
        %736 = vrot.lane.b32.xlu0 %v683, 112
        %v737 = vpop.permute.xlu0 %736
        %738 = vrot.lane.b32.xlu0 %v684, 112
        %v739 = vpop.permute.xlu0 %738
        %740 = vrot.lane.b32.xlu0 %v685, 112
        %v741 = vpop.permute.xlu0 %740
        %742 = vrot.lane.b32.xlu0 %v686, 112
        %v743 = vpop.permute.xlu0 %742
        %744 = vrot.lane.b32.xlu0 %v687, 112
        %v745 = vpop.permute.xlu0 %744
        %746 = vrot.lane.b32.xlu0 %v688, 112
        %v747 = vpop.permute.xlu0 %746
        %748 = vrot.lane.b32.xlu0 %v689, 112
        %v749 = vpop.permute.xlu0 %748
        %750 = vrot.lane.b32.xlu0 %v690, 112
        %v751 = vpop.permute.xlu0 %750
        %752 = vrot.lane.b32.xlu0 %v691, 112
        %v753 = vpop.permute.xlu0 %752
        %754 = vrot.lane.b32.xlu0 %v692, 112
        %v755 = vpop.permute.xlu0 %754
        %756 = vrot.lane.b32.xlu0 %v693, 112
        %v757 = vpop.permute.xlu0 %756
        %758 = vrot.lane.b32.xlu0 %v694, 112
        %v759 = vpop.permute.xlu0 %758
        %760 = vrot.lane.b32.xlu0 %v695, 112
        %v761 = vpop.permute.xlu0 %760
        %762 = vrot.lane.b32.xlu0 %v696, 112
        %v763 = vpop.permute.xlu0 %762
        %764 = vrot.lane.b32.xlu0 %v697, 112
        %v765 = vpop.permute.xlu0 %764
        %766 = vrot.lane.b32.xlu0 %v698, 112
        %v767 = vpop.permute.xlu0 %766
        %768 = vrot.lane.b32.xlu0 %v699, 112
        %v769 = vpop.permute.xlu0 %768
        %770 = vrot.lane.b32.xlu0 %v700, 112
        %v771 = vpop.permute.xlu0 %770
        %772 = vrot.lane.b32.xlu0 %v701, 112
        %v773 = vpop.permute.xlu0 %772
        %vm774 = vcmask 916480
        %v775 = vsel %vm774, %v727, %v729
        %v776 = vsel %vm774, %v729, %v731
        %v777 = vsel %vm774, %v733, %v735
        %v778 = vsel %vm774, %v735, %v737
        %v779 = vsel %vm774, %v739, %v741
        %v780 = vsel %vm774, %v741, %v743
        %v781 = vsel %vm774, %v745, %v747
        %v782 = vsel %vm774, %v747, %v749
        %v783 = vsel %vm774, %v751, %v753
        %v784 = vsel %vm774, %v753, %v755
        %v785 = vsel %vm774, %v757, %v759
        %v786 = vsel %vm774, %v759, %v761
        %v787 = vsel %vm774, %v763, %v765
        %v788 = vsel %vm774, %v765, %v767
        %v789 = vsel %vm774, %v769, %v771
        %v790 = vsel %vm774, %v771, %v773
        %807 = vst [vmem:[#allocation2 + $0x180] sm:$0xff] %v775
        %808 = vst [vmem:[#allocation2 + $0x188] sm:$0xff] %v776
        %809 = vst [vmem:[#allocation2 + $0x190] sm:$0xff] %v777
        %810 = vst [vmem:[#allocation2 + $0x198] sm:$0xff] %v778
        %811 = vst [vmem:[#allocation2 + $0x1a0] sm:$0xff] %v779
        %812 = vst [vmem:[#allocation2 + $0x1a8] sm:$0xff] %v780
        %813 = vst [vmem:[#allocation2 + $0x1b0] sm:$0xff] %v781
        %814 = vst [vmem:[#allocation2 + $0x1b8] sm:$0xff] %v782
        %815 = vst [vmem:[#allocation2 + $0x1c0] sm:$0xff] %v783
        %816 = vst [vmem:[#allocation2 + $0x1c8] sm:$0xff] %v784
        %817 = vst [vmem:[#allocation2 + $0x1d0] sm:$0xff] %v785
        %818 = vst [vmem:[#allocation2 + $0x1d8] sm:$0xff] %v786
        %819 = vst [vmem:[#allocation2 + $0x1e0] sm:$0xff] %v787
        %820 = vst [vmem:[#allocation2 + $0x1e8] sm:$0xff] %v788
        %821 = vst [vmem:[#allocation2 + $0x1f0] sm:$0xff] %v789
        %822 = vst [vmem:[#allocation2 + $0x1f8] sm:$0xff] %v790
        %v823 = vld [vmem:[%s195] sm:$0xff]
        %v824 = vld [vmem:[%s195 + $0x8] sm:$0xff]
        %v825 = vld [vmem:[%s195 + $0x10] sm:$0xff]
        %v826 = vld [vmem:[%s195 + $0x18] sm:$0xff]
        %v827 = vld [vmem:[%s195 + $0x20] sm:$0xff]
        %v828 = vld [vmem:[%s195 + $0x28] sm:$0xff]
        %v829 = vld [vmem:[%s195 + $0x30] sm:$0xff]
        %v830 = vld [vmem:[%s195 + $0x38] sm:$0xff]
        %v831 = vld [vmem:[%s195 + $0x40] sm:$0xff]
        %v832 = vld [vmem:[%s195 + $0x48] sm:$0xff]
        %v833 = vld [vmem:[%s195 + $0x50] sm:$0xff]
        %v834 = vld [vmem:[%s195 + $0x58] sm:$0xff]
        %v835 = vld [vmem:[%s195 + $0x60] sm:$0xff]
        %v836 = vld [vmem:[%s195 + $0x68] sm:$0xff]
        %v837 = vld [vmem:[%s195 + $0x70] sm:$0xff]
        %v838 = vld [vmem:[%s195 + $0x78] sm:$0xff]
        %v839 = vld [vmem:[%s195 + $0x80] sm:$0xff]
        %v840 = vld [vmem:[%s195 + $0x88] sm:$0xff]
        %v841 = vld [vmem:[%s195 + $0x90] sm:$0xff]
        %v842 = vld [vmem:[%s195 + $0x98] sm:$0xff]
        %v843 = vld [vmem:[%s195 + $0xa0] sm:$0xff]
        %v844 = vld [vmem:[%s195 + $0xa8] sm:$0xff]
        %v845 = vld [vmem:[%s195 + $0xb0] sm:$0xff]
        %v846 = vld [vmem:[%s195 + $0xb8] sm:$0xff]
        %871 = vrot.lane.b32.xlu0 %v823, 111
        %v872 = vpop.permute.xlu0 %871
        %873 = vrot.lane.b32.xlu0 %v824, 111
        %v874 = vpop.permute.xlu0 %873
        %875 = vrot.lane.b32.xlu0 %v825, 111
        %v876 = vpop.permute.xlu0 %875
        %877 = vrot.lane.b32.xlu0 %v826, 111
        %v878 = vpop.permute.xlu0 %877
        %879 = vrot.lane.b32.xlu0 %v827, 111
        %v880 = vpop.permute.xlu0 %879
        %881 = vrot.lane.b32.xlu0 %v828, 111
        %v882 = vpop.permute.xlu0 %881
        %883 = vrot.lane.b32.xlu0 %v829, 111
        %v884 = vpop.permute.xlu0 %883
        %885 = vrot.lane.b32.xlu0 %v830, 111
        %v886 = vpop.permute.xlu0 %885
        %887 = vrot.lane.b32.xlu0 %v831, 111
        %v888 = vpop.permute.xlu0 %887
        %889 = vrot.lane.b32.xlu0 %v832, 111
        %v890 = vpop.permute.xlu0 %889
        %891 = vrot.lane.b32.xlu0 %v833, 111
        %v892 = vpop.permute.xlu0 %891
        %893 = vrot.lane.b32.xlu0 %v834, 111
        %v894 = vpop.permute.xlu0 %893
        %895 = vrot.lane.b32.xlu0 %v835, 111
        %v896 = vpop.permute.xlu0 %895
        %897 = vrot.lane.b32.xlu0 %v836, 111
        %v898 = vpop.permute.xlu0 %897
        %899 = vrot.lane.b32.xlu0 %v837, 111
        %v900 = vpop.permute.xlu0 %899
        %901 = vrot.lane.b32.xlu0 %v838, 111
        %v902 = vpop.permute.xlu0 %901
        %903 = vrot.lane.b32.xlu0 %v839, 111
        %v904 = vpop.permute.xlu0 %903
        %905 = vrot.lane.b32.xlu0 %v840, 111
        %v906 = vpop.permute.xlu0 %905
        %907 = vrot.lane.b32.xlu0 %v841, 111
        %v908 = vpop.permute.xlu0 %907
        %909 = vrot.lane.b32.xlu0 %v842, 111
        %v910 = vpop.permute.xlu0 %909
        %911 = vrot.lane.b32.xlu0 %v843, 111
        %v912 = vpop.permute.xlu0 %911
        %913 = vrot.lane.b32.xlu0 %v844, 111
        %v914 = vpop.permute.xlu0 %913
        %915 = vrot.lane.b32.xlu0 %v845, 111
        %v916 = vpop.permute.xlu0 %915
        %917 = vrot.lane.b32.xlu0 %v846, 111
        %v918 = vpop.permute.xlu0 %917
        %vm919 = vcmask 908288
        %v920 = vsel %vm919, %v872, %v874
        %v921 = vsel %vm919, %v874, %v876
        %v922 = vsel %vm919, %v878, %v880
        %v923 = vsel %vm919, %v880, %v882
        %v924 = vsel %vm919, %v884, %v886
        %v925 = vsel %vm919, %v886, %v888
        %v926 = vsel %vm919, %v890, %v892
        %v927 = vsel %vm919, %v892, %v894
        %v928 = vsel %vm919, %v896, %v898
        %v929 = vsel %vm919, %v898, %v900
        %v930 = vsel %vm919, %v902, %v904
        %v931 = vsel %vm919, %v904, %v906
        %v932 = vsel %vm919, %v908, %v910
        %v933 = vsel %vm919, %v910, %v912
        %v934 = vsel %vm919, %v914, %v916
        %v935 = vsel %vm919, %v916, %v918
        %952 = vst [vmem:[#allocation2 + $0x200] sm:$0xff] %v920
        %953 = vst [vmem:[#allocation2 + $0x208] sm:$0xff] %v921
        %954 = vst [vmem:[#allocation2 + $0x210] sm:$0xff] %v922
        %955 = vst [vmem:[#allocation2 + $0x218] sm:$0xff] %v923
        %956 = vst [vmem:[#allocation2 + $0x220] sm:$0xff] %v924
        %957 = vst [vmem:[#allocation2 + $0x228] sm:$0xff] %v925
        %958 = vst [vmem:[#allocation2 + $0x230] sm:$0xff] %v926
        %959 = vst [vmem:[#allocation2 + $0x238] sm:$0xff] %v927
        %960 = vst [vmem:[#allocation2 + $0x240] sm:$0xff] %v928
        %961 = vst [vmem:[#allocation2 + $0x248] sm:$0xff] %v929
        %962 = vst [vmem:[#allocation2 + $0x250] sm:$0xff] %v930
        %963 = vst [vmem:[#allocation2 + $0x258] sm:$0xff] %v931
        %964 = vst [vmem:[#allocation2 + $0x260] sm:$0xff] %v932
        %965 = vst [vmem:[#allocation2 + $0x268] sm:$0xff] %v933
        %966 = vst [vmem:[#allocation2 + $0x270] sm:$0xff] %v934
        %967 = vst [vmem:[#allocation2 + $0x278] sm:$0xff] %v935
        %v968 = vld [vmem:[%s195] sm:$0xff]
        %v969 = vld [vmem:[%s195 + $0x8] sm:$0xff]
        %v970 = vld [vmem:[%s195 + $0x10] sm:$0xff]
        %v971 = vld [vmem:[%s195 + $0x18] sm:$0xff]
        %v972 = vld [vmem:[%s195 + $0x20] sm:$0xff]
        %v973 = vld [vmem:[%s195 + $0x28] sm:$0xff]
        %v974 = vld [vmem:[%s195 + $0x30] sm:$0xff]
        %v975 = vld [vmem:[%s195 + $0x38] sm:$0xff]
        %v976 = vld [vmem:[%s195 + $0x40] sm:$0xff]
        %v977 = vld [vmem:[%s195 + $0x48] sm:$0xff]
        %v978 = vld [vmem:[%s195 + $0x50] sm:$0xff]
        %v979 = vld [vmem:[%s195 + $0x58] sm:$0xff]
        %v980 = vld [vmem:[%s195 + $0x60] sm:$0xff]
        %v981 = vld [vmem:[%s195 + $0x68] sm:$0xff]
        %v982 = vld [vmem:[%s195 + $0x70] sm:$0xff]
        %v983 = vld [vmem:[%s195 + $0x78] sm:$0xff]
        %v984 = vld [vmem:[%s195 + $0x80] sm:$0xff]
        %v985 = vld [vmem:[%s195 + $0x88] sm:$0xff]
        %v986 = vld [vmem:[%s195 + $0x90] sm:$0xff]
        %v987 = vld [vmem:[%s195 + $0x98] sm:$0xff]
        %v988 = vld [vmem:[%s195 + $0xa0] sm:$0xff]
        %v989 = vld [vmem:[%s195 + $0xa8] sm:$0xff]
        %v990 = vld [vmem:[%s195 + $0xb0] sm:$0xff]
        %v991 = vld [vmem:[%s195 + $0xb8] sm:$0xff]
        %s992 = scalar_lea.vmem %s3, 10
        %v993 = vld [vmem:[%s992] sm:$0x3]
        %v995 = vlaneseq
        %v996 = vshrl.u32 %v995, 7
        %v997 = vsub.s32 0, %v996
        %v998 = vrot.slane %v993, %v997
        %v999 = vlaneseq
        %v1000 = vshrl.u32 %v999, 7
        %v1001 = vsub.s32 1, %v1000
        %v1002 = vrot.slane %v993, %v1001
        %1003 = vrot.lane.b32.xlu0 %v998, 18
        %v1004 = vpop.permute.xlu0 %1003
        %1005 = vrot.lane.b32.xlu0 %v1002, 18
        %v1006 = vpop.permute.xlu0 %1005
        %vm1007 = vcmask 146432
        %v1008 = vsel %vm1007, %v1004, %v1006
        %v1012 = vmul.f32 %v968, %v1004
        %v1013 = vmul.f32 %v969, %v1008
        %v1014 = vmul.f32 %v970, %v1006
        %v1015 = vmul.f32 %v971, %v1004
        %v1016 = vmul.f32 %v972, %v1008
        %v1017 = vmul.f32 %v973, %v1006
        %v1018 = vmul.f32 %v974, %v1004
        %v1019 = vmul.f32 %v975, %v1008
        %v1020 = vmul.f32 %v976, %v1006
        %v1021 = vmul.f32 %v977, %v1004
        %v1022 = vmul.f32 %v978, %v1008
        %v1023 = vmul.f32 %v979, %v1006
        %v1024 = vmul.f32 %v980, %v1004
        %v1025 = vmul.f32 %v981, %v1008
        %v1026 = vmul.f32 %v982, %v1006
        %v1027 = vmul.f32 %v983, %v1004
        %v1028 = vmul.f32 %v984, %v1008
        %v1029 = vmul.f32 %v985, %v1006
        %v1030 = vmul.f32 %v986, %v1004
        %v1031 = vmul.f32 %v987, %v1008
        %v1032 = vmul.f32 %v988, %v1006
        %v1033 = vmul.f32 %v989, %v1004
        %v1034 = vmul.f32 %v990, %v1008
        %v1035 = vmul.f32 %v991, %v1006
        %1060 = vrot.lane.b32.xlu0 %v1012, 110
        %v1061 = vpop.permute.xlu0 %1060
        %1062 = vrot.lane.b32.xlu0 %v1013, 110
        %v1063 = vpop.permute.xlu0 %1062
        %1064 = vrot.lane.b32.xlu0 %v1014, 110
        %v1065 = vpop.permute.xlu0 %1064
        %1066 = vrot.lane.b32.xlu0 %v1015, 110
        %v1067 = vpop.permute.xlu0 %1066
        %1068 = vrot.lane.b32.xlu0 %v1016, 110
        %v1069 = vpop.permute.xlu0 %1068
        %1070 = vrot.lane.b32.xlu0 %v1017, 110
        %v1071 = vpop.permute.xlu0 %1070
        %1072 = vrot.lane.b32.xlu0 %v1018, 110
        %v1073 = vpop.permute.xlu0 %1072
        %1074 = vrot.lane.b32.xlu0 %v1019, 110
        %v1075 = vpop.permute.xlu0 %1074
        %1076 = vrot.lane.b32.xlu0 %v1020, 110
        %v1077 = vpop.permute.xlu0 %1076
        %1078 = vrot.lane.b32.xlu0 %v1021, 110
        %v1079 = vpop.permute.xlu0 %1078
        %1080 = vrot.lane.b32.xlu0 %v1022, 110
        %v1081 = vpop.permute.xlu0 %1080
        %1082 = vrot.lane.b32.xlu0 %v1023, 110
        %v1083 = vpop.permute.xlu0 %1082
        %1084 = vrot.lane.b32.xlu0 %v1024, 110
        %v1085 = vpop.permute.xlu0 %1084
        %1086 = vrot.lane.b32.xlu0 %v1025, 110
        %v1087 = vpop.permute.xlu0 %1086
        %1088 = vrot.lane.b32.xlu0 %v1026, 110
        %v1089 = vpop.permute.xlu0 %1088
        %1090 = vrot.lane.b32.xlu0 %v1027, 110
        %v1091 = vpop.permute.xlu0 %1090
        %1092 = vrot.lane.b32.xlu0 %v1028, 110
        %v1093 = vpop.permute.xlu0 %1092
        %1094 = vrot.lane.b32.xlu0 %v1029, 110
        %v1095 = vpop.permute.xlu0 %1094
        %1096 = vrot.lane.b32.xlu0 %v1030, 110
        %v1097 = vpop.permute.xlu0 %1096
        %1098 = vrot.lane.b32.xlu0 %v1031, 110
        %v1099 = vpop.permute.xlu0 %1098
        %1100 = vrot.lane.b32.xlu0 %v1032, 110
        %v1101 = vpop.permute.xlu0 %1100
        %1102 = vrot.lane.b32.xlu0 %v1033, 110
        %v1103 = vpop.permute.xlu0 %1102
        %1104 = vrot.lane.b32.xlu0 %v1034, 110
        %v1105 = vpop.permute.xlu0 %1104
        %1106 = vrot.lane.b32.xlu0 %v1035, 110
        %v1107 = vpop.permute.xlu0 %1106
        %vm1108 = vcmask 900096
        %v1109 = vsel %vm1108, %v1061, %v1063
        %v1110 = vsel %vm1108, %v1063, %v1065
        %v1111 = vsel %vm1108, %v1067, %v1069
        %v1112 = vsel %vm1108, %v1069, %v1071
        %v1113 = vsel %vm1108, %v1073, %v1075
        %v1114 = vsel %vm1108, %v1075, %v1077
        %v1115 = vsel %vm1108, %v1079, %v1081
        %v1116 = vsel %vm1108, %v1081, %v1083
        %v1117 = vsel %vm1108, %v1085, %v1087
        %v1118 = vsel %vm1108, %v1087, %v1089
        %v1119 = vsel %vm1108, %v1091, %v1093
        %v1120 = vsel %vm1108, %v1093, %v1095
        %v1121 = vsel %vm1108, %v1097, %v1099
        %v1122 = vsel %vm1108, %v1099, %v1101
        %v1123 = vsel %vm1108, %v1103, %v1105
        %v1124 = vsel %vm1108, %v1105, %v1107
        %1141 = vst [vmem:[#allocation2 + $0x280] sm:$0xff] %v1109
        %1142 = vst [vmem:[#allocation2 + $0x288] sm:$0xff] %v1110
        %1143 = vst [vmem:[#allocation2 + $0x290] sm:$0xff] %v1111
        %1144 = vst [vmem:[#allocation2 + $0x298] sm:$0xff] %v1112
        %1145 = vst [vmem:[#allocation2 + $0x2a0] sm:$0xff] %v1113
        %1146 = vst [vmem:[#allocation2 + $0x2a8] sm:$0xff] %v1114
        %1147 = vst [vmem:[#allocation2 + $0x2b0] sm:$0xff] %v1115
        %1148 = vst [vmem:[#allocation2 + $0x2b8] sm:$0xff] %v1116
        %1149 = vst [vmem:[#allocation2 + $0x2c0] sm:$0xff] %v1117
        %1150 = vst [vmem:[#allocation2 + $0x2c8] sm:$0xff] %v1118
        %1151 = vst [vmem:[#allocation2 + $0x2d0] sm:$0xff] %v1119
        %1152 = vst [vmem:[#allocation2 + $0x2d8] sm:$0xff] %v1120
        %1153 = vst [vmem:[#allocation2 + $0x2e0] sm:$0xff] %v1121
        %1154 = vst [vmem:[#allocation2 + $0x2e8] sm:$0xff] %v1122
        %1155 = vst [vmem:[#allocation2 + $0x2f0] sm:$0xff] %v1123
        %1156 = vst [vmem:[#allocation2 + $0x2f8] sm:$0xff] %v1124
        %v1157 = vld [vmem:[%s195] sm:$0xff]
        %v1158 = vld [vmem:[%s195 + $0x8] sm:$0xff]
        %v1159 = vld [vmem:[%s195 + $0x10] sm:$0xff]
        %v1160 = vld [vmem:[%s195 + $0x18] sm:$0xff]
        %v1161 = vld [vmem:[%s195 + $0x20] sm:$0xff]
        %v1162 = vld [vmem:[%s195 + $0x28] sm:$0xff]
        %v1163 = vld [vmem:[%s195 + $0x30] sm:$0xff]
        %v1164 = vld [vmem:[%s195 + $0x38] sm:$0xff]
        %v1165 = vld [vmem:[%s195 + $0x40] sm:$0xff]
        %v1166 = vld [vmem:[%s195 + $0x48] sm:$0xff]
        %v1167 = vld [vmem:[%s195 + $0x50] sm:$0xff]
        %v1168 = vld [vmem:[%s195 + $0x58] sm:$0xff]
        %v1169 = vld [vmem:[%s195 + $0x60] sm:$0xff]
        %v1170 = vld [vmem:[%s195 + $0x68] sm:$0xff]
        %v1171 = vld [vmem:[%s195 + $0x70] sm:$0xff]
        %v1172 = vld [vmem:[%s195 + $0x78] sm:$0xff]
        %v1173 = vld [vmem:[%s195 + $0x80] sm:$0xff]
        %v1174 = vld [vmem:[%s195 + $0x88] sm:$0xff]
        %v1175 = vld [vmem:[%s195 + $0x90] sm:$0xff]
        %v1176 = vld [vmem:[%s195 + $0x98] sm:$0xff]
        %v1177 = vld [vmem:[%s195 + $0xa0] sm:$0xff]
        %v1178 = vld [vmem:[%s195 + $0xa8] sm:$0xff]
        %v1179 = vld [vmem:[%s195 + $0xb0] sm:$0xff]
        %v1180 = vld [vmem:[%s195 + $0xb8] sm:$0xff]
        %s1181 = scalar_lea.vmem %s3, 12
        %v1182 = vld [vmem:[%s1181] sm:$0x3]
        %v1184 = vlaneseq
        %v1185 = vshrl.u32 %v1184, 7
        %v1186 = vsub.s32 0, %v1185
        %v1187 = vrot.slane %v1182, %v1186
        %v1188 = vlaneseq
        %v1189 = vshrl.u32 %v1188, 7
        %v1190 = vsub.s32 1, %v1189
        %v1191 = vrot.slane %v1182, %v1190
        %1192 = vrot.lane.b32.xlu0 %v1187, 32
        %v1193 = vpop.permute.xlu0 %1192
        %1194 = vrot.lane.b32.xlu0 %v1191, 32
        %v1195 = vpop.permute.xlu0 %1194
        %vm1196 = vcmask 261120
        %v1197 = vsel %vm1196, %v1193, %v1195
        %v1201 = vmul.f32 %v1157, %v1193
        %v1202 = vmul.f32 %v1158, %v1197
        %v1203 = vmul.f32 %v1159, %v1195
        %v1204 = vmul.f32 %v1160, %v1193
        %v1205 = vmul.f32 %v1161, %v1197
        %v1206 = vmul.f32 %v1162, %v1195
        %v1207 = vmul.f32 %v1163, %v1193
        %v1208 = vmul.f32 %v1164, %v1197
        %v1209 = vmul.f32 %v1165, %v1195
        %v1210 = vmul.f32 %v1166, %v1193
        %v1211 = vmul.f32 %v1167, %v1197
        %v1212 = vmul.f32 %v1168, %v1195
        %v1213 = vmul.f32 %v1169, %v1193
        %v1214 = vmul.f32 %v1170, %v1197
        %v1215 = vmul.f32 %v1171, %v1195
        %v1216 = vmul.f32 %v1172, %v1193
        %v1217 = vmul.f32 %v1173, %v1197
        %v1218 = vmul.f32 %v1174, %v1195
        %v1219 = vmul.f32 %v1175, %v1193
        %v1220 = vmul.f32 %v1176, %v1197
        %v1221 = vmul.f32 %v1177, %v1195
        %v1222 = vmul.f32 %v1178, %v1193
        %v1223 = vmul.f32 %v1179, %v1197
        %v1224 = vmul.f32 %v1180, %v1195
        %1249 = vrot.lane.b32.xlu0 %v1201, 96
        %v1250 = vpop.permute.xlu0 %1249
        %1251 = vrot.lane.b32.xlu0 %v1202, 96
        %v1252 = vpop.permute.xlu0 %1251
        %1253 = vrot.lane.b32.xlu0 %v1203, 96
        %v1254 = vpop.permute.xlu0 %1253
        %1255 = vrot.lane.b32.xlu0 %v1204, 96
        %v1256 = vpop.permute.xlu0 %1255
        %1257 = vrot.lane.b32.xlu0 %v1205, 96
        %v1258 = vpop.permute.xlu0 %1257
        %1259 = vrot.lane.b32.xlu0 %v1206, 96
        %v1260 = vpop.permute.xlu0 %1259
        %1261 = vrot.lane.b32.xlu0 %v1207, 96
        %v1262 = vpop.permute.xlu0 %1261
        %1263 = vrot.lane.b32.xlu0 %v1208, 96
        %v1264 = vpop.permute.xlu0 %1263
        %1265 = vrot.lane.b32.xlu0 %v1209, 96
        %v1266 = vpop.permute.xlu0 %1265
        %1267 = vrot.lane.b32.xlu0 %v1210, 96
        %v1268 = vpop.permute.xlu0 %1267
        %1269 = vrot.lane.b32.xlu0 %v1211, 96
        %v1270 = vpop.permute.xlu0 %1269
        %1271 = vrot.lane.b32.xlu0 %v1212, 96
        %v1272 = vpop.permute.xlu0 %1271
        %1273 = vrot.lane.b32.xlu0 %v1213, 96
        %v1274 = vpop.permute.xlu0 %1273
        %1275 = vrot.lane.b32.xlu0 %v1214, 96
        %v1276 = vpop.permute.xlu0 %1275
        %1277 = vrot.lane.b32.xlu0 %v1215, 96
        %v1278 = vpop.permute.xlu0 %1277
        %1279 = vrot.lane.b32.xlu0 %v1216, 96
        %v1280 = vpop.permute.xlu0 %1279
        %1281 = vrot.lane.b32.xlu0 %v1217, 96
        %v1282 = vpop.permute.xlu0 %1281
        %1283 = vrot.lane.b32.xlu0 %v1218, 96
        %v1284 = vpop.permute.xlu0 %1283
        %1285 = vrot.lane.b32.xlu0 %v1219, 96
        %v1286 = vpop.permute.xlu0 %1285
        %1287 = vrot.lane.b32.xlu0 %v1220, 96
        %v1288 = vpop.permute.xlu0 %1287
        %1289 = vrot.lane.b32.xlu0 %v1221, 96
        %v1290 = vpop.permute.xlu0 %1289
        %1291 = vrot.lane.b32.xlu0 %v1222, 96
        %v1292 = vpop.permute.xlu0 %1291
        %1293 = vrot.lane.b32.xlu0 %v1223, 96
        %v1294 = vpop.permute.xlu0 %1293
        %1295 = vrot.lane.b32.xlu0 %v1224, 96
        %v1296 = vpop.permute.xlu0 %1295
        %vm1297 = vcmask 785408
        %v1298 = vsel %vm1297, %v1250, %v1252
        %v1299 = vsel %vm1297, %v1252, %v1254
        %v1300 = vsel %vm1297, %v1256, %v1258
        %v1301 = vsel %vm1297, %v1258, %v1260
        %v1302 = vsel %vm1297, %v1262, %v1264
        %v1303 = vsel %vm1297, %v1264, %v1266
        %v1304 = vsel %vm1297, %v1268, %v1270
        %v1305 = vsel %vm1297, %v1270, %v1272
        %v1306 = vsel %vm1297, %v1274, %v1276
        %v1307 = vsel %vm1297, %v1276, %v1278
        %v1308 = vsel %vm1297, %v1280, %v1282
        %v1309 = vsel %vm1297, %v1282, %v1284
        %v1310 = vsel %vm1297, %v1286, %v1288
        %v1311 = vsel %vm1297, %v1288, %v1290
        %v1312 = vsel %vm1297, %v1292, %v1294
        %v1313 = vsel %vm1297, %v1294, %v1296
        %1330 = vst [vmem:[#allocation2 + $0x300] sm:$0xff] %v1298
        %1331 = vst [vmem:[#allocation2 + $0x308] sm:$0xff] %v1299
        %1332 = vst [vmem:[#allocation2 + $0x310] sm:$0xff] %v1300
        %1333 = vst [vmem:[#allocation2 + $0x318] sm:$0xff] %v1301
        %1334 = vst [vmem:[#allocation2 + $0x320] sm:$0xff] %v1302
        %1335 = vst [vmem:[#allocation2 + $0x328] sm:$0xff] %v1303
        %1336 = vst [vmem:[#allocation2 + $0x330] sm:$0xff] %v1304
        %1337 = vst [vmem:[#allocation2 + $0x338] sm:$0xff] %v1305
        %1338 = vst [vmem:[#allocation2 + $0x340] sm:$0xff] %v1306
        %1339 = vst [vmem:[#allocation2 + $0x348] sm:$0xff] %v1307
        %1340 = vst [vmem:[#allocation2 + $0x350] sm:$0xff] %v1308
        %1341 = vst [vmem:[#allocation2 + $0x358] sm:$0xff] %v1309
        %1342 = vst [vmem:[#allocation2 + $0x360] sm:$0xff] %v1310
        %1343 = vst [vmem:[#allocation2 + $0x368] sm:$0xff] %v1311
        %1344 = vst [vmem:[#allocation2 + $0x370] sm:$0xff] %v1312
        %1345 = vst [vmem:[#allocation2 + $0x378] sm:$0xff] %v1313
        %v1346 = vld [vmem:[%s195] sm:$0xff]
        %v1347 = vld [vmem:[%s195 + $0x8] sm:$0xff]
        %v1348 = vld [vmem:[%s195 + $0x10] sm:$0xff]
        %v1349 = vld [vmem:[%s195 + $0x18] sm:$0xff]
        %v1350 = vld [vmem:[%s195 + $0x20] sm:$0xff]
        %v1351 = vld [vmem:[%s195 + $0x28] sm:$0xff]
        %v1352 = vld [vmem:[%s195 + $0x30] sm:$0xff]
        %v1353 = vld [vmem:[%s195 + $0x38] sm:$0xff]
        %v1354 = vld [vmem:[%s195 + $0x40] sm:$0xff]
        %v1355 = vld [vmem:[%s195 + $0x48] sm:$0xff]
        %v1356 = vld [vmem:[%s195 + $0x50] sm:$0xff]
        %v1357 = vld [vmem:[%s195 + $0x58] sm:$0xff]
        %v1358 = vld [vmem:[%s195 + $0x60] sm:$0xff]
        %v1359 = vld [vmem:[%s195 + $0x68] sm:$0xff]
        %v1360 = vld [vmem:[%s195 + $0x70] sm:$0xff]
        %v1361 = vld [vmem:[%s195 + $0x78] sm:$0xff]
        %v1362 = vld [vmem:[%s195 + $0x80] sm:$0xff]
        %v1363 = vld [vmem:[%s195 + $0x88] sm:$0xff]
        %v1364 = vld [vmem:[%s195 + $0x90] sm:$0xff]
        %v1365 = vld [vmem:[%s195 + $0x98] sm:$0xff]
        %v1366 = vld [vmem:[%s195 + $0xa0] sm:$0xff]
        %v1367 = vld [vmem:[%s195 + $0xa8] sm:$0xff]
        %v1368 = vld [vmem:[%s195 + $0xb0] sm:$0xff]
        %v1369 = vld [vmem:[%s195 + $0xb8] sm:$0xff]
        %s1370 = scalar_lea.vmem %s3, 14
        %v1371 = vld [vmem:[%s1370] sm:$0x3]
        %v1373 = vlaneseq
        %v1374 = vshrl.u32 %v1373, 7
        %v1375 = vsub.s32 0, %v1374
        %v1376 = vrot.slane %v1371, %v1375
        %v1377 = vlaneseq
        %v1378 = vshrl.u32 %v1377, 7
        %v1379 = vsub.s32 1, %v1378
        %v1380 = vrot.slane %v1371, %v1379
        %1381 = vrot.lane.b32.xlu0 %v1376, 33
        %v1382 = vpop.permute.xlu0 %1381
        %1383 = vrot.lane.b32.xlu0 %v1380, 33
        %v1384 = vpop.permute.xlu0 %1383
        %vm1385 = vcmask 269312
        %v1386 = vsel %vm1385, %v1382, %v1384
        %v1390 = vmul.f32 %v1346, %v1382
        %v1391 = vmul.f32 %v1347, %v1386
        %v1392 = vmul.f32 %v1348, %v1384
        %v1393 = vmul.f32 %v1349, %v1382
        %v1394 = vmul.f32 %v1350, %v1386
        %v1395 = vmul.f32 %v1351, %v1384
        %v1396 = vmul.f32 %v1352, %v1382
        %v1397 = vmul.f32 %v1353, %v1386
        %v1398 = vmul.f32 %v1354, %v1384
        %v1399 = vmul.f32 %v1355, %v1382
        %v1400 = vmul.f32 %v1356, %v1386
        %v1401 = vmul.f32 %v1357, %v1384
        %v1402 = vmul.f32 %v1358, %v1382
        %v1403 = vmul.f32 %v1359, %v1386
        %v1404 = vmul.f32 %v1360, %v1384
        %v1405 = vmul.f32 %v1361, %v1382
        %v1406 = vmul.f32 %v1362, %v1386
        %v1407 = vmul.f32 %v1363, %v1384
        %v1408 = vmul.f32 %v1364, %v1382
        %v1409 = vmul.f32 %v1365, %v1386
        %v1410 = vmul.f32 %v1366, %v1384
        %v1411 = vmul.f32 %v1367, %v1382
        %v1412 = vmul.f32 %v1368, %v1386
        %v1413 = vmul.f32 %v1369, %v1384
        %1438 = vrot.lane.b32.xlu0 %v1390, 95
        %v1439 = vpop.permute.xlu0 %1438
        %1440 = vrot.lane.b32.xlu0 %v1391, 95
        %v1441 = vpop.permute.xlu0 %1440
        %1442 = vrot.lane.b32.xlu0 %v1392, 95
        %v1443 = vpop.permute.xlu0 %1442
        %1444 = vrot.lane.b32.xlu0 %v1393, 95
        %v1445 = vpop.permute.xlu0 %1444
        %1446 = vrot.lane.b32.xlu0 %v1394, 95
        %v1447 = vpop.permute.xlu0 %1446
        %1448 = vrot.lane.b32.xlu0 %v1395, 95
        %v1449 = vpop.permute.xlu0 %1448
        %1450 = vrot.lane.b32.xlu0 %v1396, 95
        %v1451 = vpop.permute.xlu0 %1450
        %1452 = vrot.lane.b32.xlu0 %v1397, 95
        %v1453 = vpop.permute.xlu0 %1452
        %1454 = vrot.lane.b32.xlu0 %v1398, 95
        %v1455 = vpop.permute.xlu0 %1454
        %1456 = vrot.lane.b32.xlu0 %v1399, 95
        %v1457 = vpop.permute.xlu0 %1456
        %1458 = vrot.lane.b32.xlu0 %v1400, 95
        %v1459 = vpop.permute.xlu0 %1458
        %1460 = vrot.lane.b32.xlu0 %v1401, 95
        %v1461 = vpop.permute.xlu0 %1460
        %1462 = vrot.lane.b32.xlu0 %v1402, 95
        %v1463 = vpop.permute.xlu0 %1462
        %1464 = vrot.lane.b32.xlu0 %v1403, 95
        %v1465 = vpop.permute.xlu0 %1464
        %1466 = vrot.lane.b32.xlu0 %v1404, 95
        %v1467 = vpop.permute.xlu0 %1466
        %1468 = vrot.lane.b32.xlu0 %v1405, 95
        %v1469 = vpop.permute.xlu0 %1468
        %1470 = vrot.lane.b32.xlu0 %v1406, 95
        %v1471 = vpop.permute.xlu0 %1470
        %1472 = vrot.lane.b32.xlu0 %v1407, 95
        %v1473 = vpop.permute.xlu0 %1472
        %1474 = vrot.lane.b32.xlu0 %v1408, 95
        %v1475 = vpop.permute.xlu0 %1474
        %1476 = vrot.lane.b32.xlu0 %v1409, 95
        %v1477 = vpop.permute.xlu0 %1476
        %1478 = vrot.lane.b32.xlu0 %v1410, 95
        %v1479 = vpop.permute.xlu0 %1478
        %1480 = vrot.lane.b32.xlu0 %v1411, 95
        %v1481 = vpop.permute.xlu0 %1480
        %1482 = vrot.lane.b32.xlu0 %v1412, 95
        %v1483 = vpop.permute.xlu0 %1482
        %1484 = vrot.lane.b32.xlu0 %v1413, 95
        %v1485 = vpop.permute.xlu0 %1484
        %vm1486 = vcmask 777216
        %v1487 = vsel %vm1486, %v1439, %v1441
        %v1488 = vsel %vm1486, %v1441, %v1443
        %v1489 = vsel %vm1486, %v1445, %v1447
        %v1490 = vsel %vm1486, %v1447, %v1449
        %v1491 = vsel %vm1486, %v1451, %v1453
        %v1492 = vsel %vm1486, %v1453, %v1455
        %v1493 = vsel %vm1486, %v1457, %v1459
        %v1494 = vsel %vm1486, %v1459, %v1461
        %v1495 = vsel %vm1486, %v1463, %v1465
        %v1496 = vsel %vm1486, %v1465, %v1467
        %v1497 = vsel %vm1486, %v1469, %v1471
        %v1498 = vsel %vm1486, %v1471, %v1473
        %v1499 = vsel %vm1486, %v1475, %v1477
        %v1500 = vsel %vm1486, %v1477, %v1479
        %v1501 = vsel %vm1486, %v1481, %v1483
        %v1502 = vsel %vm1486, %v1483, %v1485
        %1519 = vst [vmem:[#allocation2 + $0x380] sm:$0xff] %v1487
        %1520 = vst [vmem:[#allocation2 + $0x388] sm:$0xff] %v1488
        %1521 = vst [vmem:[#allocation2 + $0x390] sm:$0xff] %v1489
        %1522 = vst [vmem:[#allocation2 + $0x398] sm:$0xff] %v1490
        %1523 = vst [vmem:[#allocation2 + $0x3a0] sm:$0xff] %v1491
        %1524 = vst [vmem:[#allocation2 + $0x3a8] sm:$0xff] %v1492
        %1525 = vst [vmem:[#allocation2 + $0x3b0] sm:$0xff] %v1493
        %1526 = vst [vmem:[#allocation2 + $0x3b8] sm:$0xff] %v1494
        %1527 = vst [vmem:[#allocation2 + $0x3c0] sm:$0xff] %v1495
        %1528 = vst [vmem:[#allocation2 + $0x3c8] sm:$0xff] %v1496
        %1529 = vst [vmem:[#allocation2 + $0x3d0] sm:$0xff] %v1497
        %1530 = vst [vmem:[#allocation2 + $0x3d8] sm:$0xff] %v1498
        %1531 = vst [vmem:[#allocation2 + $0x3e0] sm:$0xff] %v1499
        %1532 = vst [vmem:[#allocation2 + $0x3e8] sm:$0xff] %v1500
        %1533 = vst [vmem:[#allocation2 + $0x3f0] sm:$0xff] %v1501
        %1534 = vst [vmem:[#allocation2 + $0x3f8] sm:$0xff] %v1502
        %v1535 = vld [vmem:[%s195] sm:$0xff]
        %v1536 = vld [vmem:[%s195 + $0x8] sm:$0xff]
        %v1537 = vld [vmem:[%s195 + $0x10] sm:$0xff]
        %v1538 = vld [vmem:[%s195 + $0x18] sm:$0xff]
        %v1539 = vld [vmem:[%s195 + $0x20] sm:$0xff]
        %v1540 = vld [vmem:[%s195 + $0x28] sm:$0xff]
        %v1541 = vld [vmem:[%s195 + $0x30] sm:$0xff]
        %v1542 = vld [vmem:[%s195 + $0x38] sm:$0xff]
        %v1543 = vld [vmem:[%s195 + $0x40] sm:$0xff]
        %v1544 = vld [vmem:[%s195 + $0x48] sm:$0xff]
        %v1545 = vld [vmem:[%s195 + $0x50] sm:$0xff]
        %v1546 = vld [vmem:[%s195 + $0x58] sm:$0xff]
        %v1547 = vld [vmem:[%s195 + $0x60] sm:$0xff]
        %v1548 = vld [vmem:[%s195 + $0x68] sm:$0xff]
        %v1549 = vld [vmem:[%s195 + $0x70] sm:$0xff]
        %v1550 = vld [vmem:[%s195 + $0x78] sm:$0xff]
        %v1551 = vld [vmem:[%s195 + $0x80] sm:$0xff]
        %v1552 = vld [vmem:[%s195 + $0x88] sm:$0xff]
        %v1553 = vld [vmem:[%s195 + $0x90] sm:$0xff]
        %v1554 = vld [vmem:[%s195 + $0x98] sm:$0xff]
        %v1555 = vld [vmem:[%s195 + $0xa0] sm:$0xff]
        %v1556 = vld [vmem:[%s195 + $0xa8] sm:$0xff]
        %v1557 = vld [vmem:[%s195 + $0xb0] sm:$0xff]
        %v1558 = vld [vmem:[%s195 + $0xb8] sm:$0xff]
        %s1559 = scalar_lea.vmem %s3, 16
        %v1560 = vld [vmem:[%s1559] sm:$0x3]
        %v1562 = vlaneseq
        %v1563 = vshrl.u32 %v1562, 7
        %v1564 = vsub.s32 0, %v1563
        %v1565 = vrot.slane %v1560, %v1564
        %v1566 = vlaneseq
        %v1567 = vshrl.u32 %v1566, 7
        %v1568 = vsub.s32 1, %v1567
        %v1569 = vrot.slane %v1560, %v1568
        %1570 = vrot.lane.b32.xlu0 %v1565, 34
        %v1571 = vpop.permute.xlu0 %1570
        %1572 = vrot.lane.b32.xlu0 %v1569, 34
        %v1573 = vpop.permute.xlu0 %1572
        %vm1574 = vcmask 277504
        %v1575 = vsel %vm1574, %v1571, %v1573
        %v1579 = vmul.f32 %v1535, %v1571
        %v1580 = vmul.f32 %v1536, %v1575
        %v1581 = vmul.f32 %v1537, %v1573
        %v1582 = vmul.f32 %v1538, %v1571
        %v1583 = vmul.f32 %v1539, %v1575
        %v1584 = vmul.f32 %v1540, %v1573
        %v1585 = vmul.f32 %v1541, %v1571
        %v1586 = vmul.f32 %v1542, %v1575
        %v1587 = vmul.f32 %v1543, %v1573
        %v1588 = vmul.f32 %v1544, %v1571
        %v1589 = vmul.f32 %v1545, %v1575
        %v1590 = vmul.f32 %v1546, %v1573
        %v1591 = vmul.f32 %v1547, %v1571
        %v1592 = vmul.f32 %v1548, %v1575
        %v1593 = vmul.f32 %v1549, %v1573
        %v1594 = vmul.f32 %v1550, %v1571
        %v1595 = vmul.f32 %v1551, %v1575
        %v1596 = vmul.f32 %v1552, %v1573
        %v1597 = vmul.f32 %v1553, %v1571
        %v1598 = vmul.f32 %v1554, %v1575
        %v1599 = vmul.f32 %v1555, %v1573
        %v1600 = vmul.f32 %v1556, %v1571
        %v1601 = vmul.f32 %v1557, %v1575
        %v1602 = vmul.f32 %v1558, %v1573
        %1627 = vrot.lane.b32.xlu0 %v1579, 94
        %v1628 = vpop.permute.xlu0 %1627
        %1629 = vrot.lane.b32.xlu0 %v1580, 94
        %v1630 = vpop.permute.xlu0 %1629
        %1631 = vrot.lane.b32.xlu0 %v1581, 94
        %v1632 = vpop.permute.xlu0 %1631
        %1633 = vrot.lane.b32.xlu0 %v1582, 94
        %v1634 = vpop.permute.xlu0 %1633
        %1635 = vrot.lane.b32.xlu0 %v1583, 94
        %v1636 = vpop.permute.xlu0 %1635
        %1637 = vrot.lane.b32.xlu0 %v1584, 94
        %v1638 = vpop.permute.xlu0 %1637
        %1639 = vrot.lane.b32.xlu0 %v1585, 94
        %v1640 = vpop.permute.xlu0 %1639
        %1641 = vrot.lane.b32.xlu0 %v1586, 94
        %v1642 = vpop.permute.xlu0 %1641
        %1643 = vrot.lane.b32.xlu0 %v1587, 94
        %v1644 = vpop.permute.xlu0 %1643
        %1645 = vrot.lane.b32.xlu0 %v1588, 94
        %v1646 = vpop.permute.xlu0 %1645
        %1647 = vrot.lane.b32.xlu0 %v1589, 94
        %v1648 = vpop.permute.xlu0 %1647
        %1649 = vrot.lane.b32.xlu0 %v1590, 94
        %v1650 = vpop.permute.xlu0 %1649
        %1651 = vrot.lane.b32.xlu0 %v1591, 94
        %v1652 = vpop.permute.xlu0 %1651
        %1653 = vrot.lane.b32.xlu0 %v1592, 94
        %v1654 = vpop.permute.xlu0 %1653
        %1655 = vrot.lane.b32.xlu0 %v1593, 94
        %v1656 = vpop.permute.xlu0 %1655
        %1657 = vrot.lane.b32.xlu0 %v1594, 94
        %v1658 = vpop.permute.xlu0 %1657
        %1659 = vrot.lane.b32.xlu0 %v1595, 94
        %v1660 = vpop.permute.xlu0 %1659
        %1661 = vrot.lane.b32.xlu0 %v1596, 94
        %v1662 = vpop.permute.xlu0 %1661
        %1663 = vrot.lane.b32.xlu0 %v1597, 94
        %v1664 = vpop.permute.xlu0 %1663
        %1665 = vrot.lane.b32.xlu0 %v1598, 94
        %v1666 = vpop.permute.xlu0 %1665
        %1667 = vrot.lane.b32.xlu0 %v1599, 94
        %v1668 = vpop.permute.xlu0 %1667
        %1669 = vrot.lane.b32.xlu0 %v1600, 94
        %v1670 = vpop.permute.xlu0 %1669
        %1671 = vrot.lane.b32.xlu0 %v1601, 94
        %v1672 = vpop.permute.xlu0 %1671
        %1673 = vrot.lane.b32.xlu0 %v1602, 94
        %v1674 = vpop.permute.xlu0 %1673
        %vm1675 = vcmask 769024
        %v1676 = vsel %vm1675, %v1628, %v1630
        %v1677 = vsel %vm1675, %v1630, %v1632
        %v1678 = vsel %vm1675, %v1634, %v1636
        %v1679 = vsel %vm1675, %v1636, %v1638
        %v1680 = vsel %vm1675, %v1640, %v1642
        %v1681 = vsel %vm1675, %v1642, %v1644
        %v1682 = vsel %vm1675, %v1646, %v1648
        %v1683 = vsel %vm1675, %v1648, %v1650
        %v1684 = vsel %vm1675, %v1652, %v1654
        %v1685 = vsel %vm1675, %v1654, %v1656
        %v1686 = vsel %vm1675, %v1658, %v1660
        %v1687 = vsel %vm1675, %v1660, %v1662
        %v1688 = vsel %vm1675, %v1664, %v1666
        %v1689 = vsel %vm1675, %v1666, %v1668
        %v1690 = vsel %vm1675, %v1670, %v1672
        %v1691 = vsel %vm1675, %v1672, %v1674
        %1708 = vst [vmem:[#allocation2 + $0x400] sm:$0xff] %v1676
        %1709 = vst [vmem:[#allocation2 + $0x408] sm:$0xff] %v1677
        %1710 = vst [vmem:[#allocation2 + $0x410] sm:$0xff] %v1678
        %1711 = vst [vmem:[#allocation2 + $0x418] sm:$0xff] %v1679
        %1712 = vst [vmem:[#allocation2 + $0x420] sm:$0xff] %v1680
        %1713 = vst [vmem:[#allocation2 + $0x428] sm:$0xff] %v1681
        %1714 = vst [vmem:[#allocation2 + $0x430] sm:$0xff] %v1682
        %1715 = vst [vmem:[#allocation2 + $0x438] sm:$0xff] %v1683
        %1716 = vst [vmem:[#allocation2 + $0x440] sm:$0xff] %v1684
        %1717 = vst [vmem:[#allocation2 + $0x448] sm:$0xff] %v1685
        %1718 = vst [vmem:[#allocation2 + $0x450] sm:$0xff] %v1686
        %1719 = vst [vmem:[#allocation2 + $0x458] sm:$0xff] %v1687
        %1720 = vst [vmem:[#allocation2 + $0x460] sm:$0xff] %v1688
        %1721 = vst [vmem:[#allocation2 + $0x468] sm:$0xff] %v1689
        %1722 = vst [vmem:[#allocation2 + $0x470] sm:$0xff] %v1690
        %1723 = vst [vmem:[#allocation2 + $0x478] sm:$0xff] %v1691
        %v1724 = vld [vmem:[%s1] sm:$0xff]
        %v1725 = vld [vmem:[%s1 + $0x8] sm:$0xff]
        %v1726 = vld [vmem:[%s1 + $0x10] sm:$0xff]
        %v1727 = vld [vmem:[%s1 + $0x18] sm:$0xff]
        %v1728 = vld [vmem:[%s1 + $0x20] sm:$0xff]
        %v1729 = vld [vmem:[%s1 + $0x28] sm:$0xff]
        %v1730 = vld [vmem:[%s1 + $0x30] sm:$0xff]
        %v1731 = vld [vmem:[%s1 + $0x38] sm:$0xff]
        %v1732 = vld [vmem:[%s1 + $0x40] sm:$0xff]
        %v1733 = vld [vmem:[%s1 + $0x48] sm:$0xff]
        %v1734 = vld [vmem:[%s1 + $0x50] sm:$0xff]
        %v1735 = vld [vmem:[%s1 + $0x58] sm:$0xff]
        %v1736 = vld [vmem:[%s1 + $0x60] sm:$0xff]
        %v1737 = vld [vmem:[%s1 + $0x68] sm:$0xff]
        %v1738 = vld [vmem:[%s1 + $0x70] sm:$0xff]
        %v1739 = vld [vmem:[%s1 + $0x78] sm:$0xff]
        %v1740 = vld [vmem:[%s1 + $0x80] sm:$0xff]
        %v1741 = vld [vmem:[%s1 + $0x88] sm:$0xff]
        %v1742 = vld [vmem:[%s1 + $0x90] sm:$0xff]
        %v1743 = vld [vmem:[%s1 + $0x98] sm:$0xff]
        %v1744 = vld [vmem:[%s1 + $0xa0] sm:$0xff]
        %v1745 = vld [vmem:[%s1 + $0xa8] sm:$0xff]
        %v1746 = vld [vmem:[%s1 + $0xb0] sm:$0xff]
        %v1747 = vld [vmem:[%s1 + $0xb8] sm:$0xff]
        %v1748 = vld [vmem:[%s1 + $0xc0] sm:$0xff]
        %v1749 = vld [vmem:[%s1 + $0xc8] sm:$0xff]
        %v1750 = vld [vmem:[%s1 + $0xd0] sm:$0xff]
        %v1751 = vld [vmem:[%s1 + $0xd8] sm:$0xff]
        %v1752 = vld [vmem:[%s1 + $0xe0] sm:$0xff]
        %v1753 = vld [vmem:[%s1 + $0xe8] sm:$0xff]
        %v1754 = vld [vmem:[%s1 + $0xf0] sm:$0xff]
        %v1755 = vld [vmem:[%s1 + $0xf8] sm:$0xff]
        %v1756 = vld [vmem:[%s1 + $0x100] sm:$0xff]
        %v1757 = vld [vmem:[%s1 + $0x108] sm:$0xff]
        %v1758 = vld [vmem:[%s1 + $0x110] sm:$0xff]
        %v1759 = vld [vmem:[%s1 + $0x118] sm:$0xff]
        %v1760 = vld [vmem:[%s1 + $0x120] sm:$0xff]
        %v1761 = vld [vmem:[%s1 + $0x128] sm:$0xff]
        %v1762 = vld [vmem:[%s1 + $0x130] sm:$0xff]
        %v1763 = vld [vmem:[%s1 + $0x138] sm:$0xff]
        %v1764 = vld [vmem:[%s1 + $0x140] sm:$0xff]
        %v1765 = vld [vmem:[%s1 + $0x148] sm:$0xff]
        %v1766 = vld [vmem:[%s1 + $0x150] sm:$0xff]
        %v1767 = vld [vmem:[%s1 + $0x158] sm:$0xff]
        %v1768 = vld [vmem:[%s1 + $0x160] sm:$0xff]
        %v1769 = vld [vmem:[%s1 + $0x168] sm:$0xff]
        %v1770 = vld [vmem:[%s1 + $0x170] sm:$0xff]
        %v1771 = vld [vmem:[%s1 + $0x178] sm:$0xff]
        %v1772 = vld [vmem:[%s1 + $0x180] sm:$0xff]
        %v1773 = vld [vmem:[%s1 + $0x188] sm:$0xff]
        %v1774 = vld [vmem:[%s1 + $0x190] sm:$0xff]
        %v1775 = vld [vmem:[%s1 + $0x198] sm:$0xff]
        %v1776 = vld [vmem:[%s1 + $0x1a0] sm:$0xff]
        %v1777 = vld [vmem:[%s1 + $0x1a8] sm:$0xff]
        %v1778 = vld [vmem:[%s1 + $0x1b0] sm:$0xff]
        %v1779 = vld [vmem:[%s1 + $0x1b8] sm:$0xff]
        %v1780 = vld [vmem:[%s1 + $0x1c0] sm:$0xff]
        %v1781 = vld [vmem:[%s1 + $0x1c8] sm:$0xff]
        %v1782 = vld [vmem:[%s1 + $0x1d0] sm:$0xff]
        %v1783 = vld [vmem:[%s1 + $0x1d8] sm:$0xff]
        %v1784 = vld [vmem:[%s1 + $0x1e0] sm:$0xff]
        %v1785 = vld [vmem:[%s1 + $0x1e8] sm:$0xff]
        %v1786 = vld [vmem:[%s1 + $0x1f0] sm:$0xff]
        %v1787 = vld [vmem:[%s1 + $0x1f8] sm:$0xff]
        %v1788 = vld [vmem:[%s1 + $0x200] sm:$0xff]
        %v1789 = vld [vmem:[%s1 + $0x208] sm:$0xff]
        %v1790 = vld [vmem:[%s1 + $0x210] sm:$0xff]
        %v1791 = vld [vmem:[%s1 + $0x218] sm:$0xff]
        %v1792 = vld [vmem:[%s1 + $0x220] sm:$0xff]
        %v1793 = vld [vmem:[%s1 + $0x228] sm:$0xff]
        %v1794 = vld [vmem:[%s1 + $0x230] sm:$0xff]
        %v1795 = vld [vmem:[%s1 + $0x238] sm:$0xff]
        %v1796 = vld [vmem:[%s1 + $0x240] sm:$0xff]
        %v1797 = vld [vmem:[%s1 + $0x248] sm:$0xff]
        %v1798 = vld [vmem:[%s1 + $0x250] sm:$0xff]
        %v1799 = vld [vmem:[%s1 + $0x258] sm:$0xff]
        %v1800 = vld [vmem:[%s1 + $0x260] sm:$0xff]
        %v1801 = vld [vmem:[%s1 + $0x268] sm:$0xff]
        %v1802 = vld [vmem:[%s1 + $0x270] sm:$0xff]
        %v1803 = vld [vmem:[%s1 + $0x278] sm:$0xff]
        %v1804 = vld [vmem:[%s1 + $0x280] sm:$0xff]
        %v1805 = vld [vmem:[%s1 + $0x288] sm:$0xff]
        %v1806 = vld [vmem:[%s1 + $0x290] sm:$0xff]
        %v1807 = vld [vmem:[%s1 + $0x298] sm:$0xff]
        %v1808 = vld [vmem:[%s1 + $0x2a0] sm:$0xff]
        %v1809 = vld [vmem:[%s1 + $0x2a8] sm:$0xff]
        %v1810 = vld [vmem:[%s1 + $0x2b0] sm:$0xff]
        %v1811 = vld [vmem:[%s1 + $0x2b8] sm:$0xff]
        %v1812 = vld [vmem:[%s1 + $0x2c0] sm:$0xff]
        %v1813 = vld [vmem:[%s1 + $0x2c8] sm:$0xff]
        %v1814 = vld [vmem:[%s1 + $0x2d0] sm:$0xff]
        %v1815 = vld [vmem:[%s1 + $0x2d8] sm:$0xff]
        %v1816 = vld [vmem:[%s1 + $0x2e0] sm:$0xff]
        %v1817 = vld [vmem:[%s1 + $0x2e8] sm:$0xff]
        %v1818 = vld [vmem:[%s1 + $0x2f0] sm:$0xff]
        %v1819 = vld [vmem:[%s1 + $0x2f8] sm:$0xff]
        %v1820 = vld [vmem:[%s1 + $0x300] sm:$0xff]
        %v1821 = vld [vmem:[%s1 + $0x308] sm:$0xff]
        %v1822 = vld [vmem:[%s1 + $0x310] sm:$0xff]
        %v1823 = vld [vmem:[%s1 + $0x318] sm:$0xff]
        %v1824 = vld [vmem:[%s1 + $0x320] sm:$0xff]
        %v1825 = vld [vmem:[%s1 + $0x328] sm:$0xff]
        %v1826 = vld [vmem:[%s1 + $0x330] sm:$0xff]
        %v1827 = vld [vmem:[%s1 + $0x338] sm:$0xff]
        %v1828 = vld [vmem:[%s1 + $0x340] sm:$0xff]
        %v1829 = vld [vmem:[%s1 + $0x348] sm:$0xff]
        %v1830 = vld [vmem:[%s1 + $0x350] sm:$0xff]
        %v1831 = vld [vmem:[%s1 + $0x358] sm:$0xff]
        %v1832 = vld [vmem:[%s1 + $0x360] sm:$0xff]
        %v1833 = vld [vmem:[%s1 + $0x368] sm:$0xff]
        %v1834 = vld [vmem:[%s1 + $0x370] sm:$0xff]
        %v1835 = vld [vmem:[%s1 + $0x378] sm:$0xff]
        %v1836 = vld [vmem:[%s1 + $0x380] sm:$0xff]
        %v1837 = vld [vmem:[%s1 + $0x388] sm:$0xff]
        %v1838 = vld [vmem:[%s1 + $0x390] sm:$0xff]
        %v1839 = vld [vmem:[%s1 + $0x398] sm:$0xff]
        %v1840 = vld [vmem:[%s1 + $0x3a0] sm:$0xff]
        %v1841 = vld [vmem:[%s1 + $0x3a8] sm:$0xff]
        %v1842 = vld [vmem:[%s1 + $0x3b0] sm:$0xff]
        %v1843 = vld [vmem:[%s1 + $0x3b8] sm:$0xff]
        %v1844 = vld [vmem:[%s1 + $0x3c0] sm:$0xff]
        %v1845 = vld [vmem:[%s1 + $0x3c8] sm:$0xff]
        %v1846 = vld [vmem:[%s1 + $0x3d0] sm:$0xff]
        %v1847 = vld [vmem:[%s1 + $0x3d8] sm:$0xff]
        %v1848 = vld [vmem:[%s1 + $0x3e0] sm:$0xff]
        %v1849 = vld [vmem:[%s1 + $0x3e8] sm:$0xff]
        %v1850 = vld [vmem:[%s1 + $0x3f0] sm:$0xff]
        %v1851 = vld [vmem:[%s1 + $0x3f8] sm:$0xff]
        %v1852 = vld [vmem:[%s1 + $0x400] sm:$0xff]
        %v1853 = vld [vmem:[%s1 + $0x408] sm:$0xff]
        %v1854 = vld [vmem:[%s1 + $0x410] sm:$0xff]
        %v1855 = vld [vmem:[%s1 + $0x418] sm:$0xff]
        %v1856 = vld [vmem:[%s1 + $0x420] sm:$0xff]
        %v1857 = vld [vmem:[%s1 + $0x428] sm:$0xff]
        %v1858 = vld [vmem:[%s1 + $0x430] sm:$0xff]
        %v1859 = vld [vmem:[%s1 + $0x438] sm:$0xff]
        %v1860 = vld [vmem:[%s1 + $0x440] sm:$0xff]
        %v1861 = vld [vmem:[%s1 + $0x448] sm:$0xff]
        %v1862 = vld [vmem:[%s1 + $0x450] sm:$0xff]
        %v1863 = vld [vmem:[%s1 + $0x458] sm:$0xff]
        %v1864 = vld [vmem:[%s1 + $0x460] sm:$0xff]
        %v1865 = vld [vmem:[%s1 + $0x468] sm:$0xff]
        %v1866 = vld [vmem:[%s1 + $0x470] sm:$0xff]
        %v1867 = vld [vmem:[%s1 + $0x478] sm:$0xff]
        %v1868 = vld [vmem:[%s1 + $0x480] sm:$0xff]
        %v1869 = vld [vmem:[%s1 + $0x488] sm:$0xff]
        %v1870 = vld [vmem:[%s1 + $0x490] sm:$0xff]
        %v1871 = vld [vmem:[%s1 + $0x498] sm:$0xff]
        %v1872 = vld [vmem:[%s1 + $0x4a0] sm:$0xff]
        %v1873 = vld [vmem:[%s1 + $0x4a8] sm:$0xff]
        %v1874 = vld [vmem:[%s1 + $0x4b0] sm:$0xff]
        %v1875 = vld [vmem:[%s1 + $0x4b8] sm:$0xff]
        %v1876 = vld [vmem:[%s1 + $0x4c0] sm:$0xff]
        %v1877 = vld [vmem:[%s1 + $0x4c8] sm:$0xff]
        %v1878 = vld [vmem:[%s1 + $0x4d0] sm:$0xff]
        %v1879 = vld [vmem:[%s1 + $0x4d8] sm:$0xff]
        %v1880 = vld [vmem:[%s1 + $0x4e0] sm:$0xff]
        %v1881 = vld [vmem:[%s1 + $0x4e8] sm:$0xff]
        %v1882 = vld [vmem:[%s1 + $0x4f0] sm:$0xff]
        %v1883 = vld [vmem:[%s1 + $0x4f8] sm:$0xff]
        %v1884 = vld [vmem:[#allocation2] sm:$0xff]
        %v1885 = vld [vmem:[#allocation2 + $0x8] sm:$0xff]
        %v1886 = vld [vmem:[#allocation2 + $0x10] sm:$0xff]
        %v1887 = vld [vmem:[#allocation2 + $0x18] sm:$0xff]
        %v1888 = vld [vmem:[#allocation2 + $0x20] sm:$0xff]
        %v1889 = vld [vmem:[#allocation2 + $0x28] sm:$0xff]
        %v1890 = vld [vmem:[#allocation2 + $0x30] sm:$0xff]
        %v1891 = vld [vmem:[#allocation2 + $0x38] sm:$0xff]
        %v1892 = vld [vmem:[#allocation2 + $0x40] sm:$0xff]
        %v1893 = vld [vmem:[#allocation2 + $0x48] sm:$0xff]
        %v1894 = vld [vmem:[#allocation2 + $0x50] sm:$0xff]
        %v1895 = vld [vmem:[#allocation2 + $0x58] sm:$0xff]
        %v1896 = vld [vmem:[#allocation2 + $0x60] sm:$0xff]
        %v1897 = vld [vmem:[#allocation2 + $0x68] sm:$0xff]
        %v1898 = vld [vmem:[#allocation2 + $0x70] sm:$0xff]
        %v1899 = vld [vmem:[#allocation2 + $0x78] sm:$0xff]
        %v1900 = vld [vmem:[#allocation2 + $0x80] sm:$0xff]
        %v1901 = vld [vmem:[#allocation2 + $0x88] sm:$0xff]
        %v1902 = vld [vmem:[#allocation2 + $0x90] sm:$0xff]
        %v1903 = vld [vmem:[#allocation2 + $0x98] sm:$0xff]
        %v1904 = vld [vmem:[#allocation2 + $0xa0] sm:$0xff]
        %v1905 = vld [vmem:[#allocation2 + $0xa8] sm:$0xff]
        %v1906 = vld [vmem:[#allocation2 + $0xb0] sm:$0xff]
        %v1907 = vld [vmem:[#allocation2 + $0xb8] sm:$0xff]
        %v1908 = vld [vmem:[#allocation2 + $0xc0] sm:$0xff]
        %v1909 = vld [vmem:[#allocation2 + $0xc8] sm:$0xff]
        %v1910 = vld [vmem:[#allocation2 + $0xd0] sm:$0xff]
        %v1911 = vld [vmem:[#allocation2 + $0xd8] sm:$0xff]
        %v1912 = vld [vmem:[#allocation2 + $0xe0] sm:$0xff]
        %v1913 = vld [vmem:[#allocation2 + $0xe8] sm:$0xff]
        %v1914 = vld [vmem:[#allocation2 + $0xf0] sm:$0xff]
        %v1915 = vld [vmem:[#allocation2 + $0xf8] sm:$0xff]
        %v1916 = vld [vmem:[#allocation2 + $0x100] sm:$0xff]
        %v1917 = vld [vmem:[#allocation2 + $0x108] sm:$0xff]
        %v1918 = vld [vmem:[#allocation2 + $0x110] sm:$0xff]
        %v1919 = vld [vmem:[#allocation2 + $0x118] sm:$0xff]
        %v1920 = vld [vmem:[#allocation2 + $0x120] sm:$0xff]
        %v1921 = vld [vmem:[#allocation2 + $0x128] sm:$0xff]
        %v1922 = vld [vmem:[#allocation2 + $0x130] sm:$0xff]
        %v1923 = vld [vmem:[#allocation2 + $0x138] sm:$0xff]
        %v1924 = vld [vmem:[#allocation2 + $0x140] sm:$0xff]
        %v1925 = vld [vmem:[#allocation2 + $0x148] sm:$0xff]
        %v1926 = vld [vmem:[#allocation2 + $0x150] sm:$0xff]
        %v1927 = vld [vmem:[#allocation2 + $0x158] sm:$0xff]
        %v1928 = vld [vmem:[#allocation2 + $0x160] sm:$0xff]
        %v1929 = vld [vmem:[#allocation2 + $0x168] sm:$0xff]
        %v1930 = vld [vmem:[#allocation2 + $0x170] sm:$0xff]
        %v1931 = vld [vmem:[#allocation2 + $0x178] sm:$0xff]
        %v1932 = vld [vmem:[#allocation2 + $0x180] sm:$0xff]
        %v1933 = vld [vmem:[#allocation2 + $0x188] sm:$0xff]
        %v1934 = vld [vmem:[#allocation2 + $0x190] sm:$0xff]
        %v1935 = vld [vmem:[#allocation2 + $0x198] sm:$0xff]
        %v1936 = vld [vmem:[#allocation2 + $0x1a0] sm:$0xff]
        %v1937 = vld [vmem:[#allocation2 + $0x1a8] sm:$0xff]
        %v1938 = vld [vmem:[#allocation2 + $0x1b0] sm:$0xff]
        %v1939 = vld [vmem:[#allocation2 + $0x1b8] sm:$0xff]
        %v1940 = vld [vmem:[#allocation2 + $0x1c0] sm:$0xff]
        %v1941 = vld [vmem:[#allocation2 + $0x1c8] sm:$0xff]
        %v1942 = vld [vmem:[#allocation2 + $0x1d0] sm:$0xff]
        %v1943 = vld [vmem:[#allocation2 + $0x1d8] sm:$0xff]
        %v1944 = vld [vmem:[#allocation2 + $0x1e0] sm:$0xff]
        %v1945 = vld [vmem:[#allocation2 + $0x1e8] sm:$0xff]
        %v1946 = vld [vmem:[#allocation2 + $0x1f0] sm:$0xff]
        %v1947 = vld [vmem:[#allocation2 + $0x1f8] sm:$0xff]
        %v1948 = vld [vmem:[#allocation2 + $0x200] sm:$0xff]
        %v1949 = vld [vmem:[#allocation2 + $0x208] sm:$0xff]
        %v1950 = vld [vmem:[#allocation2 + $0x210] sm:$0xff]
        %v1951 = vld [vmem:[#allocation2 + $0x218] sm:$0xff]
        %v1952 = vld [vmem:[#allocation2 + $0x220] sm:$0xff]
        %v1953 = vld [vmem:[#allocation2 + $0x228] sm:$0xff]
        %v1954 = vld [vmem:[#allocation2 + $0x230] sm:$0xff]
        %v1955 = vld [vmem:[#allocation2 + $0x238] sm:$0xff]
        %v1956 = vld [vmem:[#allocation2 + $0x240] sm:$0xff]
        %v1957 = vld [vmem:[#allocation2 + $0x248] sm:$0xff]
        %v1958 = vld [vmem:[#allocation2 + $0x250] sm:$0xff]
        %v1959 = vld [vmem:[#allocation2 + $0x258] sm:$0xff]
        %v1960 = vld [vmem:[#allocation2 + $0x260] sm:$0xff]
        %v1961 = vld [vmem:[#allocation2 + $0x268] sm:$0xff]
        %v1962 = vld [vmem:[#allocation2 + $0x270] sm:$0xff]
        %v1963 = vld [vmem:[#allocation2 + $0x278] sm:$0xff]
        %v1964 = vld [vmem:[#allocation2 + $0x280] sm:$0xff]
        %v1965 = vld [vmem:[#allocation2 + $0x288] sm:$0xff]
        %v1966 = vld [vmem:[#allocation2 + $0x290] sm:$0xff]
        %v1967 = vld [vmem:[#allocation2 + $0x298] sm:$0xff]
        %v1968 = vld [vmem:[#allocation2 + $0x2a0] sm:$0xff]
        %v1969 = vld [vmem:[#allocation2 + $0x2a8] sm:$0xff]
        %v1970 = vld [vmem:[#allocation2 + $0x2b0] sm:$0xff]
        %v1971 = vld [vmem:[#allocation2 + $0x2b8] sm:$0xff]
        %v1972 = vld [vmem:[#allocation2 + $0x2c0] sm:$0xff]
        %v1973 = vld [vmem:[#allocation2 + $0x2c8] sm:$0xff]
        %v1974 = vld [vmem:[#allocation2 + $0x2d0] sm:$0xff]
        %v1975 = vld [vmem:[#allocation2 + $0x2d8] sm:$0xff]
        %v1976 = vld [vmem:[#allocation2 + $0x2e0] sm:$0xff]
        %v1977 = vld [vmem:[#allocation2 + $0x2e8] sm:$0xff]
        %v1978 = vld [vmem:[#allocation2 + $0x2f0] sm:$0xff]
        %v1979 = vld [vmem:[#allocation2 + $0x2f8] sm:$0xff]
        %v1980 = vld [vmem:[#allocation2 + $0x300] sm:$0xff]
        %v1981 = vld [vmem:[#allocation2 + $0x308] sm:$0xff]
        %v1982 = vld [vmem:[#allocation2 + $0x310] sm:$0xff]
        %v1983 = vld [vmem:[#allocation2 + $0x318] sm:$0xff]
        %v1984 = vld [vmem:[#allocation2 + $0x320] sm:$0xff]
        %v1985 = vld [vmem:[#allocation2 + $0x328] sm:$0xff]
        %v1986 = vld [vmem:[#allocation2 + $0x330] sm:$0xff]
        %v1987 = vld [vmem:[#allocation2 + $0x338] sm:$0xff]
        %v1988 = vld [vmem:[#allocation2 + $0x340] sm:$0xff]
        %v1989 = vld [vmem:[#allocation2 + $0x348] sm:$0xff]
        %v1990 = vld [vmem:[#allocation2 + $0x350] sm:$0xff]
        %v1991 = vld [vmem:[#allocation2 + $0x358] sm:$0xff]
        %v1992 = vld [vmem:[#allocation2 + $0x360] sm:$0xff]
        %v1993 = vld [vmem:[#allocation2 + $0x368] sm:$0xff]
        %v1994 = vld [vmem:[#allocation2 + $0x370] sm:$0xff]
        %v1995 = vld [vmem:[#allocation2 + $0x378] sm:$0xff]
        %v1996 = vld [vmem:[#allocation2 + $0x380] sm:$0xff]
        %v1997 = vld [vmem:[#allocation2 + $0x388] sm:$0xff]
        %v1998 = vld [vmem:[#allocation2 + $0x390] sm:$0xff]
        %v1999 = vld [vmem:[#allocation2 + $0x398] sm:$0xff]
        %v2000 = vld [vmem:[#allocation2 + $0x3a0] sm:$0xff]
        %v2001 = vld [vmem:[#allocation2 + $0x3a8] sm:$0xff]
        %v2002 = vld [vmem:[#allocation2 + $0x3b0] sm:$0xff]
        %v2003 = vld [vmem:[#allocation2 + $0x3b8] sm:$0xff]
        %v2004 = vld [vmem:[#allocation2 + $0x3c0] sm:$0xff]
        %v2005 = vld [vmem:[#allocation2 + $0x3c8] sm:$0xff]
        %v2006 = vld [vmem:[#allocation2 + $0x3d0] sm:$0xff]
        %v2007 = vld [vmem:[#allocation2 + $0x3d8] sm:$0xff]
        %v2008 = vld [vmem:[#allocation2 + $0x3e0] sm:$0xff]
        %v2009 = vld [vmem:[#allocation2 + $0x3e8] sm:$0xff]
        %v2010 = vld [vmem:[#allocation2 + $0x3f0] sm:$0xff]
        %v2011 = vld [vmem:[#allocation2 + $0x3f8] sm:$0xff]
        %v2012 = vld [vmem:[#allocation2 + $0x400] sm:$0xff]
        %v2013 = vld [vmem:[#allocation2 + $0x408] sm:$0xff]
        %v2014 = vld [vmem:[#allocation2 + $0x410] sm:$0xff]
        %v2015 = vld [vmem:[#allocation2 + $0x418] sm:$0xff]
        %v2016 = vld [vmem:[#allocation2 + $0x420] sm:$0xff]
        %v2017 = vld [vmem:[#allocation2 + $0x428] sm:$0xff]
        %v2018 = vld [vmem:[#allocation2 + $0x430] sm:$0xff]
        %v2019 = vld [vmem:[#allocation2 + $0x438] sm:$0xff]
        %v2020 = vld [vmem:[#allocation2 + $0x440] sm:$0xff]
        %v2021 = vld [vmem:[#allocation2 + $0x448] sm:$0xff]
        %v2022 = vld [vmem:[#allocation2 + $0x450] sm:$0xff]
        %v2023 = vld [vmem:[#allocation2 + $0x458] sm:$0xff]
        %v2024 = vld [vmem:[#allocation2 + $0x460] sm:$0xff]
        %v2025 = vld [vmem:[#allocation2 + $0x468] sm:$0xff]
        %v2026 = vld [vmem:[#allocation2 + $0x470] sm:$0xff]
        %v2027 = vld [vmem:[#allocation2 + $0x478] sm:$0xff]
        %v2028 = vld [vmem:[%s2] sm:$0xff]
        %v2029 = vld [vmem:[%s2 + $0x8] sm:$0xff]
        %v2030 = vld [vmem:[%s2 + $0x10] sm:$0xff]
        %v2031 = vld [vmem:[%s2 + $0x18] sm:$0xff]
        %v2032 = vld [vmem:[%s2 + $0x20] sm:$0xff]
        %v2033 = vld [vmem:[%s2 + $0x28] sm:$0xff]
        %v2034 = vld [vmem:[%s2 + $0x30] sm:$0xff]
        %v2035 = vld [vmem:[%s2 + $0x38] sm:$0xff]
        %v2036 = vld [vmem:[%s2 + $0x40] sm:$0xff]
        %v2037 = vld [vmem:[%s2 + $0x48] sm:$0xff]
        %v2038 = vld [vmem:[%s2 + $0x50] sm:$0xff]
        %v2039 = vld [vmem:[%s2 + $0x58] sm:$0xff]
        %v2040 = vld [vmem:[%s2 + $0x60] sm:$0xff]
        %v2041 = vld [vmem:[%s2 + $0x68] sm:$0xff]
        %v2042 = vld [vmem:[%s2 + $0x70] sm:$0xff]
        %v2043 = vld [vmem:[%s2 + $0x78] sm:$0xff]
        %v2044 = vld [vmem:[%s2 + $0x80] sm:$0xff]
        %v2045 = vld [vmem:[%s2 + $0x88] sm:$0xff]
        %v2046 = vld [vmem:[%s2 + $0x90] sm:$0xff]
        %v2047 = vld [vmem:[%s2 + $0x98] sm:$0xff]
        %v2048 = vld [vmem:[%s2 + $0xa0] sm:$0xff]
        %v2049 = vld [vmem:[%s2 + $0xa8] sm:$0xff]
        %v2050 = vld [vmem:[%s2 + $0xb0] sm:$0xff]
        %v2051 = vld [vmem:[%s2 + $0xb8] sm:$0xff]
        %v2052 = vld [vmem:[%s2 + $0xc0] sm:$0xff]
        %v2053 = vld [vmem:[%s2 + $0xc8] sm:$0xff]
        %v2054 = vld [vmem:[%s2 + $0xd0] sm:$0xff]
        %v2055 = vld [vmem:[%s2 + $0xd8] sm:$0xff]
        %v2056 = vld [vmem:[%s2 + $0xe0] sm:$0xff]
        %v2057 = vld [vmem:[%s2 + $0xe8] sm:$0xff]
        %v2058 = vld [vmem:[%s2 + $0xf0] sm:$0xff]
        %v2059 = vld [vmem:[%s2 + $0xf8] sm:$0xff]
        %2061 = vset.pattern.permute.xlu0 0
        %2062 = vperm.xlu0 %2061, %v2028
        %v2063 = vpop.permute.xlu0 %2062
        %2066 = vset.pattern.permute.xlu0 0
        %2067 = vperm.xlu0 %2066, %v2029
        %v2068 = vpop.permute.xlu0 %2067
        %2071 = vset.pattern.permute.xlu0 0
        %2072 = vperm.xlu0 %2071, %v2030
        %v2073 = vpop.permute.xlu0 %2072
        %2076 = vset.pattern.permute.xlu0 0
        %2077 = vperm.xlu0 %2076, %v2031
        %v2078 = vpop.permute.xlu0 %2077
        %2081 = vset.pattern.permute.xlu0 0
        %2082 = vperm.xlu0 %2081, %v2032
        %v2083 = vpop.permute.xlu0 %2082
        %2086 = vset.pattern.permute.xlu0 0
        %2087 = vperm.xlu0 %2086, %v2033
        %v2088 = vpop.permute.xlu0 %2087
        %2091 = vset.pattern.permute.xlu0 0
        %2092 = vperm.xlu0 %2091, %v2034
        %v2093 = vpop.permute.xlu0 %2092
        %2096 = vset.pattern.permute.xlu0 0
        %2097 = vperm.xlu0 %2096, %v2035
        %v2098 = vpop.permute.xlu0 %2097
        %2101 = vset.pattern.permute.xlu0 0
        %2102 = vperm.xlu0 %2101, %v2036
        %v2103 = vpop.permute.xlu0 %2102
        %2106 = vset.pattern.permute.xlu0 0
        %2107 = vperm.xlu0 %2106, %v2037
        %v2108 = vpop.permute.xlu0 %2107
        %2111 = vset.pattern.permute.xlu0 0
        %2112 = vperm.xlu0 %2111, %v2038
        %v2113 = vpop.permute.xlu0 %2112
        %2116 = vset.pattern.permute.xlu0 0
        %2117 = vperm.xlu0 %2116, %v2039
        %v2118 = vpop.permute.xlu0 %2117
        %2121 = vset.pattern.permute.xlu0 0
        %2122 = vperm.xlu0 %2121, %v2040
        %v2123 = vpop.permute.xlu0 %2122
        %2126 = vset.pattern.permute.xlu0 0
        %2127 = vperm.xlu0 %2126, %v2041
        %v2128 = vpop.permute.xlu0 %2127
        %2131 = vset.pattern.permute.xlu0 0
        %2132 = vperm.xlu0 %2131, %v2042
        %v2133 = vpop.permute.xlu0 %2132
        %2136 = vset.pattern.permute.xlu0 0
        %2137 = vperm.xlu0 %2136, %v2043
        %v2138 = vpop.permute.xlu0 %2137
        %2141 = vset.pattern.permute.xlu0 0
        %2142 = vperm.xlu0 %2141, %v2044
        %v2143 = vpop.permute.xlu0 %2142
        %2146 = vset.pattern.permute.xlu0 0
        %2147 = vperm.xlu0 %2146, %v2045
        %v2148 = vpop.permute.xlu0 %2147
        %2151 = vset.pattern.permute.xlu0 0
        %2152 = vperm.xlu0 %2151, %v2046
        %v2153 = vpop.permute.xlu0 %2152
        %2156 = vset.pattern.permute.xlu0 0
        %2157 = vperm.xlu0 %2156, %v2047
        %v2158 = vpop.permute.xlu0 %2157
        %2161 = vset.pattern.permute.xlu0 0
        %2162 = vperm.xlu0 %2161, %v2048
        %v2163 = vpop.permute.xlu0 %2162
        %2166 = vset.pattern.permute.xlu0 0
        %2167 = vperm.xlu0 %2166, %v2049
        %v2168 = vpop.permute.xlu0 %2167
        %2171 = vset.pattern.permute.xlu0 0
        %2172 = vperm.xlu0 %2171, %v2050
        %v2173 = vpop.permute.xlu0 %2172
        %2176 = vset.pattern.permute.xlu0 0
        %2177 = vperm.xlu0 %2176, %v2051
        %v2178 = vpop.permute.xlu0 %2177
        %2181 = vset.pattern.permute.xlu0 0
        %2182 = vperm.xlu0 %2181, %v2052
        %v2183 = vpop.permute.xlu0 %2182
        %2186 = vset.pattern.permute.xlu0 0
        %2187 = vperm.xlu0 %2186, %v2053
        %v2188 = vpop.permute.xlu0 %2187
        %2191 = vset.pattern.permute.xlu0 0
        %2192 = vperm.xlu0 %2191, %v2054
        %v2193 = vpop.permute.xlu0 %2192
        %2196 = vset.pattern.permute.xlu0 0
        %2197 = vperm.xlu0 %2196, %v2055
        %v2198 = vpop.permute.xlu0 %2197
        %2201 = vset.pattern.permute.xlu0 0
        %2202 = vperm.xlu0 %2201, %v2056
        %v2203 = vpop.permute.xlu0 %2202
        %2206 = vset.pattern.permute.xlu0 0
        %2207 = vperm.xlu0 %2206, %v2057
        %v2208 = vpop.permute.xlu0 %2207
        %2211 = vset.pattern.permute.xlu0 0
        %2212 = vperm.xlu0 %2211, %v2058
        %v2213 = vpop.permute.xlu0 %2212
        %2216 = vset.pattern.permute.xlu0 0
        %2217 = vperm.xlu0 %2216, %v2059
        %v2218 = vpop.permute.xlu0 %2217
        %vm2220 = vcmask 523264
        %v2222 = vsel %vm2220, %v1728, 0
        %v2225 = vsel %vm2220, %v1733, 0
        %v2228 = vsel %vm2220, %v1738, 0
        %v2231 = vsel %vm2220, %v1743, 0
        %v2234 = vsel %vm2220, %v1748, 0
        %v2237 = vsel %vm2220, %v1753, 0
        %v2240 = vsel %vm2220, %v1758, 0
        %v2243 = vsel %vm2220, %v1763, 0
        %v2246 = vsel %vm2220, %v1768, 0
        %v2249 = vsel %vm2220, %v1773, 0
        %v2252 = vsel %vm2220, %v1778, 0
        %v2255 = vsel %vm2220, %v1783, 0
        %v2258 = vsel %vm2220, %v1788, 0
        %v2261 = vsel %vm2220, %v1793, 0
        %v2264 = vsel %vm2220, %v1798, 0
        %v2267 = vsel %vm2220, %v1803, 0
        %v2270 = vsel %vm2220, %v1808, 0
        %v2273 = vsel %vm2220, %v1813, 0
        %v2276 = vsel %vm2220, %v1818, 0
        %v2279 = vsel %vm2220, %v1823, 0
        %v2282 = vsel %vm2220, %v1828, 0
        %v2285 = vsel %vm2220, %v1833, 0
        %v2288 = vsel %vm2220, %v1838, 0
        %v2291 = vsel %vm2220, %v1843, 0
        %v2294 = vsel %vm2220, %v1848, 0
        %v2297 = vsel %vm2220, %v1853, 0
        %v2300 = vsel %vm2220, %v1858, 0
        %v2303 = vsel %vm2220, %v1863, 0
        %v2306 = vsel %vm2220, %v1868, 0
        %v2309 = vsel %vm2220, %v1873, 0
        %v2312 = vsel %vm2220, %v1878, 0
        %v2315 = vsel %vm2220, %v1883, 0
        %2317 = vmatprep.subr.mxu0 %v1915
        %2318 = vmatpush1.msra.mxu0 %v1914
        %2319 = vmatprep.subr.mxu0 %v1913
        %2320 = vmatpush1.msra.mxu0 %v1912
        %2321 = vmatprep.subr.mxu0 %v1911
        %2322 = vmatpush1.msra.mxu0 %v1910
        %2323 = vmatprep.subr.mxu0 %v1909
        %2324 = vmatpush1.msra.mxu0 %v1908
        %2325 = vmatprep.subr.mxu0 %v1907
        %2326 = vmatpush1.msra.mxu0 %v1906
        %2327 = vmatprep.subr.mxu0 %v1905
        %2328 = vmatpush1.msra.mxu0 %v1904
        %2329 = vmatprep.subr.mxu0 %v1903
        %2330 = vmatpush1.msra.mxu0 %v1902
        %2331 = vmatprep.subr.mxu0 %v1901
        %2332 = vmatpush1.msra.mxu0 %v1900
        %2333 = vmatprep.subr.mxu0 %v1899
        %2334 = vmatpush1.msra.mxu0 %v1898
        %2335 = vmatprep.subr.mxu0 %v1897
        %2336 = vmatpush1.msra.mxu0 %v1896
        %2337 = vmatprep.subr.mxu0 %v1895
        %2338 = vmatpush1.msra.mxu0 %v1894
        %2339 = vmatprep.subr.mxu0 %v1893
        %2340 = vmatpush1.msra.mxu0 %v1892
        %2341 = vmatprep.subr.mxu0 %v1891
        %2342 = vmatpush1.msra.mxu0 %v1890
        %2343 = vmatprep.subr.mxu0 %v1889
        %2344 = vmatpush1.msra.mxu0 %v1888
        %2345 = vmatprep.subr.mxu0 %v1887
        %2346 = vmatpush1.msra.mxu0 %v1886
        %2347 = vmatprep.subr.mxu0 %v1885
        %2348 = vmatpush1.msra.mxu0 %v1884
        %2349 = vmatprep.subr.mxu0 %v1947
        %2350 = vmatpush2.msra.mxu0 %v1946
        %2351 = vmatprep.subr.mxu0 %v1945
        %2352 = vmatpush2.msra.mxu0 %v1944
        %2353 = vmatprep.subr.mxu0 %v1943
        %2354 = vmatpush2.msra.mxu0 %v1942
        %2355 = vmatprep.subr.mxu0 %v1941
        %2356 = vmatpush2.msra.mxu0 %v1940
        %2357 = vmatprep.subr.mxu0 %v1939
        %2358 = vmatpush2.msra.mxu0 %v1938
        %2359 = vmatprep.subr.mxu0 %v1937
        %2360 = vmatpush2.msra.mxu0 %v1936
        %2361 = vmatprep.subr.mxu0 %v1935
        %2362 = vmatpush2.msra.mxu0 %v1934
        %2363 = vmatprep.subr.mxu0 %v1933
        %2364 = vmatpush2.msra.mxu0 %v1932
        %2365 = vmatprep.subr.mxu0 %v1931
        %2366 = vmatpush2.msra.mxu0 %v1930
        %2367 = vmatprep.subr.mxu0 %v1929
        %2368 = vmatpush2.msra.mxu0 %v1928
        %2369 = vmatprep.subr.mxu0 %v1927
        %2370 = vmatpush2.msra.mxu0 %v1926
        %2371 = vmatprep.subr.mxu0 %v1925
        %2372 = vmatpush2.msra.mxu0 %v1924
        %2373 = vmatprep.subr.mxu0 %v1923
        %2374 = vmatpush2.msra.mxu0 %v1922
        %2375 = vmatprep.subr.mxu0 %v1921
        %2376 = vmatpush2.msra.mxu0 %v1920
        %2377 = vmatprep.subr.mxu0 %v1919
        %2378 = vmatpush2.msra.mxu0 %v1918
        %2379 = vmatprep.subr.mxu0 %v1917
        %2380 = vmatpush2.msra.mxu0 %v1916
        %2381 = vmatprep.mubr.f32.mxu0 %v1725
        %2382 = vmatmul.mubr.f32.gmra.mxu0 %v1724
        %v2383 = vpop.f32.mrf.mxu0
        %v2384 = vadd.f32 %v2063, %v2383
        %v2385 = vpop.f32.mrf.mxu0
        %v2386 = vadd.f32 %v2063, %v2385
        %2387 = vmatprep.mubr.f32.mxu0 %v1730
        %2388 = vmatmul.mubr.f32.gmra.mxu0 %v1729
        %v2389 = vpop.f32.mrf.mxu0
        %v2390 = vadd.f32 %v2068, %v2389
        %v2391 = vpop.f32.mrf.mxu0
        %v2392 = vadd.f32 %v2068, %v2391
        %2393 = vmatprep.mubr.f32.mxu0 %v1735
        %2394 = vmatmul.mubr.f32.gmra.mxu0 %v1734
        %v2395 = vpop.f32.mrf.mxu0
        %v2396 = vadd.f32 %v2073, %v2395
        %v2397 = vpop.f32.mrf.mxu0
        %v2398 = vadd.f32 %v2073, %v2397
        %2399 = vmatprep.mubr.f32.mxu0 %v1740
        %2400 = vmatmul.mubr.f32.gmra.mxu0 %v1739
        %v2401 = vpop.f32.mrf.mxu0
        %v2402 = vadd.f32 %v2078, %v2401
        %v2403 = vpop.f32.mrf.mxu0
        %v2404 = vadd.f32 %v2078, %v2403
        %2405 = vmatprep.mubr.f32.mxu0 %v1745
        %2406 = vmatmul.mubr.f32.gmra.mxu0 %v1744
        %v2407 = vpop.f32.mrf.mxu0
        %v2408 = vadd.f32 %v2083, %v2407
        %v2409 = vpop.f32.mrf.mxu0
        %v2410 = vadd.f32 %v2083, %v2409
        %2411 = vmatprep.mubr.f32.mxu0 %v1750
        %2412 = vmatmul.mubr.f32.gmra.mxu0 %v1749
        %v2413 = vpop.f32.mrf.mxu0
        %v2414 = vadd.f32 %v2088, %v2413
        %v2415 = vpop.f32.mrf.mxu0
        %v2416 = vadd.f32 %v2088, %v2415
        %2417 = vmatprep.mubr.f32.mxu0 %v1755
        %2418 = vmatmul.mubr.f32.gmra.mxu0 %v1754
        %v2419 = vpop.f32.mrf.mxu0
        %v2420 = vadd.f32 %v2093, %v2419
        %v2421 = vpop.f32.mrf.mxu0
        %v2422 = vadd.f32 %v2093, %v2421
        %2423 = vmatprep.mubr.f32.mxu0 %v1760
        %2424 = vmatmul.mubr.f32.gmra.mxu0 %v1759
        %v2425 = vpop.f32.mrf.mxu0
        %v2426 = vadd.f32 %v2098, %v2425
        %v2427 = vpop.f32.mrf.mxu0
        %v2428 = vadd.f32 %v2098, %v2427
        %2429 = vmatprep.mubr.f32.mxu0 %v1765
        %2430 = vmatmul.mubr.f32.gmra.mxu0 %v1764
        %v2431 = vpop.f32.mrf.mxu0
        %v2432 = vadd.f32 %v2103, %v2431
        %v2433 = vpop.f32.mrf.mxu0
        %v2434 = vadd.f32 %v2103, %v2433
        %2435 = vmatprep.mubr.f32.mxu0 %v1770
        %2436 = vmatmul.mubr.f32.gmra.mxu0 %v1769
        %v2437 = vpop.f32.mrf.mxu0
        %v2438 = vadd.f32 %v2108, %v2437
        %v2439 = vpop.f32.mrf.mxu0
        %v2440 = vadd.f32 %v2108, %v2439
        %2441 = vmatprep.mubr.f32.mxu0 %v1775
        %2442 = vmatmul.mubr.f32.gmra.mxu0 %v1774
        %v2443 = vpop.f32.mrf.mxu0
        %v2444 = vadd.f32 %v2113, %v2443
        %v2445 = vpop.f32.mrf.mxu0
        %v2446 = vadd.f32 %v2113, %v2445
        %2447 = vmatprep.mubr.f32.mxu0 %v1780
        %2448 = vmatmul.mubr.f32.gmra.mxu0 %v1779
        %v2449 = vpop.f32.mrf.mxu0
        %v2450 = vadd.f32 %v2118, %v2449
        %v2451 = vpop.f32.mrf.mxu0
        %v2452 = vadd.f32 %v2118, %v2451
        %2453 = vmatprep.mubr.f32.mxu0 %v1785
        %2454 = vmatmul.mubr.f32.gmra.mxu0 %v1784
        %v2455 = vpop.f32.mrf.mxu0
        %v2456 = vadd.f32 %v2123, %v2455
        %v2457 = vpop.f32.mrf.mxu0
        %v2458 = vadd.f32 %v2123, %v2457
        %2459 = vmatprep.mubr.f32.mxu0 %v1790
        %2460 = vmatmul.mubr.f32.gmra.mxu0 %v1789
        %v2461 = vpop.f32.mrf.mxu0
        %v2462 = vadd.f32 %v2128, %v2461
        %v2463 = vpop.f32.mrf.mxu0
        %v2464 = vadd.f32 %v2128, %v2463
        %2465 = vmatprep.mubr.f32.mxu0 %v1795
        %2466 = vmatmul.mubr.f32.gmra.mxu0 %v1794
        %v2467 = vpop.f32.mrf.mxu0
        %v2468 = vadd.f32 %v2133, %v2467
        %v2469 = vpop.f32.mrf.mxu0
        %v2470 = vadd.f32 %v2133, %v2469
        %2471 = vmatprep.mubr.f32.mxu0 %v1800
        %2472 = vmatmul.mubr.f32.gmra.mxu0 %v1799
        %v2473 = vpop.f32.mrf.mxu0
        %v2474 = vadd.f32 %v2138, %v2473
        %v2475 = vpop.f32.mrf.mxu0
        %v2476 = vadd.f32 %v2138, %v2475
        %2477 = vmatprep.mubr.f32.mxu0 %v1805
        %2478 = vmatmul.mubr.f32.gmra.mxu0 %v1804
        %v2479 = vpop.f32.mrf.mxu0
        %v2480 = vadd.f32 %v2143, %v2479
        %v2481 = vpop.f32.mrf.mxu0
        %v2482 = vadd.f32 %v2143, %v2481
        %2483 = vmatprep.mubr.f32.mxu0 %v1810
        %2484 = vmatmul.mubr.f32.gmra.mxu0 %v1809
        %v2485 = vpop.f32.mrf.mxu0
        %v2486 = vadd.f32 %v2148, %v2485
        %v2487 = vpop.f32.mrf.mxu0
        %v2488 = vadd.f32 %v2148, %v2487
        %2489 = vmatprep.mubr.f32.mxu0 %v1815
        %2490 = vmatmul.mubr.f32.gmra.mxu0 %v1814
        %v2491 = vpop.f32.mrf.mxu0
        %v2492 = vadd.f32 %v2153, %v2491
        %v2493 = vpop.f32.mrf.mxu0
        %v2494 = vadd.f32 %v2153, %v2493
        %2495 = vmatprep.mubr.f32.mxu0 %v1820
        %2496 = vmatmul.mubr.f32.gmra.mxu0 %v1819
        %v2497 = vpop.f32.mrf.mxu0
        %v2498 = vadd.f32 %v2158, %v2497
        %v2499 = vpop.f32.mrf.mxu0
        %v2500 = vadd.f32 %v2158, %v2499
        %2501 = vmatprep.mubr.f32.mxu0 %v1825
        %2502 = vmatmul.mubr.f32.gmra.mxu0 %v1824
        %v2503 = vpop.f32.mrf.mxu0
        %v2504 = vadd.f32 %v2163, %v2503
        %v2505 = vpop.f32.mrf.mxu0
        %v2506 = vadd.f32 %v2163, %v2505
        %2507 = vmatprep.mubr.f32.mxu0 %v1830
        %2508 = vmatmul.mubr.f32.gmra.mxu0 %v1829
        %v2509 = vpop.f32.mrf.mxu0
        %v2510 = vadd.f32 %v2168, %v2509
        %v2511 = vpop.f32.mrf.mxu0
        %v2512 = vadd.f32 %v2168, %v2511
        %2513 = vmatprep.mubr.f32.mxu0 %v1835
        %2514 = vmatmul.mubr.f32.gmra.mxu0 %v1834
        %v2515 = vpop.f32.mrf.mxu0
        %v2516 = vadd.f32 %v2173, %v2515
        %v2517 = vpop.f32.mrf.mxu0
        %v2518 = vadd.f32 %v2173, %v2517
        %2519 = vmatprep.mubr.f32.mxu0 %v1840
        %2520 = vmatmul.mubr.f32.gmra.mxu0 %v1839
        %v2521 = vpop.f32.mrf.mxu0
        %v2522 = vadd.f32 %v2178, %v2521
        %v2523 = vpop.f32.mrf.mxu0
        %v2524 = vadd.f32 %v2178, %v2523
        %2525 = vmatprep.mubr.f32.mxu0 %v1845
        %2526 = vmatmul.mubr.f32.gmra.mxu0 %v1844
        %v2527 = vpop.f32.mrf.mxu0
        %v2528 = vadd.f32 %v2183, %v2527
        %v2529 = vpop.f32.mrf.mxu0
        %v2530 = vadd.f32 %v2183, %v2529
        %2531 = vmatprep.mubr.f32.mxu0 %v1850
        %2532 = vmatmul.mubr.f32.gmra.mxu0 %v1849
        %v2533 = vpop.f32.mrf.mxu0
        %v2534 = vadd.f32 %v2188, %v2533
        %v2535 = vpop.f32.mrf.mxu0
        %v2536 = vadd.f32 %v2188, %v2535
        %2537 = vmatprep.mubr.f32.mxu0 %v1855
        %2538 = vmatmul.mubr.f32.gmra.mxu0 %v1854
        %v2539 = vpop.f32.mrf.mxu0
        %v2540 = vadd.f32 %v2193, %v2539
        %v2541 = vpop.f32.mrf.mxu0
        %v2542 = vadd.f32 %v2193, %v2541
        %2543 = vmatprep.mubr.f32.mxu0 %v1860
        %2544 = vmatmul.mubr.f32.gmra.mxu0 %v1859
        %v2545 = vpop.f32.mrf.mxu0
        %v2546 = vadd.f32 %v2198, %v2545
        %v2547 = vpop.f32.mrf.mxu0
        %v2548 = vadd.f32 %v2198, %v2547
        %2549 = vmatprep.mubr.f32.mxu0 %v1865
        %2550 = vmatmul.mubr.f32.gmra.mxu0 %v1864
        %v2551 = vpop.f32.mrf.mxu0
        %v2552 = vadd.f32 %v2203, %v2551
        %v2553 = vpop.f32.mrf.mxu0
        %v2554 = vadd.f32 %v2203, %v2553
        %2555 = vmatprep.mubr.f32.mxu0 %v1870
        %2556 = vmatmul.mubr.f32.gmra.mxu0 %v1869
        %v2557 = vpop.f32.mrf.mxu0
        %v2558 = vadd.f32 %v2208, %v2557
        %v2559 = vpop.f32.mrf.mxu0
        %v2560 = vadd.f32 %v2208, %v2559
        %2561 = vmatprep.mubr.f32.mxu0 %v1875
        %2562 = vmatmul.mubr.f32.gmra.mxu0 %v1874
        %v2563 = vpop.f32.mrf.mxu0
        %v2564 = vadd.f32 %v2213, %v2563
        %v2565 = vpop.f32.mrf.mxu0
        %v2566 = vadd.f32 %v2213, %v2565
        %2567 = vmatprep.mubr.f32.mxu0 %v1880
        %2568 = vmatmul.mubr.f32.gmra.mxu0 %v1879
        %v2569 = vpop.f32.mrf.mxu0
        %v2570 = vadd.f32 %v2218, %v2569
        %v2571 = vpop.f32.mrf.mxu0
        %v2572 = vadd.f32 %v2218, %v2571
        %2573 = vdwg.mxu0
        %2574 = vmatprep.subr.mxu0 %v1979
        %2575 = vmatpush1.msra.mxu0 %v1978
        %2576 = vmatprep.subr.mxu0 %v1977
        %2577 = vmatpush1.msra.mxu0 %v1976
        %2578 = vmatprep.subr.mxu0 %v1975
        %2579 = vmatpush1.msra.mxu0 %v1974
        %2580 = vmatprep.subr.mxu0 %v1973
        %2581 = vmatpush1.msra.mxu0 %v1972
        %2582 = vmatprep.subr.mxu0 %v1971
        %2583 = vmatpush1.msra.mxu0 %v1970
        %2584 = vmatprep.subr.mxu0 %v1969
        %2585 = vmatpush1.msra.mxu0 %v1968
        %2586 = vmatprep.subr.mxu0 %v1967
        %2587 = vmatpush1.msra.mxu0 %v1966
        %2588 = vmatprep.subr.mxu0 %v1965
        %2589 = vmatpush1.msra.mxu0 %v1964
        %2590 = vmatprep.subr.mxu0 %v1963
        %2591 = vmatpush1.msra.mxu0 %v1962
        %2592 = vmatprep.subr.mxu0 %v1961
        %2593 = vmatpush1.msra.mxu0 %v1960
        %2594 = vmatprep.subr.mxu0 %v1959
        %2595 = vmatpush1.msra.mxu0 %v1958
        %2596 = vmatprep.subr.mxu0 %v1957
        %2597 = vmatpush1.msra.mxu0 %v1956
        %2598 = vmatprep.subr.mxu0 %v1955
        %2599 = vmatpush1.msra.mxu0 %v1954
        %2600 = vmatprep.subr.mxu0 %v1953
        %2601 = vmatpush1.msra.mxu0 %v1952
        %2602 = vmatprep.subr.mxu0 %v1951
        %2603 = vmatpush1.msra.mxu0 %v1950
        %2604 = vmatprep.subr.mxu0 %v1949
        %2605 = vmatpush1.msra.mxu0 %v1948
        %2606 = vmatprep.subr.mxu0 %v2011
        %2607 = vmatpush2.msra.mxu0 %v2010
        %2608 = vmatprep.subr.mxu0 %v2009
        %2609 = vmatpush2.msra.mxu0 %v2008
        %2610 = vmatprep.subr.mxu0 %v2007
        %2611 = vmatpush2.msra.mxu0 %v2006
        %2612 = vmatprep.subr.mxu0 %v2005
        %2613 = vmatpush2.msra.mxu0 %v2004
        %2614 = vmatprep.subr.mxu0 %v2003
        %2615 = vmatpush2.msra.mxu0 %v2002
        %2616 = vmatprep.subr.mxu0 %v2001
        %2617 = vmatpush2.msra.mxu0 %v2000
        %2618 = vmatprep.subr.mxu0 %v1999
        %2619 = vmatpush2.msra.mxu0 %v1998
        %2620 = vmatprep.subr.mxu0 %v1997
        %2621 = vmatpush2.msra.mxu0 %v1996
        %2622 = vmatprep.subr.mxu0 %v1995
        %2623 = vmatpush2.msra.mxu0 %v1994
        %2624 = vmatprep.subr.mxu0 %v1993
        %2625 = vmatpush2.msra.mxu0 %v1992
        %2626 = vmatprep.subr.mxu0 %v1991
        %2627 = vmatpush2.msra.mxu0 %v1990
        %2628 = vmatprep.subr.mxu0 %v1989
        %2629 = vmatpush2.msra.mxu0 %v1988
        %2630 = vmatprep.subr.mxu0 %v1987
        %2631 = vmatpush2.msra.mxu0 %v1986
        %2632 = vmatprep.subr.mxu0 %v1985
        %2633 = vmatpush2.msra.mxu0 %v1984
        %2634 = vmatprep.subr.mxu0 %v1983
        %2635 = vmatpush2.msra.mxu0 %v1982
        %2636 = vmatprep.subr.mxu0 %v1981
        %2637 = vmatpush2.msra.mxu0 %v1980
        %2638 = vmatprep.mubr.f32.mxu0 %v1727
        %2639 = vmatmul.mubr.f32.gmra.mxu0 %v1726
        %v2640 = vpop.f32.mrf.mxu0
        %v2641 = vadd.f32 %v2384, %v2640
        %v2642 = vpop.f32.mrf.mxu0
        %v2643 = vadd.f32 %v2386, %v2642
        %2644 = vmatprep.mubr.f32.mxu0 %v1732
        %2645 = vmatmul.mubr.f32.gmra.mxu0 %v1731
        %v2646 = vpop.f32.mrf.mxu0
        %v2647 = vadd.f32 %v2390, %v2646
        %v2648 = vpop.f32.mrf.mxu0
        %v2649 = vadd.f32 %v2392, %v2648
        %2650 = vmatprep.mubr.f32.mxu0 %v1737
        %2651 = vmatmul.mubr.f32.gmra.mxu0 %v1736
        %v2652 = vpop.f32.mrf.mxu0
        %v2653 = vadd.f32 %v2396, %v2652
        %v2654 = vpop.f32.mrf.mxu0
        %v2655 = vadd.f32 %v2398, %v2654
        %2656 = vmatprep.mubr.f32.mxu0 %v1742
        %2657 = vmatmul.mubr.f32.gmra.mxu0 %v1741
        %v2658 = vpop.f32.mrf.mxu0
        %v2659 = vadd.f32 %v2402, %v2658
        %v2660 = vpop.f32.mrf.mxu0
        %v2661 = vadd.f32 %v2404, %v2660
        %2662 = vmatprep.mubr.f32.mxu0 %v1747
        %2663 = vmatmul.mubr.f32.gmra.mxu0 %v1746
        %v2664 = vpop.f32.mrf.mxu0
        %v2665 = vadd.f32 %v2408, %v2664
        %v2666 = vpop.f32.mrf.mxu0
        %v2667 = vadd.f32 %v2410, %v2666
        %2668 = vmatprep.mubr.f32.mxu0 %v1752
        %2669 = vmatmul.mubr.f32.gmra.mxu0 %v1751
        %v2670 = vpop.f32.mrf.mxu0
        %v2671 = vadd.f32 %v2414, %v2670
        %v2672 = vpop.f32.mrf.mxu0
        %v2673 = vadd.f32 %v2416, %v2672
        %2674 = vmatprep.mubr.f32.mxu0 %v1757
        %2675 = vmatmul.mubr.f32.gmra.mxu0 %v1756
        %v2676 = vpop.f32.mrf.mxu0
        %v2677 = vadd.f32 %v2420, %v2676
        %v2678 = vpop.f32.mrf.mxu0
        %v2679 = vadd.f32 %v2422, %v2678
        %2680 = vmatprep.mubr.f32.mxu0 %v1762
        %2681 = vmatmul.mubr.f32.gmra.mxu0 %v1761
        %v2682 = vpop.f32.mrf.mxu0
        %v2683 = vadd.f32 %v2426, %v2682
        %v2684 = vpop.f32.mrf.mxu0
        %v2685 = vadd.f32 %v2428, %v2684
        %2686 = vmatprep.mubr.f32.mxu0 %v1767
        %2687 = vmatmul.mubr.f32.gmra.mxu0 %v1766
        %v2688 = vpop.f32.mrf.mxu0
        %v2689 = vadd.f32 %v2432, %v2688
        %v2690 = vpop.f32.mrf.mxu0
        %v2691 = vadd.f32 %v2434, %v2690
        %2692 = vmatprep.mubr.f32.mxu0 %v1772
        %2693 = vmatmul.mubr.f32.gmra.mxu0 %v1771
        %v2694 = vpop.f32.mrf.mxu0
        %v2695 = vadd.f32 %v2438, %v2694
        %v2696 = vpop.f32.mrf.mxu0
        %v2697 = vadd.f32 %v2440, %v2696
        %2698 = vmatprep.mubr.f32.mxu0 %v1777
        %2699 = vmatmul.mubr.f32.gmra.mxu0 %v1776
        %v2700 = vpop.f32.mrf.mxu0
        %v2701 = vadd.f32 %v2444, %v2700
        %v2702 = vpop.f32.mrf.mxu0
        %v2703 = vadd.f32 %v2446, %v2702
        %2704 = vmatprep.mubr.f32.mxu0 %v1782
        %2705 = vmatmul.mubr.f32.gmra.mxu0 %v1781
        %v2706 = vpop.f32.mrf.mxu0
        %v2707 = vadd.f32 %v2450, %v2706
        %v2708 = vpop.f32.mrf.mxu0
        %v2709 = vadd.f32 %v2452, %v2708
        %2710 = vmatprep.mubr.f32.mxu0 %v1787
        %2711 = vmatmul.mubr.f32.gmra.mxu0 %v1786
        %v2712 = vpop.f32.mrf.mxu0
        %v2713 = vadd.f32 %v2456, %v2712
        %v2714 = vpop.f32.mrf.mxu0
        %v2715 = vadd.f32 %v2458, %v2714
        %2716 = vmatprep.mubr.f32.mxu0 %v1792
        %2717 = vmatmul.mubr.f32.gmra.mxu0 %v1791
        %v2718 = vpop.f32.mrf.mxu0
        %v2719 = vadd.f32 %v2462, %v2718
        %v2720 = vpop.f32.mrf.mxu0
        %v2721 = vadd.f32 %v2464, %v2720
        %2722 = vmatprep.mubr.f32.mxu0 %v1797
        %2723 = vmatmul.mubr.f32.gmra.mxu0 %v1796
        %v2724 = vpop.f32.mrf.mxu0
        %v2725 = vadd.f32 %v2468, %v2724
        %v2726 = vpop.f32.mrf.mxu0
        %v2727 = vadd.f32 %v2470, %v2726
        %2728 = vmatprep.mubr.f32.mxu0 %v1802
        %2729 = vmatmul.mubr.f32.gmra.mxu0 %v1801
        %v2730 = vpop.f32.mrf.mxu0
        %v2731 = vadd.f32 %v2474, %v2730
        %v2732 = vpop.f32.mrf.mxu0
        %v2733 = vadd.f32 %v2476, %v2732
        %2734 = vmatprep.mubr.f32.mxu0 %v1807
        %2735 = vmatmul.mubr.f32.gmra.mxu0 %v1806
        %v2736 = vpop.f32.mrf.mxu0
        %v2737 = vadd.f32 %v2480, %v2736
        %v2738 = vpop.f32.mrf.mxu0
        %v2739 = vadd.f32 %v2482, %v2738
        %2740 = vmatprep.mubr.f32.mxu0 %v1812
        %2741 = vmatmul.mubr.f32.gmra.mxu0 %v1811
        %v2742 = vpop.f32.mrf.mxu0
        %v2743 = vadd.f32 %v2486, %v2742
        %v2744 = vpop.f32.mrf.mxu0
        %v2745 = vadd.f32 %v2488, %v2744
        %2746 = vmatprep.mubr.f32.mxu0 %v1817
        %2747 = vmatmul.mubr.f32.gmra.mxu0 %v1816
        %v2748 = vpop.f32.mrf.mxu0
        %v2749 = vadd.f32 %v2492, %v2748
        %v2750 = vpop.f32.mrf.mxu0
        %v2751 = vadd.f32 %v2494, %v2750
        %2752 = vmatprep.mubr.f32.mxu0 %v1822
        %2753 = vmatmul.mubr.f32.gmra.mxu0 %v1821
        %v2754 = vpop.f32.mrf.mxu0
        %v2755 = vadd.f32 %v2498, %v2754
        %v2756 = vpop.f32.mrf.mxu0
        %v2757 = vadd.f32 %v2500, %v2756
        %2758 = vmatprep.mubr.f32.mxu0 %v1827
        %2759 = vmatmul.mubr.f32.gmra.mxu0 %v1826
        %v2760 = vpop.f32.mrf.mxu0
        %v2761 = vadd.f32 %v2504, %v2760
        %v2762 = vpop.f32.mrf.mxu0
        %v2763 = vadd.f32 %v2506, %v2762
        %2764 = vmatprep.mubr.f32.mxu0 %v1832
        %2765 = vmatmul.mubr.f32.gmra.mxu0 %v1831
        %v2766 = vpop.f32.mrf.mxu0
        %v2767 = vadd.f32 %v2510, %v2766
        %v2768 = vpop.f32.mrf.mxu0
        %v2769 = vadd.f32 %v2512, %v2768
        %2770 = vmatprep.mubr.f32.mxu0 %v1837
        %2771 = vmatmul.mubr.f32.gmra.mxu0 %v1836
        %v2772 = vpop.f32.mrf.mxu0
        %v2773 = vadd.f32 %v2516, %v2772
        %v2774 = vpop.f32.mrf.mxu0
        %v2775 = vadd.f32 %v2518, %v2774
        %2776 = vmatprep.mubr.f32.mxu0 %v1842
        %2777 = vmatmul.mubr.f32.gmra.mxu0 %v1841
        %v2778 = vpop.f32.mrf.mxu0
        %v2779 = vadd.f32 %v2522, %v2778
        %v2780 = vpop.f32.mrf.mxu0
        %v2781 = vadd.f32 %v2524, %v2780
        %2782 = vmatprep.mubr.f32.mxu0 %v1847
        %2783 = vmatmul.mubr.f32.gmra.mxu0 %v1846
        %v2784 = vpop.f32.mrf.mxu0
        %v2785 = vadd.f32 %v2528, %v2784
        %v2786 = vpop.f32.mrf.mxu0
        %v2787 = vadd.f32 %v2530, %v2786
        %2788 = vmatprep.mubr.f32.mxu0 %v1852
        %2789 = vmatmul.mubr.f32.gmra.mxu0 %v1851
        %v2790 = vpop.f32.mrf.mxu0
        %v2791 = vadd.f32 %v2534, %v2790
        %v2792 = vpop.f32.mrf.mxu0
        %v2793 = vadd.f32 %v2536, %v2792
        %2794 = vmatprep.mubr.f32.mxu0 %v1857
        %2795 = vmatmul.mubr.f32.gmra.mxu0 %v1856
        %v2796 = vpop.f32.mrf.mxu0
        %v2797 = vadd.f32 %v2540, %v2796
        %v2798 = vpop.f32.mrf.mxu0
        %v2799 = vadd.f32 %v2542, %v2798
        %2800 = vmatprep.mubr.f32.mxu0 %v1862
        %2801 = vmatmul.mubr.f32.gmra.mxu0 %v1861
        %v2802 = vpop.f32.mrf.mxu0
        %v2803 = vadd.f32 %v2546, %v2802
        %v2804 = vpop.f32.mrf.mxu0
        %v2805 = vadd.f32 %v2548, %v2804
        %2806 = vmatprep.mubr.f32.mxu0 %v1867
        %2807 = vmatmul.mubr.f32.gmra.mxu0 %v1866
        %v2808 = vpop.f32.mrf.mxu0
        %v2809 = vadd.f32 %v2552, %v2808
        %v2810 = vpop.f32.mrf.mxu0
        %v2811 = vadd.f32 %v2554, %v2810
        %2812 = vmatprep.mubr.f32.mxu0 %v1872
        %2813 = vmatmul.mubr.f32.gmra.mxu0 %v1871
        %v2814 = vpop.f32.mrf.mxu0
        %v2815 = vadd.f32 %v2558, %v2814
        %v2816 = vpop.f32.mrf.mxu0
        %v2817 = vadd.f32 %v2560, %v2816
        %2818 = vmatprep.mubr.f32.mxu0 %v1877
        %2819 = vmatmul.mubr.f32.gmra.mxu0 %v1876
        %v2820 = vpop.f32.mrf.mxu0
        %v2821 = vadd.f32 %v2564, %v2820
        %v2822 = vpop.f32.mrf.mxu0
        %v2823 = vadd.f32 %v2566, %v2822
        %2824 = vmatprep.mubr.f32.mxu0 %v1882
        %2825 = vmatmul.mubr.f32.gmra.mxu0 %v1881
        %v2826 = vpop.f32.mrf.mxu0
        %v2827 = vadd.f32 %v2570, %v2826
        %v2828 = vpop.f32.mrf.mxu0
        %v2829 = vadd.f32 %v2572, %v2828
        %2830 = vdwg.mxu0
        %2831 = vmatprep.subr.mxu0 0.0
        %2832 = vmatpush1.msra.mxu0 0.0
        %2833 = vmatprep.subr.mxu0 0.0
        %2834 = vmatpush1.msra.mxu0 0.0
        %2835 = vmatprep.subr.mxu0 0.0
        %2836 = vmatpush1.msra.mxu0 0.0
        %2837 = vmatprep.subr.mxu0 0.0
        %2838 = vmatpush1.msra.mxu0 0.0
        %2839 = vmatprep.subr.mxu0 0.0
        %2840 = vmatpush1.msra.mxu0 0.0
        %2841 = vmatprep.subr.mxu0 0.0
        %2842 = vmatpush1.msra.mxu0 0.0
        %2843 = vmatprep.subr.mxu0 0.0
        %2844 = vmatpush1.msra.mxu0 0.0
        %2845 = vmatprep.subr.mxu0 0.0
        %2846 = vmatpush1.msra.mxu0 0.0
        %2847 = vmatprep.subr.mxu0 %v2027
        %2848 = vmatpush1.msra.mxu0 %v2026
        %2849 = vmatprep.subr.mxu0 %v2025
        %2850 = vmatpush1.msra.mxu0 %v2024
        %2851 = vmatprep.subr.mxu0 %v2023
        %2852 = vmatpush1.msra.mxu0 %v2022
        %2853 = vmatprep.subr.mxu0 %v2021
        %2854 = vmatpush1.msra.mxu0 %v2020
        %2855 = vmatprep.subr.mxu0 %v2019
        %2856 = vmatpush1.msra.mxu0 %v2018
        %2857 = vmatprep.subr.mxu0 %v2017
        %2858 = vmatpush1.msra.mxu0 %v2016
        %2859 = vmatprep.subr.mxu0 %v2015
        %2860 = vmatpush1.msra.mxu0 %v2014
        %2861 = vmatprep.subr.mxu0 %v2013
        %2862 = vmatpush1.msra.mxu0 %v2012
        %2863 = vmatprep.subr.mxu0 0.0
        %2864 = vmatpush2.msra.mxu0 0.0
        %2865 = vmatprep.subr.mxu0 0.0
        %2866 = vmatpush2.msra.mxu0 0.0
        %2867 = vmatprep.subr.mxu0 0.0
        %2868 = vmatpush2.msra.mxu0 0.0
        %2869 = vmatprep.subr.mxu0 0.0
        %2870 = vmatpush2.msra.mxu0 0.0
        %2871 = vmatprep.subr.mxu0 0.0
        %2872 = vmatpush2.msra.mxu0 0.0
        %2873 = vmatprep.subr.mxu0 0.0
        %2874 = vmatpush2.msra.mxu0 0.0
        %2875 = vmatprep.subr.mxu0 0.0
        %2876 = vmatpush2.msra.mxu0 0.0
        %2877 = vmatprep.subr.mxu0 0.0
        %2878 = vmatpush2.msra.mxu0 0.0
        %2879 = vmatprep.subr.mxu0 0.0
        %2880 = vmatpush2.msra.mxu0 0.0
        %2881 = vmatprep.subr.mxu0 0.0
        %2882 = vmatpush2.msra.mxu0 0.0
        %2883 = vmatprep.subr.mxu0 0.0
        %2884 = vmatpush2.msra.mxu0 0.0
        %2885 = vmatprep.subr.mxu0 0.0
        %2886 = vmatpush2.msra.mxu0 0.0
        %2887 = vmatprep.subr.mxu0 0.0
        %2888 = vmatpush2.msra.mxu0 0.0
        %2889 = vmatprep.subr.mxu0 0.0
        %2890 = vmatpush2.msra.mxu0 0.0
        %2891 = vmatprep.subr.mxu0 0.0
        %2892 = vmatpush2.msra.mxu0 0.0
        %2893 = vmatprep.subr.mxu0 0.0
        %2894 = vmatpush2.msra.mxu0 0.0
        %2895 = vmatprep.mubr.f32.mxu0 0.0
        %2896 = vmatmul.mubr.f32.gmra.mxu0 %v2222
        %v2897 = vpop.f32.mrf.mxu0
        %v2898 = vadd.f32 %v2641, %v2897
        %v2899 = vpop.f32.mrf.mxu0
        %v2900 = vadd.f32 %v2643, %v2899
        %2901 = vmatprep.mubr.f32.mxu0 0.0
        %2902 = vmatmul.mubr.f32.gmra.mxu0 %v2225
        %v2903 = vpop.f32.mrf.mxu0
        %v2904 = vadd.f32 %v2647, %v2903
        %v2905 = vpop.f32.mrf.mxu0
        %v2906 = vadd.f32 %v2649, %v2905
        %2907 = vmatprep.mubr.f32.mxu0 0.0
        %2908 = vmatmul.mubr.f32.gmra.mxu0 %v2228
        %v2909 = vpop.f32.mrf.mxu0
        %v2910 = vadd.f32 %v2653, %v2909
        %v2911 = vpop.f32.mrf.mxu0
        %v2912 = vadd.f32 %v2655, %v2911
        %2913 = vmatprep.mubr.f32.mxu0 0.0
        %2914 = vmatmul.mubr.f32.gmra.mxu0 %v2231
        %v2915 = vpop.f32.mrf.mxu0
        %v2916 = vadd.f32 %v2659, %v2915
        %v2917 = vpop.f32.mrf.mxu0
        %v2918 = vadd.f32 %v2661, %v2917
        %2919 = vmatprep.mubr.f32.mxu0 0.0
        %2920 = vmatmul.mubr.f32.gmra.mxu0 %v2234
        %v2921 = vpop.f32.mrf.mxu0
        %v2922 = vadd.f32 %v2665, %v2921
        %v2923 = vpop.f32.mrf.mxu0
        %v2924 = vadd.f32 %v2667, %v2923
        %2925 = vmatprep.mubr.f32.mxu0 0.0
        %2926 = vmatmul.mubr.f32.gmra.mxu0 %v2237
        %v2927 = vpop.f32.mrf.mxu0
        %v2928 = vadd.f32 %v2671, %v2927
        %v2929 = vpop.f32.mrf.mxu0
        %v2930 = vadd.f32 %v2673, %v2929
        %2931 = vmatprep.mubr.f32.mxu0 0.0
        %2932 = vmatmul.mubr.f32.gmra.mxu0 %v2240
        %v2933 = vpop.f32.mrf.mxu0
        %v2934 = vadd.f32 %v2677, %v2933
        %v2935 = vpop.f32.mrf.mxu0
        %v2936 = vadd.f32 %v2679, %v2935
        %2937 = vmatprep.mubr.f32.mxu0 0.0
        %2938 = vmatmul.mubr.f32.gmra.mxu0 %v2243
        %v2939 = vpop.f32.mrf.mxu0
        %v2940 = vadd.f32 %v2683, %v2939
        %v2941 = vpop.f32.mrf.mxu0
        %v2942 = vadd.f32 %v2685, %v2941
        %2943 = vmatprep.mubr.f32.mxu0 0.0
        %2944 = vmatmul.mubr.f32.gmra.mxu0 %v2246
        %v2945 = vpop.f32.mrf.mxu0
        %v2946 = vadd.f32 %v2689, %v2945
        %v2947 = vpop.f32.mrf.mxu0
        %v2948 = vadd.f32 %v2691, %v2947
        %2949 = vmatprep.mubr.f32.mxu0 0.0
        %2950 = vmatmul.mubr.f32.gmra.mxu0 %v2249
        %v2951 = vpop.f32.mrf.mxu0
        %v2952 = vadd.f32 %v2695, %v2951
        %v2953 = vpop.f32.mrf.mxu0
        %v2954 = vadd.f32 %v2697, %v2953
        %2955 = vmatprep.mubr.f32.mxu0 0.0
        %2956 = vmatmul.mubr.f32.gmra.mxu0 %v2252
        %v2957 = vpop.f32.mrf.mxu0
        %v2958 = vadd.f32 %v2701, %v2957
        %v2959 = vpop.f32.mrf.mxu0
        %v2960 = vadd.f32 %v2703, %v2959
        %2961 = vmatprep.mubr.f32.mxu0 0.0
        %2962 = vmatmul.mubr.f32.gmra.mxu0 %v2255
        %v2963 = vpop.f32.mrf.mxu0
        %v2964 = vadd.f32 %v2707, %v2963
        %v2965 = vpop.f32.mrf.mxu0
        %v2966 = vadd.f32 %v2709, %v2965
        %2967 = vmatprep.mubr.f32.mxu0 0.0
        %2968 = vmatmul.mubr.f32.gmra.mxu0 %v2258
        %v2969 = vpop.f32.mrf.mxu0
        %v2970 = vadd.f32 %v2713, %v2969
        %v2971 = vpop.f32.mrf.mxu0
        %v2972 = vadd.f32 %v2715, %v2971
        %2973 = vmatprep.mubr.f32.mxu0 0.0
        %2974 = vmatmul.mubr.f32.gmra.mxu0 %v2261
        %v2975 = vpop.f32.mrf.mxu0
        %v2976 = vadd.f32 %v2719, %v2975
        %v2977 = vpop.f32.mrf.mxu0
        %v2978 = vadd.f32 %v2721, %v2977
        %2979 = vmatprep.mubr.f32.mxu0 0.0
        %2980 = vmatmul.mubr.f32.gmra.mxu0 %v2264
        %v2981 = vpop.f32.mrf.mxu0
        %v2982 = vadd.f32 %v2725, %v2981
        %v2983 = vpop.f32.mrf.mxu0
        %v2984 = vadd.f32 %v2727, %v2983
        %2985 = vmatprep.mubr.f32.mxu0 0.0
        %2986 = vmatmul.mubr.f32.gmra.mxu0 %v2267
        %v2987 = vpop.f32.mrf.mxu0
        %v2988 = vadd.f32 %v2731, %v2987
        %v2989 = vpop.f32.mrf.mxu0
        %v2990 = vadd.f32 %v2733, %v2989
        %2991 = vmatprep.mubr.f32.mxu0 0.0
        %2992 = vmatmul.mubr.f32.gmra.mxu0 %v2270
        %v2993 = vpop.f32.mrf.mxu0
        %v2994 = vadd.f32 %v2737, %v2993
        %v2995 = vpop.f32.mrf.mxu0
        %v2996 = vadd.f32 %v2739, %v2995
        %2997 = vmatprep.mubr.f32.mxu0 0.0
        %2998 = vmatmul.mubr.f32.gmra.mxu0 %v2273
        %v2999 = vpop.f32.mrf.mxu0
        %v3000 = vadd.f32 %v2743, %v2999
        %v3001 = vpop.f32.mrf.mxu0
        %v3002 = vadd.f32 %v2745, %v3001
        %3003 = vmatprep.mubr.f32.mxu0 0.0
        %3004 = vmatmul.mubr.f32.gmra.mxu0 %v2276
        %v3005 = vpop.f32.mrf.mxu0
        %v3006 = vadd.f32 %v2749, %v3005
        %v3007 = vpop.f32.mrf.mxu0
        %v3008 = vadd.f32 %v2751, %v3007
        %3009 = vmatprep.mubr.f32.mxu0 0.0
        %3010 = vmatmul.mubr.f32.gmra.mxu0 %v2279
        %v3011 = vpop.f32.mrf.mxu0
        %v3012 = vadd.f32 %v2755, %v3011
        %v3013 = vpop.f32.mrf.mxu0
        %v3014 = vadd.f32 %v2757, %v3013
        %3015 = vmatprep.mubr.f32.mxu0 0.0
        %3016 = vmatmul.mubr.f32.gmra.mxu0 %v2282
        %v3017 = vpop.f32.mrf.mxu0
        %v3018 = vadd.f32 %v2761, %v3017
        %v3019 = vpop.f32.mrf.mxu0
        %v3020 = vadd.f32 %v2763, %v3019
        %3021 = vmatprep.mubr.f32.mxu0 0.0
        %3022 = vmatmul.mubr.f32.gmra.mxu0 %v2285
        %v3023 = vpop.f32.mrf.mxu0
        %v3024 = vadd.f32 %v2767, %v3023
        %v3025 = vpop.f32.mrf.mxu0
        %v3026 = vadd.f32 %v2769, %v3025
        %3027 = vmatprep.mubr.f32.mxu0 0.0
        %3028 = vmatmul.mubr.f32.gmra.mxu0 %v2288
        %v3029 = vpop.f32.mrf.mxu0
        %v3030 = vadd.f32 %v2773, %v3029
        %v3031 = vpop.f32.mrf.mxu0
        %v3032 = vadd.f32 %v2775, %v3031
        %3033 = vmatprep.mubr.f32.mxu0 0.0
        %3034 = vmatmul.mubr.f32.gmra.mxu0 %v2291
        %v3035 = vpop.f32.mrf.mxu0
        %v3036 = vadd.f32 %v2779, %v3035
        %v3037 = vpop.f32.mrf.mxu0
        %v3038 = vadd.f32 %v2781, %v3037
        %3039 = vmatprep.mubr.f32.mxu0 0.0
        %3040 = vmatmul.mubr.f32.gmra.mxu0 %v2294
        %v3041 = vpop.f32.mrf.mxu0
        %v3042 = vadd.f32 %v2785, %v3041
        %v3043 = vpop.f32.mrf.mxu0
        %v3044 = vadd.f32 %v2787, %v3043
        %3045 = vmatprep.mubr.f32.mxu0 0.0
        %3046 = vmatmul.mubr.f32.gmra.mxu0 %v2297
        %v3047 = vpop.f32.mrf.mxu0
        %v3048 = vadd.f32 %v2791, %v3047
        %v3049 = vpop.f32.mrf.mxu0
        %v3050 = vadd.f32 %v2793, %v3049
        %3051 = vmatprep.mubr.f32.mxu0 0.0
        %3052 = vmatmul.mubr.f32.gmra.mxu0 %v2300
        %v3053 = vpop.f32.mrf.mxu0
        %v3054 = vadd.f32 %v2797, %v3053
        %v3055 = vpop.f32.mrf.mxu0
        %v3056 = vadd.f32 %v2799, %v3055
        %3057 = vmatprep.mubr.f32.mxu0 0.0
        %3058 = vmatmul.mubr.f32.gmra.mxu0 %v2303
        %v3059 = vpop.f32.mrf.mxu0
        %v3060 = vadd.f32 %v2803, %v3059
        %v3061 = vpop.f32.mrf.mxu0
        %v3062 = vadd.f32 %v2805, %v3061
        %3063 = vmatprep.mubr.f32.mxu0 0.0
        %3064 = vmatmul.mubr.f32.gmra.mxu0 %v2306
        %v3065 = vpop.f32.mrf.mxu0
        %v3066 = vadd.f32 %v2809, %v3065
        %v3067 = vpop.f32.mrf.mxu0
        %v3068 = vadd.f32 %v2811, %v3067
        %3069 = vmatprep.mubr.f32.mxu0 0.0
        %3070 = vmatmul.mubr.f32.gmra.mxu0 %v2309
        %v3071 = vpop.f32.mrf.mxu0
        %v3072 = vadd.f32 %v2815, %v3071
        %v3073 = vpop.f32.mrf.mxu0
        %v3074 = vadd.f32 %v2817, %v3073
        %3075 = vmatprep.mubr.f32.mxu0 0.0
        %3076 = vmatmul.mubr.f32.gmra.mxu0 %v2312
        %v3077 = vpop.f32.mrf.mxu0
        %v3078 = vadd.f32 %v2821, %v3077
        %v3079 = vpop.f32.mrf.mxu0
        %v3080 = vadd.f32 %v2823, %v3079
        %3081 = vmatprep.mubr.f32.mxu0 0.0
        %3082 = vmatmul.mubr.f32.gmra.mxu0 %v2315
        %v3083 = vpop.f32.mrf.mxu0
        %v3084 = vadd.f32 %v2827, %v3083
        %v3085 = vpop.f32.mrf.mxu0
        %v3086 = vadd.f32 %v2829, %v3085
        %3087 = vdwg.mxu0
        %3088 = vst [vmem:[%s190] sm:$0xff] %v2898
        %3089 = vst [vmem:[%s190 + $0x8] sm:$0xff] %v2900
        %3090 = vst [vmem:[%s190 + $0x10] sm:$0xff] %v2904
        %3091 = vst [vmem:[%s190 + $0x18] sm:$0xff] %v2906
        %3092 = vst [vmem:[%s190 + $0x20] sm:$0xff] %v2910
        %3093 = vst [vmem:[%s190 + $0x28] sm:$0xff] %v2912
        %3094 = vst [vmem:[%s190 + $0x30] sm:$0xff] %v2916
        %3095 = vst [vmem:[%s190 + $0x38] sm:$0xff] %v2918
        %3096 = vst [vmem:[%s190 + $0x40] sm:$0xff] %v2922
        %3097 = vst [vmem:[%s190 + $0x48] sm:$0xff] %v2924
        %3098 = vst [vmem:[%s190 + $0x50] sm:$0xff] %v2928
        %3099 = vst [vmem:[%s190 + $0x58] sm:$0xff] %v2930
        %3100 = vst [vmem:[%s190 + $0x60] sm:$0xff] %v2934
        %3101 = vst [vmem:[%s190 + $0x68] sm:$0xff] %v2936
        %3102 = vst [vmem:[%s190 + $0x70] sm:$0xff] %v2940
        %3103 = vst [vmem:[%s190 + $0x78] sm:$0xff] %v2942
        %3104 = vst [vmem:[%s190 + $0x80] sm:$0xff] %v2946
        %3105 = vst [vmem:[%s190 + $0x88] sm:$0xff] %v2948
        %3106 = vst [vmem:[%s190 + $0x90] sm:$0xff] %v2952
        %3107 = vst [vmem:[%s190 + $0x98] sm:$0xff] %v2954
        %3108 = vst [vmem:[%s190 + $0xa0] sm:$0xff] %v2958
        %3109 = vst [vmem:[%s190 + $0xa8] sm:$0xff] %v2960
        %3110 = vst [vmem:[%s190 + $0xb0] sm:$0xff] %v2964
        %3111 = vst [vmem:[%s190 + $0xb8] sm:$0xff] %v2966
        %3112 = vst [vmem:[%s190 + $0xc0] sm:$0xff] %v2970
        %3113 = vst [vmem:[%s190 + $0xc8] sm:$0xff] %v2972
        %3114 = vst [vmem:[%s190 + $0xd0] sm:$0xff] %v2976
        %3115 = vst [vmem:[%s190 + $0xd8] sm:$0xff] %v2978
        %3116 = vst [vmem:[%s190 + $0xe0] sm:$0xff] %v2982
        %3117 = vst [vmem:[%s190 + $0xe8] sm:$0xff] %v2984
        %3118 = vst [vmem:[%s190 + $0xf0] sm:$0xff] %v2988
        %3119 = vst [vmem:[%s190 + $0xf8] sm:$0xff] %v2990
        %3120 = vst [vmem:[%s190 + $0x100] sm:$0xff] %v2994
        %3121 = vst [vmem:[%s190 + $0x108] sm:$0xff] %v2996
        %3122 = vst [vmem:[%s190 + $0x110] sm:$0xff] %v3000
        %3123 = vst [vmem:[%s190 + $0x118] sm:$0xff] %v3002
        %3124 = vst [vmem:[%s190 + $0x120] sm:$0xff] %v3006
        %3125 = vst [vmem:[%s190 + $0x128] sm:$0xff] %v3008
        %3126 = vst [vmem:[%s190 + $0x130] sm:$0xff] %v3012
        %3127 = vst [vmem:[%s190 + $0x138] sm:$0xff] %v3014
        %3128 = vst [vmem:[%s190 + $0x140] sm:$0xff] %v3018
        %3129 = vst [vmem:[%s190 + $0x148] sm:$0xff] %v3020
        %3130 = vst [vmem:[%s190 + $0x150] sm:$0xff] %v3024
        %3131 = vst [vmem:[%s190 + $0x158] sm:$0xff] %v3026
        %3132 = vst [vmem:[%s190 + $0x160] sm:$0xff] %v3030
        %3133 = vst [vmem:[%s190 + $0x168] sm:$0xff] %v3032
        %3134 = vst [vmem:[%s190 + $0x170] sm:$0xff] %v3036
        %3135 = vst [vmem:[%s190 + $0x178] sm:$0xff] %v3038
        %3136 = vst [vmem:[%s190 + $0x180] sm:$0xff] %v3042
        %3137 = vst [vmem:[%s190 + $0x188] sm:$0xff] %v3044
        %3138 = vst [vmem:[%s190 + $0x190] sm:$0xff] %v3048
        %3139 = vst [vmem:[%s190 + $0x198] sm:$0xff] %v3050
        %3140 = vst [vmem:[%s190 + $0x1a0] sm:$0xff] %v3054
        %3141 = vst [vmem:[%s190 + $0x1a8] sm:$0xff] %v3056
        %3142 = vst [vmem:[%s190 + $0x1b0] sm:$0xff] %v3060
        %3143 = vst [vmem:[%s190 + $0x1b8] sm:$0xff] %v3062
        %3144 = vst [vmem:[%s190 + $0x1c0] sm:$0xff] %v3066
        %3145 = vst [vmem:[%s190 + $0x1c8] sm:$0xff] %v3068
        %3146 = vst [vmem:[%s190 + $0x1d0] sm:$0xff] %v3072
        %3147 = vst [vmem:[%s190 + $0x1d8] sm:$0xff] %v3074
        %3148 = vst [vmem:[%s190 + $0x1e0] sm:$0xff] %v3078
        %3149 = vst [vmem:[%s190 + $0x1e8] sm:$0xff] %v3080
        %3150 = vst [vmem:[%s190 + $0x1f0] sm:$0xff] %v3084
        %3151 = vst [vmem:[%s190 + $0x1f8] sm:$0xff] %v3086
        %s3152 = sand.u32 %s115, 1
        %s3153 = scalar_lea.sflag [#allocation4], %s3152
        %s3154 = sand.u32 %s115, 1
        %s3155 = smul.addr %s3154, 512
        %s3156 = scalar_lea.vmem [#allocation3], %s3155
        // Predicated region
        $region37: #{tpu_custom_call.1} parent=35 // pred_check
          %p3157 = pneg %p125
        $region38: #{tpu_custom_call.1} parent=35 // pred_check_branch
          %3159 = sbr.rel (%p3157) target = $region40
        $region39: #{tpu_custom_call.1} parent=35 // pred_region
          %s3161 = ssub.s32 8192, 8192
          %3162 = vsyncadd %s3153, %s3161
          %s3163 = smul.addr %s18, 64
          %s3164 = smul.addr %s3163, 128
          %s3165 = scalar_lea.hbm %s4, %s3164
          %s3166 = sshll.u32 %s3156, 4
          %s3167 = int_to_ptr.vmem [resolvable:$true] %s3166
          %3172 = dma.vmem_to_hbm [thread:$0]  %s3167, 8192, %s3165, %s3153, 256, 256, 16
        $region40: #{tpu_custom_call.1} parent=35 // pred_fallthru
          _
      $region36: #{tpu_custom_call.1} parent=5 // pred_fallthru
        _
      %p3173 = scmp.le.s32.totalorder 2, %s13
      // Predicated region
      $region41: #{tpu_custom_call.1} parent=5 // pred_check
        %p3174 = pneg %p3173
      $region42: #{tpu_custom_call.1} parent=5 // pred_check_branch
        %3176 = sbr.rel (%p3174) target = $region44
      $region43: #{tpu_custom_call.1} parent=5 // pred_region
        %s3177 = ssub.s32 %s13, 2
        // Predicated region
        $region45: #{tpu_custom_call.1} parent=43 // pred_check
          %p3178 = pneg %p131
        $region46: #{tpu_custom_call.1} parent=43 // pred_check_branch
          %3180 = sbr.rel (%p3178) target = $region48
        $region47: #{tpu_custom_call.1} parent=43 // pred_region
          %s3181 = sand.u32 %s116, 1
          %s3182 = scalar_lea.sflag [#allocation4], %s3181
          %s3183 = sand.u32 %s116, 1
          %s3184 = smul.addr %s3183, 512
          %s3185 = scalar_lea.vmem [#allocation3], %s3184
          %3186 = dma.done %s3182, 8192
        $region48: #{tpu_custom_call.1} parent=43 // pred_fallthru
          _
      $region44: #{tpu_custom_call.1} parent=5 // pred_fallthru
        _
    $region6: #{tpu_custom_call.1} parent=1 // loop_footer
      %s17 = sadd.s32 1, %s13
    $region7: #{tpu_custom_call.1} parent=1 // loop_footer_branch
      %12 = sbr.rel target = $region3
    $region8: #{tpu_custom_call.1} parent=1 // loop_exit
      _
    %3187 = vsyncpa [#allocation4], 1
    %s3188 = scalar_lea.sflag [#allocation4], 1
    %3189 = vsyncpa %s3188, 1

</llo_original>
